<compile_context>
chip_gen: v7x
topology: tpu7x:2x2x1
jax: 0.10.0
libtpu: 0.0.40
codegen_flags: <defaults>
</compile_context>

<pallas_src>
import functools

import jax
import jax.numpy as jnp
import numpy as np
from jax.experimental import pallas as pl
from jax.experimental.pallas import tpu as pltpu

_EPS = 1e-5  # PyTorch InstanceNorm2d default eps (affine=False, biased variance)


def _reflect_pad_into(pad_ref, y, p, H, W):
    """Reflection-pad y (H, W, C) by p and store into pad_ref[:H+2p, :W+2p, :].

    Row padding is assembled at value level (axis-0 concatenate of reflected
    rows) and written with one bulk store; the 2*p reflected columns are sourced
    from that same value, so no store reads back from the scratch ref.  (A
    single fully-assembled bulk store would need a sublane-axis value concat;
    kept as 1 bulk + 2p narrow stores, which is known-good on all generations.)
    """
    top = [y[i:i + 1] for i in range(p, 0, -1)]               # rows p, p-1, ..., 1
    bot = [y[i:i + 1] for i in range(H - 2, H - 2 - p, -1)]   # rows H-2, ..., H-1-p
    yr = jnp.concatenate(top + [y] + bot, axis=0)             # (H + 2p, W, C)

    pad_ref[0:H + 2 * p, p:p + W, :] = yr                     # bulk interior store
    for j in range(p):                                        # 2p narrow column stores
        pad_ref[0:H + 2 * p, j, :] = yr[:, p - j, :]          # left (incl. corners)
        pad_ref[0:H + 2 * p, p + W + j, :] = yr[:, W - 2 - j, :]  # right


def _conv3x3_fused(pad_ref, stk_ref, w_ref, d, H, W, C):
    """VALID 3x3 conv (dilation d) as 3 bf16 matmuls with K = 3*C_in.

    pad_ref : (>=H+2d, >=W+2d, C) bf16 padded activation scratch.
    stk_ref : (H, >=W+2d, 3C) bf16 scratch; ky taps stacked along channels.
    w_ref   : (3, 3*C, C) bf16 weights; w_ref[kx][ky*C + cin, cout].
    Returns (H, W, C_out) float32 (MXU accumulates in f32).
    """
    Wp = W + 2 * d
    # Stack the three ky taps along the channel dim: aligned leading-dim band
    # reads, lane-sliced stores (lane-aligned when C is a multiple of 128).
    for ky in range(3):
        stk_ref[:, 0:Wp, ky * C:(ky + 1) * C] = pad_ref[ky * d:ky * d + H, 0:Wp, :]
    # 3 matmuls with K = 3C (vs 9 with K = C): better MXU depth fill on the
    # 256-deep v6e/v7x MXU, 3x fewer result drains, 2 (not 8) f32 adds.
    acc = None
    for kx in range(3):
        lhs = stk_ref[:, kx * d:kx * d + W, :]                # (H, W, 3C) bf16
        part = jax.lax.dot_general(
            lhs, w_ref[kx],
            dimension_numbers=(((2,), (0,)), ((), ())),
            preferred_element_type=jnp.float32)
        acc = part if acc is None else acc + part
    return acc


def _instance_norm(z, *, relu):
    """Per-channel normalization over spatial dims; single-pass f32 statistics."""
    inv_n = 1.0 / (z.shape[0] * z.shape[1])
    s = jnp.sum(z, axis=(0, 1), keepdims=True)
    ss = jnp.sum(z * z, axis=(0, 1), keepdims=True)
    m = s * inv_n
    # Clamp: E[x^2] - E[x]^2 can be slightly negative in f32 -> NaN via rsqrt.
    var = jnp.maximum(ss * inv_n - m * m, 0.0)
    out = (z - m) * jax.lax.rsqrt(var + _EPS)                 # rsqrt -> EUP
    if relu:
        out = jnp.maximum(out, 0.0)
    return out


def _resnet_block_kernel(x_ref, w1_ref, w2_ref, o_ref, pad_ref, stk_ref,
                         *, dilation, H, W, C):
    d = dilation

    # --- ReflectionPad2d(d) -> Conv2d(3x3, dilation=d) -> InstanceNorm -> ReLU ---
    _reflect_pad_into(pad_ref, x_ref[0].astype(jnp.bfloat16), d, H, W)
    y = _conv3x3_fused(pad_ref, stk_ref, w1_ref, d, H, W, C)
    y = _instance_norm(y, relu=True)

    # --- ReflectionPad2d(1) -> Conv2d(3x3) -> InstanceNorm (reuse scratches) ---
    _reflect_pad_into(pad_ref, y.astype(jnp.bfloat16), 1, H, W)
    y = _conv3x3_fused(pad_ref, stk_ref, w2_ref, 1, H, W, C)
    y = _instance_norm(y, relu=False)

    # --- residual add (f32); re-read the VMEM-resident input block instead of
    #     keeping it live across both convs (smaller live set, fewer spills). ---
    o_ref[0] = (x_ref[0].astype(jnp.float32) + y).astype(o_ref.dtype)


def _device_vmem_bytes():
    try:
        info = pltpu.get_tpu_info()
        cap = getattr(info, "vmem_capacity_bytes", None)
        if cap:
            return int(cap)
    except Exception:
        pass
    return 64 << 20  # conservative: v7x per-TensorCore VMEM


def resnet_block(x_nhwc, w1_hwio, w2_hwio, *, dilation=1):
    """x_nhwc: (N, H, W, C).  w1_hwio, w2_hwio: (3, 3, C_in, C_out) conv weights.

    Output dtype follows x_nhwc.dtype (pass bf16 activations to halve HBM DMA).
    """
    N, H, W, C = x_nhwc.shape
    d = int(dilation)
    # ReflectionPad2d requires pad < spatial dim (same constraint as PyTorch).
    assert d >= 1 and H > d and W > d and H >= 2 and W >= 2
    assert w1_hwio.shape == (3, 3, C, C) and w2_hwio.shape == (3, 3, C, C)

    # Weights: bf16 for the MXU, laid out (kx, ky*C + cin, cout) so each kx tap
    # is a single K = 3*C contraction against the ky-stacked LHS.
    w1_k = jnp.transpose(w1_hwio, (1, 0, 2, 3)).reshape(3, 3 * C, C).astype(jnp.bfloat16)
    w2_k = jnp.transpose(w2_hwio, (1, 0, 2, 3)).reshape(3, 3 * C, C).astype(jnp.bfloat16)

    # --- VMEM budget (per grid step), clamped to the *queried* physical VMEM ---
    isz = jnp.dtype(x_nhwc.dtype).itemsize
    io_bytes = 2 * 2 * H * W * C * isz                 # input + output blocks, 2-buffered
    w_bytes = 2 * 2 * 9 * C * C * 2                    # two bf16 weight tensors, 2-buffered
    pad_bytes = (H + 2 * d) * (W + 2 * d) * C * 2      # bf16 pad scratch (shared)
    stk_bytes = H * (W + 2 * d) * 3 * C * 2            # bf16 ky-stacked LHS scratch
    live_bytes = 6 * H * W * C * 4 + 2 * H * W * 3 * C * 2   # f32 temps + shifted lhs copies
    vmem_needed = int(1.4 * (io_bytes + w_bytes + pad_bytes + stk_bytes + live_bytes)) + (2 << 20)

    usable = int(0.8 * _device_vmem_bytes())           # headroom below physical VMEM
    if vmem_needed > usable:
        # TODO(synk): row-band tiling with accumulate-stats InstanceNorm (band grid
        # axis + per-channel sum/sumsq scratch, then a normalize pass) for feature
        # maps whose per-image working set exceeds VMEM (v7x: 64 MiB physical).
        raise NotImplementedError(
            f"per-image working set (~{vmem_needed >> 20} MiB) exceeds usable VMEM "
            f"({usable >> 20} MiB); row-band tiling is not implemented")
    vmem_limit = min(max(vmem_needed, 32 << 20), usable)

    kernel = functools.partial(_resnet_block_kernel, dilation=d, H=H, W=W, C=C)
    return pl.pallas_call(
        kernel,
        out_shape=jax.ShapeDtypeStruct((N, H, W, C), x_nhwc.dtype),
        grid_spec=pltpu.PrefetchScalarGridSpec(
            num_scalar_prefetch=0,
            grid=(N,),
            in_specs=[
                pl.BlockSpec((1, H, W, C), lambda n: (n, 0, 0, 0)),
                # Weights are grid-invariant (constant index_map -> DMA'd once).
                # pipeline_mode=pl.Buffered(1) would reclaim the second buffer;
                # left at the default to stay on the well-trodden path.
                pl.BlockSpec((3, 3 * C, C), lambda n: (0, 0, 0)),
                pl.BlockSpec((3, 3 * C, C), lambda n: (0, 0, 0)),
            ],
            out_specs=pl.BlockSpec((1, H, W, C), lambda n: (n, 0, 0, 0)),
            scratch_shapes=[
                pltpu.VMEM((H + 2 * d, W + 2 * d, C), jnp.bfloat16),   # pad scratch
                pltpu.VMEM((H, W + 2 * d, 3 * C), jnp.bfloat16),       # ky-stacked LHS
            ],
        ),
        compiler_params=pltpu.CompilerParams(
            dimension_semantics=("parallel",),   # N >= 2 keeps both v7x TCs busy
            vmem_limit_bytes=vmem_limit,
        ),
    )(x_nhwc, w1_k, w2_k)


def _reference_nchw(x_nchw, w1_hwio, w2_hwio, dilation):
    """Pure-JAX f32 reference matching the PyTorch module semantics (NCHW)."""
    def refl_pad(x, p):
        return jnp.pad(x, ((0, 0), (0, 0), (p, p), (p, p)), mode="reflect")

    def conv(x, w, dil):
        return jax.lax.conv_general_dilated(
            x, w, window_strides=(1, 1), padding="VALID",
            rhs_dilation=(dil, dil),
            dimension_numbers=("NCHW", "HWIO", "NCHW"))

    def inorm(x):
        m = jnp.mean(x, axis=(2, 3), keepdims=True)
        v = jnp.mean((x - m) ** 2, axis=(2, 3), keepdims=True)
        return (x - m) / jnp.sqrt(v + _EPS)

    y = conv(refl_pad(x_nchw, dilation), w1_hwio, dilation)
    y = jax.nn.relu(inorm(y))
    y = conv(refl_pad(y, 1), w2_hwio, 1)
    y = inorm(y)
    return x_nchw + y


if __name__ == "__main__":
    key = jax.random.PRNGKey(0)
    N, C, H, W = 2, 4, 16, 16

    k1, k2, k3 = jax.random.split(key, 3)
    # PyTorch-style tensors: input NCHW, conv weights (C_out, C_in, kh, kw).
    x_nchw = jax.random.normal(k1, (N, C, H, W), jnp.float32)
    w1_torch = jax.random.normal(k2, (C, C, 3, 3), jnp.float32) * 0.1
    w2_torch = jax.random.normal(k3, (C, C, 3, 3), jnp.float32) * 0.1

    # Layout glue (outside the kernel): NCHW -> NHWC, OIHW -> HWIO.
    x_nhwc = jnp.transpose(x_nchw, (0, 2, 3, 1))
    w1 = jnp.transpose(w1_torch, (2, 3, 1, 0))
    w2 = jnp.transpose(w2_torch, (2, 3, 1, 0))

    for dilation in (1, 2):
        ref = _reference_nchw(x_nchw, w1, w2, dilation)

        # f32 activations at the pallas_call boundary.
        out_nhwc = resnet_block(x_nhwc, w1, w2, dilation=dilation)
        out_nchw = jnp.transpose(out_nhwc, (0, 3, 1, 2))
        jax.block_until_ready(out_nchw)
        np.testing.assert_allclose(np.asarray(out_nchw), np.asarray(ref),
                                   rtol=6e-2, atol=6e-2)

        # bf16 activations at the boundary (halves HBM DMA and io VMEM); norms,
        # accumulation and the residual add remain f32 inside the kernel.
        out_bf = resnet_block(x_nhwc.astype(jnp.bfloat16), w1, w2, dilation=dilation)
        out_bf_nchw = jnp.transpose(out_bf.astype(jnp.float32), (0, 3, 1, 2))
        jax.block_until_ready(out_bf_nchw)
        np.testing.assert_allclose(np.asarray(out_bf_nchw), np.asarray(ref),
                                   rtol=1e-1, atol=1e-1)

    print("KERNEL_OK")
</pallas_src>

<mosaic_0001>
module attributes {stable_mosaic.version = 11 : i64} {
  func.func @_resnet_block_kernel(%arg0: i32, %arg1: memref<1x16x16x4xf32, #tpu.memory_space<vmem>>, %arg2: memref<3x12x4xbf16, #tpu.memory_space<vmem>>, %arg3: memref<3x12x4xbf16, #tpu.memory_space<vmem>>, %arg4: memref<1x16x16x4xf32, #tpu.memory_space<vmem>>, %arg5: memref<18x18x4xbf16, #tpu.memory_space<vmem>>, %arg6: memref<16x18x12xbf16, #tpu.memory_space<vmem>>) attributes {dimension_semantics = [#tpu.dimension_semantics<parallel>], iteration_bounds = array<i64: 2>, scalar_prefetch = 0 : i64, scratch_operands = 2 : i64, tpu.core_type = #tpu.core_type<tc>, window_params = [{transform_indices = @transform_0, window_bounds = array<i64: 1, 16, 16, 4>}, {pipeline_mode = #tpu.pipeline_mode<synchronous>, transform_indices = @transform_1, window_bounds = array<i64: 3, 12, 4>}, {pipeline_mode = #tpu.pipeline_mode<synchronous>, transform_indices = @transform_2, window_bounds = array<i64: 3, 12, 4>}, {transform_indices = @transform_3, window_bounds = array<i64: 1, 16, 16, 4>}]} {
    %c0 = arith.constant 0 : index
    %c0_0 = arith.constant 0 : index
    %c0_1 = arith.constant 0 : index
    %c0_2 = arith.constant 0 : index
    %0 = vector.load %arg1[%c0, %c0_0, %c0_1, %c0_2] : memref<1x16x16x4xf32, #tpu.memory_space<vmem>>, vector<1x16x16x4xf32>
    %1 = vector.shape_cast %0 : vector<1x16x16x4xf32> to vector<16x16x4xf32>
    %2 = arith.truncf %1 : vector<16x16x4xf32> to vector<16x16x4xbf16>
    %3 = vector.extract_strided_slice %2 {offsets = [1, 0, 0], sizes = [1, 16, 4], strides = [1, 1, 1]} : vector<16x16x4xbf16> to vector<1x16x4xbf16>
    %4 = vector.extract_strided_slice %2 {offsets = [14, 0, 0], sizes = [1, 16, 4], strides = [1, 1, 1]} : vector<16x16x4xbf16> to vector<1x16x4xbf16>
    %5 = tpu.concatenate %3, %2, %4 in 0 : vector<1x16x4xbf16>, vector<16x16x4xbf16>, vector<1x16x4xbf16> -> vector<18x16x4xbf16>
    %c0_3 = arith.constant 0 : index
    %c1 = arith.constant 1 : index
    %c0_4 = arith.constant 0 : index
    %6 = vector.load %arg5[%c0_3, %c1, %c0_4] : memref<18x18x4xbf16, #tpu.memory_space<vmem>>, vector<18x16x4xbf16>
    tpu.vector_store %arg5[%c0_3, %c1, %c0_4], %5 {strides = array<i32>} : memref<18x18x4xbf16, #tpu.memory_space<vmem>>, vector<18x16x4xbf16>,
    %7 = vector.extract_strided_slice %5 {offsets = [0, 1, 0], sizes = [18, 1, 4], strides = [1, 1, 1]} : vector<18x16x4xbf16> to vector<18x1x4xbf16>
    %8 = vector.shape_cast %7 : vector<18x1x4xbf16> to vector<18x4xbf16>
    %c0_5 = arith.constant 0 : index
    %c0_6 = arith.constant 0 : index
    %c0_7 = arith.constant 0 : index
    %9 = vector.load %arg5[%c0_5, %c0_6, %c0_7] : memref<18x18x4xbf16, #tpu.memory_space<vmem>>, vector<18x1x4xbf16>
    %10 = vector.shape_cast %9 : vector<18x1x4xbf16> to vector<18x4xbf16>
    %11 = vector.shape_cast %8 : vector<18x4xbf16> to vector<18x1x4xbf16>
    tpu.vector_store %arg5[%c0_5, %c0_6, %c0_7], %11 {strides = array<i32>} : memref<18x18x4xbf16, #tpu.memory_space<vmem>>, vector<18x1x4xbf16>,
    %12 = vector.extract_strided_slice %5 {offsets = [0, 14, 0], sizes = [18, 1, 4], strides = [1, 1, 1]} : vector<18x16x4xbf16> to vector<18x1x4xbf16>
    %13 = vector.shape_cast %12 : vector<18x1x4xbf16> to vector<18x4xbf16>
    %c0_8 = arith.constant 0 : index
    %c17 = arith.constant 17 : index
    %c0_9 = arith.constant 0 : index
    %14 = vector.load %arg5[%c0_8, %c17, %c0_9] : memref<18x18x4xbf16, #tpu.memory_space<vmem>>, vector<18x1x4xbf16>
    %15 = vector.shape_cast %14 : vector<18x1x4xbf16> to vector<18x4xbf16>
    %16 = vector.shape_cast %13 : vector<18x4xbf16> to vector<18x1x4xbf16>
    tpu.vector_store %arg5[%c0_8, %c17, %c0_9], %16 {strides = array<i32>} : memref<18x18x4xbf16, #tpu.memory_space<vmem>>, vector<18x1x4xbf16>,
    %c0_10 = arith.constant 0 : index
    %c0_11 = arith.constant 0 : index
    %c0_12 = arith.constant 0 : index
    %17 = vector.load %arg5[%c0_10, %c0_11, %c0_12] : memref<18x18x4xbf16, #tpu.memory_space<vmem>>, vector<16x18x4xbf16>
    %c0_13 = arith.constant 0 : index
    %c0_14 = arith.constant 0 : index
    %c0_15 = arith.constant 0 : index
    %18 = vector.load %arg6[%c0_13, %c0_14, %c0_15] : memref<16x18x12xbf16, #tpu.memory_space<vmem>>, vector<16x18x4xbf16>
    tpu.vector_store %arg6[%c0_13, %c0_14, %c0_15], %17 {strides = array<i32>} : memref<16x18x12xbf16, #tpu.memory_space<vmem>>, vector<16x18x4xbf16>,
    %c1_16 = arith.constant 1 : index
    %c0_17 = arith.constant 0 : index
    %c0_18 = arith.constant 0 : index
    %19 = vector.load %arg5[%c1_16, %c0_17, %c0_18] : memref<18x18x4xbf16, #tpu.memory_space<vmem>>, vector<16x18x4xbf16>
    %c0_19 = arith.constant 0 : index
    %c0_20 = arith.constant 0 : index
    %c4 = arith.constant 4 : index
    %20 = vector.load %arg6[%c0_19, %c0_20, %c4] : memref<16x18x12xbf16, #tpu.memory_space<vmem>>, vector<16x18x4xbf16>
    tpu.vector_store %arg6[%c0_19, %c0_20, %c4], %19 {strides = array<i32>} : memref<16x18x12xbf16, #tpu.memory_space<vmem>>, vector<16x18x4xbf16>,
    %c2 = arith.constant 2 : index
    %c0_21 = arith.constant 0 : index
    %c0_22 = arith.constant 0 : index
    %21 = vector.load %arg5[%c2, %c0_21, %c0_22] : memref<18x18x4xbf16, #tpu.memory_space<vmem>>, vector<16x18x4xbf16>
    %c0_23 = arith.constant 0 : index
    %c0_24 = arith.constant 0 : index
    %c8 = arith.constant 8 : index
    %22 = vector.load %arg6[%c0_23, %c0_24, %c8] : memref<16x18x12xbf16, #tpu.memory_space<vmem>>, vector<16x18x4xbf16>
    tpu.vector_store %arg6[%c0_23, %c0_24, %c8], %21 {strides = array<i32>} : memref<16x18x12xbf16, #tpu.memory_space<vmem>>, vector<16x18x4xbf16>,
    %c0_25 = arith.constant 0 : index
    %c0_26 = arith.constant 0 : index
    %c0_27 = arith.constant 0 : index
    %23 = vector.load %arg6[%c0_25, %c0_26, %c0_27] : memref<16x18x12xbf16, #tpu.memory_space<vmem>>, vector<16x16x12xbf16>
    %c0_28 = arith.constant 0 : index
    %c0_29 = arith.constant 0 : index
    %c0_30 = arith.constant 0 : index
    %24 = vector.load %arg2[%c0_28, %c0_29, %c0_30] : memref<3x12x4xbf16, #tpu.memory_space<vmem>>, vector<1x12x4xbf16>
    %25 = vector.shape_cast %24 : vector<1x12x4xbf16> to vector<12x4xbf16>
    %cst = arith.constant dense<0.000000e+00> : vector<16x16x4xf32>
    %26 = tpu.matmul %23, %25, %cst {dimension_numbers = #tpu.dot_dimension_numbers<[2], [0], [0, 1], [1], [0, 0, 0, 1, 1, 1], [], []>} : vector<16x16x12xbf16>, vector<12x4xbf16>, vector<16x16x4xf32> -> vector<16x16x4xf32>
    %c0_31 = arith.constant 0 : index
    %c1_32 = arith.constant 1 : index
    %c0_33 = arith.constant 0 : index
    %27 = vector.load %arg6[%c0_31, %c1_32, %c0_33] : memref<16x18x12xbf16, #tpu.memory_space<vmem>>, vector<16x16x12xbf16>
    %c1_34 = arith.constant 1 : index
    %c0_35 = arith.constant 0 : index
    %c0_36 = arith.constant 0 : index
    %28 = vector.load %arg2[%c1_34, %c0_35, %c0_36] : memref<3x12x4xbf16, #tpu.memory_space<vmem>>, vector<1x12x4xbf16>
    %29 = vector.shape_cast %28 : vector<1x12x4xbf16> to vector<12x4xbf16>
    %cst_37 = arith.constant dense<0.000000e+00> : vector<16x16x4xf32>
    %30 = tpu.matmul %27, %29, %cst_37 {dimension_numbers = #tpu.dot_dimension_numbers<[2], [0], [0, 1], [1], [0, 0, 0, 1, 1, 1], [], []>} : vector<16x16x12xbf16>, vector<12x4xbf16>, vector<16x16x4xf32> -> vector<16x16x4xf32>
    %31 = arith.addf %26, %30 : vector<16x16x4xf32>
    %c0_38 = arith.constant 0 : index
    %c2_39 = arith.constant 2 : index
    %c0_40 = arith.constant 0 : index
    %32 = vector.load %arg6[%c0_38, %c2_39, %c0_40] : memref<16x18x12xbf16, #tpu.memory_space<vmem>>, vector<16x16x12xbf16>
    %c2_41 = arith.constant 2 : index
    %c0_42 = arith.constant 0 : index
    %c0_43 = arith.constant 0 : index
    %33 = vector.load %arg2[%c2_41, %c0_42, %c0_43] : memref<3x12x4xbf16, #tpu.memory_space<vmem>>, vector<1x12x4xbf16>
    %34 = vector.shape_cast %33 : vector<1x12x4xbf16> to vector<12x4xbf16>
    %cst_44 = arith.constant dense<0.000000e+00> : vector<16x16x4xf32>
    %35 = tpu.matmul %32, %34, %cst_44 {dimension_numbers = #tpu.dot_dimension_numbers<[2], [0], [0, 1], [1], [0, 0, 0, 1, 1, 1], [], []>} : vector<16x16x12xbf16>, vector<12x4xbf16>, vector<16x16x4xf32> -> vector<16x16x4xf32>
    %36 = arith.addf %31, %35 : vector<16x16x4xf32>
    %cst_45 = arith.constant dense<0.000000e+00> : vector<4xf32>
    %37 = vector.multi_reduction <add>, %36, %cst_45 [0, 1] : vector<16x16x4xf32> to vector<4xf32>
    %38 = vector.shape_cast %37 : vector<4xf32> to vector<1x1x4xf32>
    %39 = arith.mulf %36, %36 : vector<16x16x4xf32>
    %cst_46 = arith.constant dense<0.000000e+00> : vector<4xf32>
    %40 = vector.multi_reduction <add>, %39, %cst_46 [0, 1] : vector<16x16x4xf32> to vector<4xf32>
    %41 = vector.shape_cast %40 : vector<4xf32> to vector<1x1x4xf32>
    %cst_47 = arith.constant 3.906250e-03 : f32
    %42 = vector.broadcast %cst_47 : f32 to vector<1x1x4xf32>
    %43 = arith.mulf %38, %42 : vector<1x1x4xf32>
    %cst_48 = arith.constant 3.906250e-03 : f32
    %44 = vector.broadcast %cst_48 : f32 to vector<1x1x4xf32>
    %45 = arith.mulf %41, %44 : vector<1x1x4xf32>
    %46 = arith.mulf %43, %43 : vector<1x1x4xf32>
    %47 = arith.subf %45, %46 : vector<1x1x4xf32>
    %cst_49 = arith.constant 0.000000e+00 : f32
    %48 = vector.broadcast %cst_49 : f32 to vector<1x1x4xf32>
    %49 = arith.maximumf %47, %48 : vector<1x1x4xf32>
    %50 = vector.broadcast %43 : vector<1x1x4xf32> to vector<16x16x4xf32>
    %51 = arith.subf %36, %50 : vector<16x16x4xf32>
    %cst_50 = arith.constant 9.99999974E-6 : f32
    %52 = vector.broadcast %cst_50 : f32 to vector<1x1x4xf32>
    %53 = arith.addf %49, %52 : vector<1x1x4xf32>
    %54 = math.rsqrt %53 : vector<1x1x4xf32>
    %55 = vector.broadcast %54 : vector<1x1x4xf32> to vector<16x16x4xf32>
    %56 = arith.mulf %51, %55 : vector<16x16x4xf32>
    %cst_51 = arith.constant 0.000000e+00 : f32
    %57 = vector.broadcast %cst_51 : f32 to vector<16x16x4xf32>
    %58 = arith.maximumf %56, %57 : vector<16x16x4xf32>
    %59 = arith.truncf %58 : vector<16x16x4xf32> to vector<16x16x4xbf16>
    %60 = vector.extract_strided_slice %59 {offsets = [1, 0, 0], sizes = [1, 16, 4], strides = [1, 1, 1]} : vector<16x16x4xbf16> to vector<1x16x4xbf16>
    %61 = vector.extract_strided_slice %59 {offsets = [14, 0, 0], sizes = [1, 16, 4], strides = [1, 1, 1]} : vector<16x16x4xbf16> to vector<1x16x4xbf16>
    %62 = tpu.concatenate %60, %59, %61 in 0 : vector<1x16x4xbf16>, vector<16x16x4xbf16>, vector<1x16x4xbf16> -> vector<18x16x4xbf16>
    %c0_52 = arith.constant 0 : index
    %c1_53 = arith.constant 1 : index
    %c0_54 = arith.constant 0 : index
    %63 = vector.load %arg5[%c0_52, %c1_53, %c0_54] : memref<18x18x4xbf16, #tpu.memory_space<vmem>>, vector<18x16x4xbf16>
    tpu.vector_store %arg5[%c0_52, %c1_53, %c0_54], %62 {strides = array<i32>} : memref<18x18x4xbf16, #tpu.memory_space<vmem>>, vector<18x16x4xbf16>,
    %64 = vector.extract_strided_slice %62 {offsets = [0, 1, 0], sizes = [18, 1, 4], strides = [1, 1, 1]} : vector<18x16x4xbf16> to vector<18x1x4xbf16>
    %65 = vector.shape_cast %64 : vector<18x1x4xbf16> to vector<18x4xbf16>
    %c0_55 = arith.constant 0 : index
    %c0_56 = arith.constant 0 : index
    %c0_57 = arith.constant 0 : index
    %66 = vector.load %arg5[%c0_55, %c0_56, %c0_57] : memref<18x18x4xbf16, #tpu.memory_space<vmem>>, vector<18x1x4xbf16>
    %67 = vector.shape_cast %66 : vector<18x1x4xbf16> to vector<18x4xbf16>
    %68 = vector.shape_cast %65 : vector<18x4xbf16> to vector<18x1x4xbf16>
    tpu.vector_store %arg5[%c0_55, %c0_56, %c0_57], %68 {strides = array<i32>} : memref<18x18x4xbf16, #tpu.memory_space<vmem>>, vector<18x1x4xbf16>,
    %69 = vector.extract_strided_slice %62 {offsets = [0, 14, 0], sizes = [18, 1, 4], strides = [1, 1, 1]} : vector<18x16x4xbf16> to vector<18x1x4xbf16>
    %70 = vector.shape_cast %69 : vector<18x1x4xbf16> to vector<18x4xbf16>
    %c0_58 = arith.constant 0 : index
    %c17_59 = arith.constant 17 : index
    %c0_60 = arith.constant 0 : index
    %71 = vector.load %arg5[%c0_58, %c17_59, %c0_60] : memref<18x18x4xbf16, #tpu.memory_space<vmem>>, vector<18x1x4xbf16>
    %72 = vector.shape_cast %71 : vector<18x1x4xbf16> to vector<18x4xbf16>
    %73 = vector.shape_cast %70 : vector<18x4xbf16> to vector<18x1x4xbf16>
    tpu.vector_store %arg5[%c0_58, %c17_59, %c0_60], %73 {strides = array<i32>} : memref<18x18x4xbf16, #tpu.memory_space<vmem>>, vector<18x1x4xbf16>,
    %c0_61 = arith.constant 0 : index
    %c0_62 = arith.constant 0 : index
    %c0_63 = arith.constant 0 : index
    %74 = vector.load %arg5[%c0_61, %c0_62, %c0_63] : memref<18x18x4xbf16, #tpu.memory_space<vmem>>, vector<16x18x4xbf16>
    %c0_64 = arith.constant 0 : index
    %c0_65 = arith.constant 0 : index
    %c0_66 = arith.constant 0 : index
    %75 = vector.load %arg6[%c0_64, %c0_65, %c0_66] : memref<16x18x12xbf16, #tpu.memory_space<vmem>>, vector<16x18x4xbf16>
    tpu.vector_store %arg6[%c0_64, %c0_65, %c0_66], %74 {strides = array<i32>} : memref<16x18x12xbf16, #tpu.memory_space<vmem>>, vector<16x18x4xbf16>,
    %c1_67 = arith.constant 1 : index
    %c0_68 = arith.constant 0 : index
    %c0_69 = arith.constant 0 : index
    %76 = vector.load %arg5[%c1_67, %c0_68, %c0_69] : memref<18x18x4xbf16, #tpu.memory_space<vmem>>, vector<16x18x4xbf16>
    %c0_70 = arith.constant 0 : index
    %c0_71 = arith.constant 0 : index
    %c4_72 = arith.constant 4 : index
    %77 = vector.load %arg6[%c0_70, %c0_71, %c4_72] : memref<16x18x12xbf16, #tpu.memory_space<vmem>>, vector<16x18x4xbf16>
    tpu.vector_store %arg6[%c0_70, %c0_71, %c4_72], %76 {strides = array<i32>} : memref<16x18x12xbf16, #tpu.memory_space<vmem>>, vector<16x18x4xbf16>,
    %c2_73 = arith.constant 2 : index
    %c0_74 = arith.constant 0 : index
    %c0_75 = arith.constant 0 : index
    %78 = vector.load %arg5[%c2_73, %c0_74, %c0_75] : memref<18x18x4xbf16, #tpu.memory_space<vmem>>, vector<16x18x4xbf16>
    %c0_76 = arith.constant 0 : index
    %c0_77 = arith.constant 0 : index
    %c8_78 = arith.constant 8 : index
    %79 = vector.load %arg6[%c0_76, %c0_77, %c8_78] : memref<16x18x12xbf16, #tpu.memory_space<vmem>>, vector<16x18x4xbf16>
    tpu.vector_store %arg6[%c0_76, %c0_77, %c8_78], %78 {strides = array<i32>} : memref<16x18x12xbf16, #tpu.memory_space<vmem>>, vector<16x18x4xbf16>,
    %c0_79 = arith.constant 0 : index
    %c0_80 = arith.constant 0 : index
    %c0_81 = arith.constant 0 : index
    %80 = vector.load %arg6[%c0_79, %c0_80, %c0_81] : memref<16x18x12xbf16, #tpu.memory_space<vmem>>, vector<16x16x12xbf16>
    %c0_82 = arith.constant 0 : index
    %c0_83 = arith.constant 0 : index
    %c0_84 = arith.constant 0 : index
    %81 = vector.load %arg3[%c0_82, %c0_83, %c0_84] : memref<3x12x4xbf16, #tpu.memory_space<vmem>>, vector<1x12x4xbf16>
    %82 = vector.shape_cast %81 : vector<1x12x4xbf16> to vector<12x4xbf16>
    %cst_85 = arith.constant dense<0.000000e+00> : vector<16x16x4xf32>
    %83 = tpu.matmul %80, %82, %cst_85 {dimension_numbers = #tpu.dot_dimension_numbers<[2], [0], [0, 1], [1], [0, 0, 0, 1, 1, 1], [], []>} : vector<16x16x12xbf16>, vector<12x4xbf16>, vector<16x16x4xf32> -> vector<16x16x4xf32>
    %c0_86 = arith.constant 0 : index
    %c1_87 = arith.constant 1 : index
    %c0_88 = arith.constant 0 : index
    %84 = vector.load %arg6[%c0_86, %c1_87, %c0_88] : memref<16x18x12xbf16, #tpu.memory_space<vmem>>, vector<16x16x12xbf16>
    %c1_89 = arith.constant 1 : index
    %c0_90 = arith.constant 0 : index
    %c0_91 = arith.constant 0 : index
    %85 = vector.load %arg3[%c1_89, %c0_90, %c0_91] : memref<3x12x4xbf16, #tpu.memory_space<vmem>>, vector<1x12x4xbf16>
    %86 = vector.shape_cast %85 : vector<1x12x4xbf16> to vector<12x4xbf16>
    %cst_92 = arith.constant dense<0.000000e+00> : vector<16x16x4xf32>
    %87 = tpu.matmul %84, %86, %cst_92 {dimension_numbers = #tpu.dot_dimension_numbers<[2], [0], [0, 1], [1], [0, 0, 0, 1, 1, 1], [], []>} : vector<16x16x12xbf16>, vector<12x4xbf16>, vector<16x16x4xf32> -> vector<16x16x4xf32>
    %88 = arith.addf %83, %87 : vector<16x16x4xf32>
    %c0_93 = arith.constant 0 : index
    %c2_94 = arith.constant 2 : index
    %c0_95 = arith.constant 0 : index
    %89 = vector.load %arg6[%c0_93, %c2_94, %c0_95] : memref<16x18x12xbf16, #tpu.memory_space<vmem>>, vector<16x16x12xbf16>
    %c2_96 = arith.constant 2 : index
    %c0_97 = arith.constant 0 : index
    %c0_98 = arith.constant 0 : index
    %90 = vector.load %arg3[%c2_96, %c0_97, %c0_98] : memref<3x12x4xbf16, #tpu.memory_space<vmem>>, vector<1x12x4xbf16>
    %91 = vector.shape_cast %90 : vector<1x12x4xbf16> to vector<12x4xbf16>
    %cst_99 = arith.constant dense<0.000000e+00> : vector<16x16x4xf32>
    %92 = tpu.matmul %89, %91, %cst_99 {dimension_numbers = #tpu.dot_dimension_numbers<[2], [0], [0, 1], [1], [0, 0, 0, 1, 1, 1], [], []>} : vector<16x16x12xbf16>, vector<12x4xbf16>, vector<16x16x4xf32> -> vector<16x16x4xf32>
    %93 = arith.addf %88, %92 : vector<16x16x4xf32>
    %cst_100 = arith.constant dense<0.000000e+00> : vector<4xf32>
    %94 = vector.multi_reduction <add>, %93, %cst_100 [0, 1] : vector<16x16x4xf32> to vector<4xf32>
    %95 = vector.shape_cast %94 : vector<4xf32> to vector<1x1x4xf32>
    %96 = arith.mulf %93, %93 : vector<16x16x4xf32>
    %cst_101 = arith.constant dense<0.000000e+00> : vector<4xf32>
    %97 = vector.multi_reduction <add>, %96, %cst_101 [0, 1] : vector<16x16x4xf32> to vector<4xf32>
    %98 = vector.shape_cast %97 : vector<4xf32> to vector<1x1x4xf32>
    %cst_102 = arith.constant 3.906250e-03 : f32
    %99 = vector.broadcast %cst_102 : f32 to vector<1x1x4xf32>
    %100 = arith.mulf %95, %99 : vector<1x1x4xf32>
    %cst_103 = arith.constant 3.906250e-03 : f32
    %101 = vector.broadcast %cst_103 : f32 to vector<1x1x4xf32>
    %102 = arith.mulf %98, %101 : vector<1x1x4xf32>
    %103 = arith.mulf %100, %100 : vector<1x1x4xf32>
    %104 = arith.subf %102, %103 : vector<1x1x4xf32>
    %cst_104 = arith.constant 0.000000e+00 : f32
    %105 = vector.broadcast %cst_104 : f32 to vector<1x1x4xf32>
    %106 = arith.maximumf %104, %105 : vector<1x1x4xf32>
    %107 = vector.broadcast %100 : vector<1x1x4xf32> to vector<16x16x4xf32>
    %108 = arith.subf %93, %107 : vector<16x16x4xf32>
    %cst_105 = arith.constant 9.99999974E-6 : f32
    %109 = vector.broadcast %cst_105 : f32 to vector<1x1x4xf32>
    %110 = arith.addf %106, %109 : vector<1x1x4xf32>
    %111 = math.rsqrt %110 : vector<1x1x4xf32>
    %112 = vector.broadcast %111 : vector<1x1x4xf32> to vector<16x16x4xf32>
    %113 = arith.mulf %108, %112 : vector<16x16x4xf32>
    %c0_106 = arith.constant 0 : index
    %c0_107 = arith.constant 0 : index
    %c0_108 = arith.constant 0 : index
    %c0_109 = arith.constant 0 : index
    %114 = vector.load %arg1[%c0_106, %c0_107, %c0_108, %c0_109] : memref<1x16x16x4xf32, #tpu.memory_space<vmem>>, vector<1x16x16x4xf32>
    %115 = vector.shape_cast %114 : vector<1x16x16x4xf32> to vector<16x16x4xf32>
    %116 = arith.addf %115, %113 : vector<16x16x4xf32>
    %c0_110 = arith.constant 0 : index
    %c0_111 = arith.constant 0 : index
    %c0_112 = arith.constant 0 : index
    %c0_113 = arith.constant 0 : index
    %117 = vector.load %arg4[%c0_110, %c0_111, %c0_112, %c0_113] : memref<1x16x16x4xf32, #tpu.memory_space<vmem>>, vector<1x16x16x4xf32>
    %118 = vector.shape_cast %117 : vector<1x16x16x4xf32> to vector<16x16x4xf32>
    %119 = vector.shape_cast %116 : vector<16x16x4xf32> to vector<1x16x16x4xf32>
    tpu.vector_store %arg4[%c0_110, %c0_111, %c0_112, %c0_113], %119 {strides = array<i32>} : memref<1x16x16x4xf32, #tpu.memory_space<vmem>>, vector<1x16x16x4xf32>,
    return
  }
  func.func @transform_0(%arg0: i32) -> (i32, i32, i32, i32) {
    %c0_i32 = arith.constant 0 : i32
    %c0_i32_0 = arith.constant 0 : i32
    %c0_i32_1 = arith.constant 0 : i32
    %c0_i32_2 = arith.constant 0 : i32
    return %arg0, %c0_i32, %c0_i32_0, %c0_i32_1 : i32, i32, i32, i32
  }
  func.func @transform_1(%arg0: i32) -> (i32, i32, i32) {
    %c0_i32 = arith.constant 0 : i32
    %c0_i32_0 = arith.constant 0 : i32
    %c0_i32_1 = arith.constant 0 : i32
    %c0_i32_2 = arith.constant 0 : i32
    return %c0_i32, %c0_i32_0, %c0_i32_1 : i32, i32, i32
  }
  func.func @transform_2(%arg0: i32) -> (i32, i32, i32) {
    %c0_i32 = arith.constant 0 : i32
    %c0_i32_0 = arith.constant 0 : i32
    %c0_i32_1 = arith.constant 0 : i32
    %c0_i32_2 = arith.constant 0 : i32
    return %c0_i32, %c0_i32_0, %c0_i32_1 : i32, i32, i32
  }
  func.func @transform_3(%arg0: i32) -> (i32, i32, i32, i32) {
    %c0_i32 = arith.constant 0 : i32
    %c0_i32_0 = arith.constant 0 : i32
    %c0_i32_1 = arith.constant 0 : i32
    %c0_i32_2 = arith.constant 0 : i32
    return %arg0, %c0_i32, %c0_i32_0, %c0_i32_1 : i32, i32, i32, i32
  }
}

</mosaic_0001>

<llo_original>
// kernel: tpu_custom_call.1
$region0: #{tpu_custom_call.1}
  #allocation0 [shape = 'u32[]', space=smem, size = 0x4, offset = 0x4, fixed_abs, tag = 'smem constant byte address 0x4 - core index']
  #allocation1 [shape = 'u32[144,128]{1,0:T(1,128)}', space=vmem, size = 0x12000, scoped, tag = 'internal scratch']
  #allocation2 [shape = 'bf16[18,18,4]{2,1,0:T(8,128)(2,1)}', space=vmem, size = 0x1b000, scoped, tag = 'scratch operand']
  #allocation3 [shape = 'bf16[16,18,12]{2,1,0:T(8,128)(2,1)}', space=vmem, size = 0x18000, scoped, tag = 'scratch operand']
  %s0 = inlined_call_operand.vmem [shape: f32[2,16,16,4], index: 0, kind: input, shape index: {}]
  %s1 = inlined_call_operand.vmem [shape: bf16[3,12,4], index: 1, kind: input, shape index: {}]
  %s2 = inlined_call_operand.vmem [shape: bf16[3,12,4], index: 2, kind: input, shape index: {}]
  %s3 = inlined_call_operand.vmem [shape: f32[2,16,16,4], index: 3, kind: output, shape index: {}]
  %s4 = sld [smem:[#allocation0]]
  $region45: #{tpu_custom_call.1} parent=0
    _
  %s6 = ssub.s32 1, %s4
  %s7 = scalar_select 0, %s6, %s4
  loop: start=0, step=1, limit=4
  $region2: #{tpu_custom_call.1} parent=0 // loop_pre_header
    _
  $region3: #{tpu_custom_call.1} parent=0 // loop_header
    %s9 = sphi 0, %s13
    %p10 = scmp.ge.s32.totalorder %s9, 4
    %s19 = sphi 0, %s21
    %s22 = sphi 0, %s19
    %s23 = sphi 0, %s22
    %s39 = sphi 0, %s23
    %s43 = sphi 0, %s43
    %s45 = sphi 0, %s43
    %s46 = sphi 0, %s45
    %s60 = sphi 0, %s46
    %s64 = sphi 0, %s64
    %s66 = sphi 0, %s64
    %s67 = sphi 0, %s66
    %s81 = sphi 0, %s67
    %s87 = sphi 0, %s89
    %s90 = sphi 0, %s87
    %s91 = sphi 0, %s90
    %s107 = sphi 0, %s91
  $region4: #{tpu_custom_call.1} parent=0 // loop_header_branch
    %12 = sbr.rel (%p10) target = $region8
  $region5: #{tpu_custom_call.1} parent=0 // loop_body
    %s14 = ssub.s32 %s9, 1
    %s15 = ssub.s32 %s9, 2
    %s16 = sadd.s32 %s9, 1
    %s17 = ssub.s32 %s9, %s16
    %p18 = scmp.eq.s32.totalorder %s17, 0
    %s20 = sadd.s32 %s19, 1
    %s21 = scalar_select %p18, %s19, %s20
    %p24 = pneg %p18
    %p25 = scmp.eq.s32.totalorder %s9, 1
    %p26 = por %p24, %p25
    %p27 = scmp.ne.s32.totalorder %s19, %s22
    %p28 = scmp.eq.s32.totalorder %s9, 0
    %p29 = por %p27, %p28
    %p30 = scmp.ne.s32.totalorder %s19, %s22
    %p31 = scmp.eq.s32.totalorder %s14, 1
    %p32 = por %p30, %p31
    %p33 = scmp.ne.s32.totalorder %s22, %s23
    %p34 = scmp.eq.s32.totalorder %s14, 0
    %p35 = por %p33, %p34
    %p36 = scmp.ne.s32.totalorder %s22, %s23
    %p37 = scmp.eq.s32.totalorder %s15, 1
    %p38 = por %p36, %p37
    %p40 = scmp.ne.s32.totalorder %s23, %s39
    %p41 = scmp.eq.s32.totalorder %s15, 0
    %p42 = por %p40, %p41
    %s44 = sadd.s32 %s43, 1
    %p47 = scmp.eq.s32.totalorder %s9, 1
    %p48 = scmp.ne.s32.totalorder %s43, %s45
    %p49 = scmp.eq.s32.totalorder %s9, 0
    %p50 = por %p48, %p49
    %p51 = scmp.ne.s32.totalorder %s43, %s45
    %p52 = scmp.eq.s32.totalorder %s14, 1
    %p53 = por %p51, %p52
    %p54 = scmp.ne.s32.totalorder %s45, %s46
    %p55 = scmp.eq.s32.totalorder %s14, 0
    %p56 = por %p54, %p55
    %p57 = scmp.ne.s32.totalorder %s45, %s46
    %p58 = scmp.eq.s32.totalorder %s15, 1
    %p59 = por %p57, %p58
    %p61 = scmp.ne.s32.totalorder %s46, %s60
    %p62 = scmp.eq.s32.totalorder %s15, 0
    %p63 = por %p61, %p62
    %s65 = sadd.s32 %s64, 1
    %p68 = scmp.eq.s32.totalorder %s9, 1
    %p69 = scmp.ne.s32.totalorder %s64, %s66
    %p70 = scmp.eq.s32.totalorder %s9, 0
    %p71 = por %p69, %p70
    %p72 = scmp.ne.s32.totalorder %s64, %s66
    %p73 = scmp.eq.s32.totalorder %s14, 1
    %p74 = por %p72, %p73
    %p75 = scmp.ne.s32.totalorder %s66, %s67
    %p76 = scmp.eq.s32.totalorder %s14, 0
    %p77 = por %p75, %p76
    %p78 = scmp.ne.s32.totalorder %s66, %s67
    %p79 = scmp.eq.s32.totalorder %s15, 1
    %p80 = por %p78, %p79
    %p82 = scmp.ne.s32.totalorder %s67, %s81
    %p83 = scmp.eq.s32.totalorder %s15, 0
    %p84 = por %p82, %p83
    %s85 = ssub.s32 %s9, %s16
    %p86 = scmp.eq.s32.totalorder %s85, 0
    %s88 = sadd.s32 %s87, 1
    %s89 = scalar_select %p86, %s87, %s88
    %p92 = pneg %p86
    %p93 = scmp.eq.s32.totalorder %s9, 1
    %p94 = por %p92, %p93
    %p95 = scmp.ne.s32.totalorder %s87, %s90
    %p96 = scmp.eq.s32.totalorder %s9, 0
    %p97 = por %p95, %p96
    %p98 = scmp.ne.s32.totalorder %s87, %s90
    %p99 = scmp.eq.s32.totalorder %s14, 1
    %p100 = por %p98, %p99
    %p101 = scmp.ne.s32.totalorder %s90, %s91
    %p102 = scmp.eq.s32.totalorder %s14, 0
    %p103 = por %p101, %p102
    %p104 = scmp.ne.s32.totalorder %s90, %s91
    %p105 = scmp.eq.s32.totalorder %s15, 1
    %p106 = por %p104, %p105
    %p108 = scmp.ne.s32.totalorder %s91, %s107
    %p109 = scmp.eq.s32.totalorder %s15, 0
    %p110 = por %p108, %p109
    %p111 = scmp.le.s32.totalorder 1, %s9
    %p112 = scmp.lt.s32.totalorder %s9, 3
    %p113 = pnand %p111, %p112
    %p114 = pneg %p113
    // Predicated region
    $region9: #{tpu_custom_call.1} parent=5 // pred_check
      _
    $region10: #{tpu_custom_call.1} parent=5 // pred_check_branch
      %116 = sbr.rel (%p113) target = $region12
    $region11: #{tpu_custom_call.1} parent=5 // pred_region
      %s117 = ssub.s32 %s9, 1
      // Predicated region
      $region13: #{tpu_custom_call.1} parent=11 // pred_check
        %p118 = pneg %p56
      $region14: #{tpu_custom_call.1} parent=11 // pred_check_branch
        %120 = sbr.rel (%p118) target = $region16
      $region15: #{tpu_custom_call.1} parent=11 // pred_region
        _
      $region16: #{tpu_custom_call.1} parent=11 // pred_fallthru
        _
      // Predicated region
      $region17: #{tpu_custom_call.1} parent=11 // pred_check
        %p121 = pneg %p77
      $region18: #{tpu_custom_call.1} parent=11 // pred_check_branch
        %123 = sbr.rel (%p121) target = $region20
      $region19: #{tpu_custom_call.1} parent=11 // pred_region
        _
      $region20: #{tpu_custom_call.1} parent=11 // pred_fallthru
        _
    $region12: #{tpu_custom_call.1} parent=5 // pred_fallthru
      _
    %p124 = scmp.lt.s32.totalorder %s9, 2
    // Predicated region
    $region21: #{tpu_custom_call.1} parent=5 // pred_check
      %p125 = pneg %p124
    $region22: #{tpu_custom_call.1} parent=5 // pred_check_branch
      %127 = sbr.rel (%p125) target = $region24
    $region23: #{tpu_custom_call.1} parent=5 // pred_region
      // Predicated region
      $region25: #{tpu_custom_call.1} parent=23 // pred_check
        %p128 = pneg %p29
      $region26: #{tpu_custom_call.1} parent=23 // pred_check_branch
        %130 = sbr.rel (%p128) target = $region28
      $region27: #{tpu_custom_call.1} parent=23 // pred_region
        %p131 = scmp.lt.s32.totalorder %s9, 1
        %s132 = scalar_select %p131, %s9, 1
        %s133 = smul.addr %s132, 32
        %s134 = smul.addr %s133, 8
        %s135 = scalar_lea.vmem %s0, %s134
      $region28: #{tpu_custom_call.1} parent=23 // pred_fallthru
        _
    $region24: #{tpu_custom_call.1} parent=5 // pred_fallthru
      _
    %p136 = scmp.le.s32.totalorder 1, %s9
    %p137 = scmp.lt.s32.totalorder %s9, 3
    %p138 = pnand %p136, %p137
    %p139 = pneg %p138
    // Predicated region
    $region29: #{tpu_custom_call.1} parent=5 // pred_check
      _
    $region30: #{tpu_custom_call.1} parent=5 // pred_check_branch
      %141 = sbr.rel (%p138) target = $region32
    $region31: #{tpu_custom_call.1} parent=5 // pred_region
      %s142 = ssub.s32 %s9, 1
      %p143 = scmp.lt.s32.totalorder %s14, 1
      %s144 = scalar_select %p143, %s14, 1
      %s145 = smul.addr %s144, 32
      %s146 = smul.addr %s145, 8
      %s147 = scalar_lea.vmem %s0, %s146
      %p148 = pneg %p35
      %p149 = pneg %p32
      %p150 = pneg %p56
      %p151 = pneg %p53
      %p152 = pneg %p77
      %p153 = pneg %p74
      %p154 = pneg %p103
      %p155 = pneg %p100
      %p156 = scmp.lt.s32.totalorder %s14, 1
      %s157 = scalar_select %p156, %s14, 1
      %s158 = smul.addr %s157, 32
      %s159 = smul.addr %s158, 8
      %s160 = scalar_lea.vmem %s3, %s159
      %p161 = scmp.lt.s32.totalorder %s14, 1
      %s162 = scalar_select %p161, %s14, 1
      %s163 = smul.addr %s162, 32
      %s164 = smul.addr %s163, 8
      %s165 = scalar_lea.vmem %s0, %s164
      %p166 = scmp.lt.s32.totalorder %s14, 1
      %s167 = scalar_select %p166, %s14, 1
      %s168 = smul.addr %s167, 32
      %s169 = smul.addr %s168, 8
      %s170 = scalar_lea.vmem %s3, %s169
      %v172 = vld [vmem:[%s165] sm:$0xff]
      %v173 = vld [vmem:[%s165 + $0x8] sm:$0xff]
      %v174 = vld [vmem:[%s165 + $0x10] sm:$0xff]
      %v175 = vld [vmem:[%s165 + $0x18] sm:$0xff]
      %v176 = vld [vmem:[%s165 + $0x20] sm:$0xff]
      %v177 = vld [vmem:[%s165 + $0x28] sm:$0xff]
      %v178 = vld [vmem:[%s165 + $0x30] sm:$0xff]
      %v179 = vld [vmem:[%s165 + $0x38] sm:$0xff]
      %v180 = vld [vmem:[%s165 + $0x40] sm:$0xff]
      %v181 = vld [vmem:[%s165 + $0x48] sm:$0xff]
      %v182 = vld [vmem:[%s165 + $0x50] sm:$0xff]
      %v183 = vld [vmem:[%s165 + $0x58] sm:$0xff]
      %v184 = vld [vmem:[%s165 + $0x60] sm:$0xff]
      %v185 = vld [vmem:[%s165 + $0x68] sm:$0xff]
      %v186 = vld [vmem:[%s165 + $0x70] sm:$0xff]
      %v187 = vld [vmem:[%s165 + $0x78] sm:$0xff]
      %v188 = vld [vmem:[%s165 + $0x80] sm:$0xff]
      %v189 = vld [vmem:[%s165 + $0x88] sm:$0xff]
      %v190 = vld [vmem:[%s165 + $0x90] sm:$0xff]
      %v191 = vld [vmem:[%s165 + $0x98] sm:$0xff]
      %v192 = vld [vmem:[%s165 + $0xa0] sm:$0xff]
      %v193 = vld [vmem:[%s165 + $0xa8] sm:$0xff]
      %v194 = vld [vmem:[%s165 + $0xb0] sm:$0xff]
      %v195 = vld [vmem:[%s165 + $0xb8] sm:$0xff]
      %v196 = vld [vmem:[%s165 + $0xc0] sm:$0xff]
      %v197 = vld [vmem:[%s165 + $0xc8] sm:$0xff]
      %v198 = vld [vmem:[%s165 + $0xd0] sm:$0xff]
      %v199 = vld [vmem:[%s165 + $0xd8] sm:$0xff]
      %v200 = vld [vmem:[%s165 + $0xe0] sm:$0xff]
      %v201 = vld [vmem:[%s165 + $0xe8] sm:$0xff]
      %v202 = vld [vmem:[%s165 + $0xf0] sm:$0xff]
      %v203 = vld [vmem:[%s165 + $0xf8] sm:$0xff]
      %v204 = vpack.c.bf16 %v173, %v172
      %v205 = vpack.c.bf16 %v175, %v174
      %v206 = vpack.c.bf16 %v177, %v176
      %v207 = vpack.c.bf16 %v179, %v178
      %v208 = vpack.c.bf16 %v181, %v180
      %v209 = vpack.c.bf16 %v183, %v182
      %v210 = vpack.c.bf16 %v185, %v184
      %v211 = vpack.c.bf16 %v187, %v186
      %v212 = vpack.c.bf16 %v189, %v188
      %v213 = vpack.c.bf16 %v191, %v190
      %v214 = vpack.c.bf16 %v193, %v192
      %v215 = vpack.c.bf16 %v195, %v194
      %v216 = vpack.c.bf16 %v197, %v196
      %v217 = vpack.c.bf16 %v199, %v198
      %v218 = vpack.c.bf16 %v201, %v200
      %v219 = vpack.c.bf16 %v203, %v202
      %v236 = vunpack.c.l.b16 %v205
      %v237 = vunpack.c.h.b16 %v205
      %v238 = vunpack.c.l.b16 %v204
      %v239 = vunpack.c.h.b16 %v204
      %v240 = vunpack.c.l.b16 %v206
      %v241 = vunpack.c.h.b16 %v206
      %v242 = vunpack.c.l.b16 %v207
      %v243 = vunpack.c.h.b16 %v207
      %v244 = vunpack.c.l.b16 %v208
      %v245 = vunpack.c.h.b16 %v208
      %v246 = vunpack.c.l.b16 %v209
      %v247 = vunpack.c.h.b16 %v209
      %v248 = vunpack.c.l.b16 %v210
      %v249 = vunpack.c.h.b16 %v210
      %v250 = vunpack.c.l.b16 %v211
      %v251 = vunpack.c.h.b16 %v211
      %v252 = vunpack.c.l.b16 %v212
      %v253 = vunpack.c.h.b16 %v212
      %v254 = vunpack.c.l.b16 %v213
      %v255 = vunpack.c.h.b16 %v213
      %v256 = vunpack.c.l.b16 %v214
      %v257 = vunpack.c.h.b16 %v214
      %v258 = vunpack.c.l.b16 %v215
      %v259 = vunpack.c.h.b16 %v215
      %v260 = vunpack.c.l.b16 %v216
      %v261 = vunpack.c.h.b16 %v216
      %v262 = vunpack.c.l.b16 %v217
      %v263 = vunpack.c.h.b16 %v217
      %v264 = vunpack.c.l.b16 %v218
      %v265 = vunpack.c.h.b16 %v218
      %v266 = vunpack.c.l.b16 %v219
      %v267 = vunpack.c.h.b16 %v219
      %v268 = vpack.c.b16 %v236, %v236
      %v269 = vpack.c.b16 %v237, %v237
      %v270 = vpack.c.b16 %v238, %v238
      %v271 = vpack.c.b16 %v239, %v239
      %v272 = vpack.c.b16 %v240, %v240
      %v273 = vpack.c.b16 %v241, %v241
      %v274 = vpack.c.b16 %v242, %v242
      %v275 = vpack.c.b16 %v243, %v243
      %v276 = vpack.c.b16 %v244, %v244
      %v277 = vpack.c.b16 %v245, %v245
      %v278 = vpack.c.b16 %v246, %v246
      %v279 = vpack.c.b16 %v247, %v247
      %v280 = vpack.c.b16 %v248, %v248
      %v281 = vpack.c.b16 %v249, %v249
      %v282 = vpack.c.b16 %v250, %v250
      %v283 = vpack.c.b16 %v251, %v251
      %v284 = vpack.c.b16 %v252, %v252
      %v285 = vpack.c.b16 %v253, %v253
      %v286 = vpack.c.b16 %v254, %v254
      %v287 = vpack.c.b16 %v255, %v255
      %v288 = vpack.c.b16 %v256, %v256
      %v289 = vpack.c.b16 %v257, %v257
      %v290 = vpack.c.b16 %v258, %v258
      %v291 = vpack.c.b16 %v259, %v259
      %v292 = vpack.c.b16 %v260, %v260
      %v293 = vpack.c.b16 %v261, %v261
      %v294 = vpack.c.b16 %v262, %v262
      %v295 = vpack.c.b16 %v263, %v263
      %v296 = vpack.c.b16 %v264, %v264
      %v297 = vpack.c.b16 %v265, %v265
      %v298 = vpack.c.b16 %v266, %v266
      %v299 = vpack.c.b16 %v267, %v267
      %vm300 = vsmask.f32 256
      %vm301 = vsmask.f32 4368
      %vm302 = vmor %vm300, %vm301
      %v304 = vshrl.u32 %v268, 16
      %v306 = vrot.slane %v304, 7
      %v307 = vshll.u32 %v268, 16
      %v309 = vor.u32 %v306, %v307
      %v310 = vrot.slane %v306, 4
      %v312 = vshrl.u32 %v269, 16
      %v314 = vrot.slane %v312, 7
      %v315 = vshll.u32 %v269, 16
      %v317 = vor.u32 %v314, %v315
      %v318 = vsel %vm302, %v310, %v317
      %v319 = vrot.slane %v314, 4
      %v321 = vshrl.u32 %v270, 16
      %v323 = vrot.slane %v321, 7
      %v324 = vshll.u32 %v270, 16
      %v326 = vor.u32 %v323, %v324
      %v327 = vrot.slane %v323, 4
      %v329 = vshrl.u32 %v271, 16
      %v331 = vrot.slane %v329, 7
      %v332 = vshll.u32 %v271, 16
      %v334 = vor.u32 %v331, %v332
      %v335 = vsel %vm302, %v327, %v334
      %v336 = vrot.slane %v331, 4
      %v338 = vshrl.u32 %v272, 16
      %v340 = vrot.slane %v338, 7
      %v341 = vshll.u32 %v272, 16
      %v343 = vor.u32 %v340, %v341
      %v344 = vrot.slane %v340, 4
      %v346 = vshrl.u32 %v273, 16
      %v348 = vrot.slane %v346, 7
      %v349 = vshll.u32 %v273, 16
      %v351 = vor.u32 %v348, %v349
      %v352 = vsel %vm302, %v344, %v351
      %v353 = vrot.slane %v348, 4
      %v355 = vshrl.u32 %v274, 16
      %v357 = vrot.slane %v355, 7
      %v358 = vshll.u32 %v274, 16
      %v360 = vor.u32 %v357, %v358
      %v361 = vrot.slane %v357, 4
      %v363 = vshrl.u32 %v275, 16
      %v365 = vrot.slane %v363, 7
      %v366 = vshll.u32 %v275, 16
      %v368 = vor.u32 %v365, %v366
      %v369 = vsel %vm302, %v361, %v368
      %v370 = vrot.slane %v365, 4
      %v372 = vshrl.u32 %v276, 16
      %v374 = vrot.slane %v372, 7
      %v375 = vshll.u32 %v276, 16
      %v377 = vor.u32 %v374, %v375
      %v378 = vrot.slane %v374, 4
      %v380 = vshrl.u32 %v277, 16
      %v382 = vrot.slane %v380, 7
      %v383 = vshll.u32 %v277, 16
      %v385 = vor.u32 %v382, %v383
      %v386 = vsel %vm302, %v378, %v385
      %v387 = vrot.slane %v382, 4
      %v389 = vshrl.u32 %v278, 16
      %v391 = vrot.slane %v389, 7
      %v392 = vshll.u32 %v278, 16
      %v394 = vor.u32 %v391, %v392
      %v395 = vrot.slane %v391, 4
      %v397 = vshrl.u32 %v279, 16
      %v399 = vrot.slane %v397, 7
      %v400 = vshll.u32 %v279, 16
      %v402 = vor.u32 %v399, %v400
      %v403 = vsel %vm302, %v395, %v402
      %v404 = vrot.slane %v399, 4
      %v406 = vshrl.u32 %v280, 16
      %v408 = vrot.slane %v406, 7
      %v409 = vshll.u32 %v280, 16
      %v411 = vor.u32 %v408, %v409
      %v412 = vrot.slane %v408, 4
      %v414 = vshrl.u32 %v281, 16
      %v416 = vrot.slane %v414, 7
      %v417 = vshll.u32 %v281, 16
      %v419 = vor.u32 %v416, %v417
      %v420 = vsel %vm302, %v412, %v419
      %v421 = vrot.slane %v416, 4
      %v423 = vshrl.u32 %v282, 16
      %v425 = vrot.slane %v423, 7
      %v426 = vshll.u32 %v282, 16
      %v428 = vor.u32 %v425, %v426
      %v429 = vrot.slane %v425, 4
      %v431 = vshrl.u32 %v283, 16
      %v433 = vrot.slane %v431, 7
      %v434 = vshll.u32 %v283, 16
      %v436 = vor.u32 %v433, %v434
      %v437 = vsel %vm302, %v429, %v436
      %v438 = vrot.slane %v433, 4
      %v440 = vshrl.u32 %v284, 16
      %v442 = vrot.slane %v440, 7
      %v443 = vshll.u32 %v284, 16
      %v445 = vor.u32 %v442, %v443
      %v446 = vrot.slane %v442, 4
      %v448 = vshrl.u32 %v285, 16
      %v450 = vrot.slane %v448, 7
      %v451 = vshll.u32 %v285, 16
      %v453 = vor.u32 %v450, %v451
      %v454 = vsel %vm302, %v446, %v453
      %v455 = vrot.slane %v450, 4
      %v457 = vshrl.u32 %v286, 16
      %v459 = vrot.slane %v457, 7
      %v460 = vshll.u32 %v286, 16
      %v462 = vor.u32 %v459, %v460
      %v463 = vrot.slane %v459, 4
      %v465 = vshrl.u32 %v287, 16
      %v467 = vrot.slane %v465, 7
      %v468 = vshll.u32 %v287, 16
      %v470 = vor.u32 %v467, %v468
      %v471 = vsel %vm302, %v463, %v470
      %v472 = vrot.slane %v467, 4
      %v474 = vshrl.u32 %v288, 16
      %v476 = vrot.slane %v474, 7
      %v477 = vshll.u32 %v288, 16
      %v479 = vor.u32 %v476, %v477
      %v480 = vrot.slane %v476, 4
      %v482 = vshrl.u32 %v289, 16
      %v484 = vrot.slane %v482, 7
      %v485 = vshll.u32 %v289, 16
      %v487 = vor.u32 %v484, %v485
      %v488 = vsel %vm302, %v480, %v487
      %v489 = vrot.slane %v484, 4
      %v491 = vshrl.u32 %v290, 16
      %v493 = vrot.slane %v491, 7
      %v494 = vshll.u32 %v290, 16
      %v496 = vor.u32 %v493, %v494
      %v497 = vrot.slane %v493, 4
      %v499 = vshrl.u32 %v291, 16
      %v501 = vrot.slane %v499, 7
      %v502 = vshll.u32 %v291, 16
      %v504 = vor.u32 %v501, %v502
      %v505 = vsel %vm302, %v497, %v504
      %v506 = vrot.slane %v501, 4
      %v508 = vshrl.u32 %v292, 16
      %v510 = vrot.slane %v508, 7
      %v511 = vshll.u32 %v292, 16
      %v513 = vor.u32 %v510, %v511
      %v514 = vrot.slane %v510, 4
      %v516 = vshrl.u32 %v293, 16
      %v518 = vrot.slane %v516, 7
      %v519 = vshll.u32 %v293, 16
      %v521 = vor.u32 %v518, %v519
      %v522 = vsel %vm302, %v514, %v521
      %v523 = vrot.slane %v518, 4
      %v525 = vshrl.u32 %v294, 16
      %v527 = vrot.slane %v525, 7
      %v528 = vshll.u32 %v294, 16
      %v530 = vor.u32 %v527, %v528
      %v531 = vrot.slane %v527, 4
      %v533 = vshrl.u32 %v295, 16
      %v535 = vrot.slane %v533, 7
      %v536 = vshll.u32 %v295, 16
      %v538 = vor.u32 %v535, %v536
      %v539 = vsel %vm302, %v531, %v538
      %v540 = vrot.slane %v535, 4
      %v542 = vshrl.u32 %v296, 16
      %v544 = vrot.slane %v542, 7
      %v545 = vshll.u32 %v296, 16
      %v547 = vor.u32 %v544, %v545
      %v548 = vrot.slane %v544, 4
      %v550 = vshrl.u32 %v297, 16
      %v552 = vrot.slane %v550, 7
      %v553 = vshll.u32 %v297, 16
      %v555 = vor.u32 %v552, %v553
      %v556 = vsel %vm302, %v548, %v555
      %v557 = vrot.slane %v552, 4
      %v559 = vshrl.u32 %v298, 16
      %v561 = vrot.slane %v559, 7
      %v562 = vshll.u32 %v298, 16
      %v564 = vor.u32 %v561, %v562
      %v565 = vrot.slane %v561, 4
      %v567 = vshrl.u32 %v299, 16
      %v569 = vrot.slane %v567, 7
      %v570 = vshll.u32 %v299, 16
      %v572 = vor.u32 %v569, %v570
      %v573 = vsel %vm302, %v565, %v572
      %v574 = vrot.slane %v569, 4
      %vm623 = vcmask 27648
      %vm624 = vsmask.f32 7938
      %vm625 = vmand %vm623, %vm624
      %v626 = vld [vmem:[#allocation2] sm:$0xf]
      %v627 = vsel %vm625, %v309, %v626
      %628 = vst [vmem:[#allocation2] sm:$0xf] %v627
      %vm629 = vcmask 27648
      %630 = vst.msk [vmem:[#allocation2 + $0x4] sm:$0xf] %vm629, %v318
      %vm631 = vcmask 24576
      %vm632 = vmand %vm631, %vm300
      %v633 = vld [vmem:[#allocation2 + $0x8] sm:$0x1]
      %v634 = vsel %vm632, %v319, %v633
      %635 = vst [vmem:[#allocation2 + $0x8] sm:$0x1] %v634
      %v636 = vld [vmem:[#allocation2 + $0xc] sm:$0xf]
      %v637 = vsel %vm625, %v326, %v636
      %638 = vst [vmem:[#allocation2 + $0xc] sm:$0xf] %v637
      %639 = vst.msk [vmem:[#allocation2 + $0x10] sm:$0xf] %vm629, %v335
      %v640 = vld [vmem:[#allocation2 + $0x14] sm:$0x1]
      %v641 = vsel %vm632, %v336, %v640
      %642 = vst [vmem:[#allocation2 + $0x14] sm:$0x1] %v641
      %v643 = vld [vmem:[#allocation2 + $0x18] sm:$0xf]
      %v644 = vsel %vm625, %v309, %v643
      %645 = vst [vmem:[#allocation2 + $0x18] sm:$0xf] %v644
      %646 = vst.msk [vmem:[#allocation2 + $0x1c] sm:$0xf] %vm629, %v318
      %v647 = vld [vmem:[#allocation2 + $0x20] sm:$0x1]
      %v648 = vsel %vm632, %v319, %v647
      %649 = vst [vmem:[#allocation2 + $0x20] sm:$0x1] %v648
      %v650 = vld [vmem:[#allocation2 + $0x24] sm:$0xf]
      %v651 = vsel %vm625, %v343, %v650
      %652 = vst [vmem:[#allocation2 + $0x24] sm:$0xf] %v651
      %653 = vst.msk [vmem:[#allocation2 + $0x28] sm:$0xf] %vm629, %v352
      %v654 = vld [vmem:[#allocation2 + $0x2c] sm:$0x1]
      %v655 = vsel %vm632, %v353, %v654
      %656 = vst [vmem:[#allocation2 + $0x2c] sm:$0x1] %v655
      %v657 = vld [vmem:[#allocation2 + $0x30] sm:$0xf]
      %v658 = vsel %vm625, %v360, %v657
      %659 = vst [vmem:[#allocation2 + $0x30] sm:$0xf] %v658
      %660 = vst.msk [vmem:[#allocation2 + $0x34] sm:$0xf] %vm629, %v369
      %v661 = vld [vmem:[#allocation2 + $0x38] sm:$0x1]
      %v662 = vsel %vm632, %v370, %v661
      %663 = vst [vmem:[#allocation2 + $0x38] sm:$0x1] %v662
      %v664 = vld [vmem:[#allocation2 + $0x3c] sm:$0xf]
      %v665 = vsel %vm625, %v377, %v664
      %666 = vst [vmem:[#allocation2 + $0x3c] sm:$0xf] %v665
      %667 = vst.msk [vmem:[#allocation2 + $0x40] sm:$0xf] %vm629, %v386
      %v668 = vld [vmem:[#allocation2 + $0x44] sm:$0x1]
      %v669 = vsel %vm632, %v387, %v668
      %670 = vst [vmem:[#allocation2 + $0x44] sm:$0x1] %v669
      %v671 = vld [vmem:[#allocation2 + $0x48] sm:$0xf]
      %v672 = vsel %vm625, %v394, %v671
      %673 = vst [vmem:[#allocation2 + $0x48] sm:$0xf] %v672
      %674 = vst.msk [vmem:[#allocation2 + $0x4c] sm:$0xf] %vm629, %v403
      %v675 = vld [vmem:[#allocation2 + $0x50] sm:$0x1]
      %v676 = vsel %vm632, %v404, %v675
      %677 = vst [vmem:[#allocation2 + $0x50] sm:$0x1] %v676
      %v678 = vld [vmem:[#allocation2 + $0x54] sm:$0xf]
      %v679 = vsel %vm625, %v411, %v678
      %680 = vst [vmem:[#allocation2 + $0x54] sm:$0xf] %v679
      %681 = vst.msk [vmem:[#allocation2 + $0x58] sm:$0xf] %vm629, %v420
      %v682 = vld [vmem:[#allocation2 + $0x5c] sm:$0x1]
      %v683 = vsel %vm632, %v421, %v682
      %684 = vst [vmem:[#allocation2 + $0x5c] sm:$0x1] %v683
      %v685 = vld [vmem:[#allocation2 + $0x60] sm:$0xf]
      %v686 = vsel %vm625, %v428, %v685
      %687 = vst [vmem:[#allocation2 + $0x60] sm:$0xf] %v686
      %688 = vst.msk [vmem:[#allocation2 + $0x64] sm:$0xf] %vm629, %v437
      %v689 = vld [vmem:[#allocation2 + $0x68] sm:$0x1]
      %v690 = vsel %vm632, %v438, %v689
      %691 = vst [vmem:[#allocation2 + $0x68] sm:$0x1] %v690
      %v692 = vld [vmem:[#allocation2 + $0x6c] sm:$0xf]
      %v693 = vsel %vm625, %v445, %v692
      %694 = vst [vmem:[#allocation2 + $0x6c] sm:$0xf] %v693
      %695 = vst.msk [vmem:[#allocation2 + $0x70] sm:$0xf] %vm629, %v454
      %v696 = vld [vmem:[#allocation2 + $0x74] sm:$0x1]
      %v697 = vsel %vm632, %v455, %v696
      %698 = vst [vmem:[#allocation2 + $0x74] sm:$0x1] %v697
      %v699 = vld [vmem:[#allocation2 + $0x78] sm:$0xf]
      %v700 = vsel %vm625, %v462, %v699
      %701 = vst [vmem:[#allocation2 + $0x78] sm:$0xf] %v700
      %702 = vst.msk [vmem:[#allocation2 + $0x7c] sm:$0xf] %vm629, %v471
      %v703 = vld [vmem:[#allocation2 + $0x80] sm:$0x1]
      %v704 = vsel %vm632, %v472, %v703
      %705 = vst [vmem:[#allocation2 + $0x80] sm:$0x1] %v704
      %v706 = vld [vmem:[#allocation2 + $0x84] sm:$0xf]
      %v707 = vsel %vm625, %v479, %v706
      %708 = vst [vmem:[#allocation2 + $0x84] sm:$0xf] %v707
      %709 = vst.msk [vmem:[#allocation2 + $0x88] sm:$0xf] %vm629, %v488
      %v710 = vld [vmem:[#allocation2 + $0x8c] sm:$0x1]
      %v711 = vsel %vm632, %v489, %v710
      %712 = vst [vmem:[#allocation2 + $0x8c] sm:$0x1] %v711
      %v713 = vld [vmem:[#allocation2 + $0x90] sm:$0xf]
      %v714 = vsel %vm625, %v496, %v713
      %715 = vst [vmem:[#allocation2 + $0x90] sm:$0xf] %v714
      %716 = vst.msk [vmem:[#allocation2 + $0x94] sm:$0xf] %vm629, %v505
      %v717 = vld [vmem:[#allocation2 + $0x98] sm:$0x1]
      %v718 = vsel %vm632, %v506, %v717
      %719 = vst [vmem:[#allocation2 + $0x98] sm:$0x1] %v718
      %v720 = vld [vmem:[#allocation2 + $0x9c] sm:$0xf]
      %v721 = vsel %vm625, %v513, %v720
      %722 = vst [vmem:[#allocation2 + $0x9c] sm:$0xf] %v721
      %723 = vst.msk [vmem:[#allocation2 + $0xa0] sm:$0xf] %vm629, %v522
      %v724 = vld [vmem:[#allocation2 + $0xa4] sm:$0x1]
      %v725 = vsel %vm632, %v523, %v724
      %726 = vst [vmem:[#allocation2 + $0xa4] sm:$0x1] %v725
      %v727 = vld [vmem:[#allocation2 + $0xa8] sm:$0xf]
      %v728 = vsel %vm625, %v530, %v727
      %729 = vst [vmem:[#allocation2 + $0xa8] sm:$0xf] %v728
      %730 = vst.msk [vmem:[#allocation2 + $0xac] sm:$0xf] %vm629, %v539
      %v731 = vld [vmem:[#allocation2 + $0xb0] sm:$0x1]
      %v732 = vsel %vm632, %v540, %v731
      %733 = vst [vmem:[#allocation2 + $0xb0] sm:$0x1] %v732
      %v734 = vld [vmem:[#allocation2 + $0xb4] sm:$0xf]
      %v735 = vsel %vm625, %v547, %v734
      %736 = vst [vmem:[#allocation2 + $0xb4] sm:$0xf] %v735
      %737 = vst.msk [vmem:[#allocation2 + $0xb8] sm:$0xf] %vm629, %v556
      %v738 = vld [vmem:[#allocation2 + $0xbc] sm:$0x1]
      %v739 = vsel %vm632, %v557, %v738
      %740 = vst [vmem:[#allocation2 + $0xbc] sm:$0x1] %v739
      %v741 = vld [vmem:[#allocation2 + $0xc0] sm:$0xf]
      %v742 = vsel %vm625, %v564, %v741
      %743 = vst [vmem:[#allocation2 + $0xc0] sm:$0xf] %v742
      %744 = vst.msk [vmem:[#allocation2 + $0xc4] sm:$0xf] %vm629, %v573
      %v745 = vld [vmem:[#allocation2 + $0xc8] sm:$0x1]
      %v746 = vsel %vm632, %v574, %v745
      %747 = vst [vmem:[#allocation2 + $0xc8] sm:$0x1] %v746
      %v748 = vld [vmem:[#allocation2 + $0xcc] sm:$0xf]
      %v749 = vsel %vm625, %v547, %v748
      %750 = vst [vmem:[#allocation2 + $0xcc] sm:$0xf] %v749
      %751 = vst.msk [vmem:[#allocation2 + $0xd0] sm:$0xf] %vm629, %v556
      %v752 = vld [vmem:[#allocation2 + $0xd4] sm:$0x1]
      %v753 = vsel %vm632, %v557, %v752
      %754 = vst [vmem:[#allocation2 + $0xd4] sm:$0x1] %v753
      %v755 = vrot.slane %v304, 4
      %v756 = vrot.slane %v755, 4
      %v757 = vrot.slane %v321, 4
      %v758 = vrot.slane %v757, 4
      %v759 = vrot.slane %v338, 4
      %v760 = vrot.slane %v759, 4
      %v761 = vrot.slane %v355, 4
      %v762 = vrot.slane %v761, 4
      %v763 = vrot.slane %v372, 4
      %v764 = vrot.slane %v763, 4
      %v765 = vrot.slane %v389, 4
      %v766 = vrot.slane %v765, 4
      %v767 = vrot.slane %v406, 4
      %v768 = vrot.slane %v767, 4
      %v769 = vrot.slane %v423, 4
      %v770 = vrot.slane %v769, 4
      %v771 = vrot.slane %v440, 4
      %v772 = vrot.slane %v771, 4
      %v773 = vrot.slane %v457, 4
      %v774 = vrot.slane %v773, 4
      %v775 = vrot.slane %v474, 4
      %v776 = vrot.slane %v775, 4
      %v777 = vrot.slane %v491, 4
      %v778 = vrot.slane %v777, 4
      %v779 = vrot.slane %v508, 4
      %v780 = vrot.slane %v779, 4
      %v781 = vrot.slane %v525, 4
      %v782 = vrot.slane %v781, 4
      %v783 = vrot.slane %v542, 4
      %v784 = vrot.slane %v783, 4
      %v785 = vrot.slane %v559, 4
      %v786 = vrot.slane %v785, 4
      %v803 = vld [vmem:[#allocation2] sm:$0x1]
      %v804 = vsel %vm632, %v756, %v803
      %805 = vst [vmem:[#allocation2] sm:$0x1] %v804
      %v806 = vld [vmem:[#allocation2 + $0xc] sm:$0x1]
      %v807 = vsel %vm632, %v758, %v806
      %808 = vst [vmem:[#allocation2 + $0xc] sm:$0x1] %v807
      %v809 = vld [vmem:[#allocation2 + $0x18] sm:$0x1]
      %v810 = vsel %vm632, %v756, %v809
      %811 = vst [vmem:[#allocation2 + $0x18] sm:$0x1] %v810
      %v812 = vld [vmem:[#allocation2 + $0x24] sm:$0x1]
      %v813 = vsel %vm632, %v760, %v812
      %814 = vst [vmem:[#allocation2 + $0x24] sm:$0x1] %v813
      %v815 = vld [vmem:[#allocation2 + $0x30] sm:$0x1]
      %v816 = vsel %vm632, %v762, %v815
      %817 = vst [vmem:[#allocation2 + $0x30] sm:$0x1] %v816
      %v818 = vld [vmem:[#allocation2 + $0x3c] sm:$0x1]
      %v819 = vsel %vm632, %v764, %v818
      %820 = vst [vmem:[#allocation2 + $0x3c] sm:$0x1] %v819
      %v821 = vld [vmem:[#allocation2 + $0x48] sm:$0x1]
      %v822 = vsel %vm632, %v766, %v821
      %823 = vst [vmem:[#allocation2 + $0x48] sm:$0x1] %v822
      %v824 = vld [vmem:[#allocation2 + $0x54] sm:$0x1]
      %v825 = vsel %vm632, %v768, %v824
      %826 = vst [vmem:[#allocation2 + $0x54] sm:$0x1] %v825
      %v827 = vld [vmem:[#allocation2 + $0x60] sm:$0x1]
      %v828 = vsel %vm632, %v770, %v827
      %829 = vst [vmem:[#allocation2 + $0x60] sm:$0x1] %v828
      %v830 = vld [vmem:[#allocation2 + $0x6c] sm:$0x1]
      %v831 = vsel %vm632, %v772, %v830
      %832 = vst [vmem:[#allocation2 + $0x6c] sm:$0x1] %v831
      %v833 = vld [vmem:[#allocation2 + $0x78] sm:$0x1]
      %v834 = vsel %vm632, %v774, %v833
      %835 = vst [vmem:[#allocation2 + $0x78] sm:$0x1] %v834
      %v836 = vld [vmem:[#allocation2 + $0x84] sm:$0x1]
      %v837 = vsel %vm632, %v776, %v836
      %838 = vst [vmem:[#allocation2 + $0x84] sm:$0x1] %v837
      %v839 = vld [vmem:[#allocation2 + $0x90] sm:$0x1]
      %v840 = vsel %vm632, %v778, %v839
      %841 = vst [vmem:[#allocation2 + $0x90] sm:$0x1] %v840
      %v842 = vld [vmem:[#allocation2 + $0x9c] sm:$0x1]
      %v843 = vsel %vm632, %v780, %v842
      %844 = vst [vmem:[#allocation2 + $0x9c] sm:$0x1] %v843
      %v845 = vld [vmem:[#allocation2 + $0xa8] sm:$0x1]
      %v846 = vsel %vm632, %v782, %v845
      %847 = vst [vmem:[#allocation2 + $0xa8] sm:$0x1] %v846
      %v848 = vld [vmem:[#allocation2 + $0xb4] sm:$0x1]
      %v849 = vsel %vm632, %v784, %v848
      %850 = vst [vmem:[#allocation2 + $0xb4] sm:$0x1] %v849
      %v851 = vld [vmem:[#allocation2 + $0xc0] sm:$0x1]
      %v852 = vsel %vm632, %v786, %v851
      %853 = vst [vmem:[#allocation2 + $0xc0] sm:$0x1] %v852
      %v854 = vld [vmem:[#allocation2 + $0xcc] sm:$0x1]
      %v855 = vsel %vm632, %v784, %v854
      %856 = vst [vmem:[#allocation2 + $0xcc] sm:$0x1] %v855
      %v857 = vrot.slane %v315, 7
      %v858 = vrot.slane %v857, 4
      %v859 = vrot.slane %v332, 7
      %v860 = vrot.slane %v859, 4
      %v861 = vrot.slane %v349, 7
      %v862 = vrot.slane %v861, 4
      %v863 = vrot.slane %v366, 7
      %v864 = vrot.slane %v863, 4
      %v865 = vrot.slane %v383, 7
      %v866 = vrot.slane %v865, 4
      %v867 = vrot.slane %v400, 7
      %v868 = vrot.slane %v867, 4
      %v869 = vrot.slane %v417, 7
      %v870 = vrot.slane %v869, 4
      %v871 = vrot.slane %v434, 7
      %v872 = vrot.slane %v871, 4
      %v873 = vrot.slane %v451, 7
      %v874 = vrot.slane %v873, 4
      %v875 = vrot.slane %v468, 7
      %v876 = vrot.slane %v875, 4
      %v877 = vrot.slane %v485, 7
      %v878 = vrot.slane %v877, 4
      %v879 = vrot.slane %v502, 7
      %v880 = vrot.slane %v879, 4
      %v881 = vrot.slane %v519, 7
      %v882 = vrot.slane %v881, 4
      %v883 = vrot.slane %v536, 7
      %v884 = vrot.slane %v883, 4
      %v885 = vrot.slane %v553, 7
      %v886 = vrot.slane %v885, 4
      %v887 = vrot.slane %v570, 7
      %v888 = vrot.slane %v887, 4
      %vm905 = vmand %vm631, %vm624
      %v906 = vld [vmem:[#allocation2 + $0x8] sm:$0x1]
      %v907 = vsel %vm905, %v858, %v906
      %908 = vst [vmem:[#allocation2 + $0x8] sm:$0x1] %v907
      %v909 = vld [vmem:[#allocation2 + $0x14] sm:$0x1]
      %v910 = vsel %vm905, %v860, %v909
      %911 = vst [vmem:[#allocation2 + $0x14] sm:$0x1] %v910
      %v912 = vld [vmem:[#allocation2 + $0x20] sm:$0x1]
      %v913 = vsel %vm905, %v858, %v912
      %914 = vst [vmem:[#allocation2 + $0x20] sm:$0x1] %v913
      %v915 = vld [vmem:[#allocation2 + $0x2c] sm:$0x1]
      %v916 = vsel %vm905, %v862, %v915
      %917 = vst [vmem:[#allocation2 + $0x2c] sm:$0x1] %v916
      %v918 = vld [vmem:[#allocation2 + $0x38] sm:$0x1]
      %v919 = vsel %vm905, %v864, %v918
      %920 = vst [vmem:[#allocation2 + $0x38] sm:$0x1] %v919
      %v921 = vld [vmem:[#allocation2 + $0x44] sm:$0x1]
      %v922 = vsel %vm905, %v866, %v921
      %923 = vst [vmem:[#allocation2 + $0x44] sm:$0x1] %v922
      %v924 = vld [vmem:[#allocation2 + $0x50] sm:$0x1]
      %v925 = vsel %vm905, %v868, %v924
      %926 = vst [vmem:[#allocation2 + $0x50] sm:$0x1] %v925
      %v927 = vld [vmem:[#allocation2 + $0x5c] sm:$0x1]
      %v928 = vsel %vm905, %v870, %v927
      %929 = vst [vmem:[#allocation2 + $0x5c] sm:$0x1] %v928
      %v930 = vld [vmem:[#allocation2 + $0x68] sm:$0x1]
      %v931 = vsel %vm905, %v872, %v930
      %932 = vst [vmem:[#allocation2 + $0x68] sm:$0x1] %v931
      %v933 = vld [vmem:[#allocation2 + $0x74] sm:$0x1]
      %v934 = vsel %vm905, %v874, %v933
      %935 = vst [vmem:[#allocation2 + $0x74] sm:$0x1] %v934
      %v936 = vld [vmem:[#allocation2 + $0x80] sm:$0x1]
      %v937 = vsel %vm905, %v876, %v936
      %938 = vst [vmem:[#allocation2 + $0x80] sm:$0x1] %v937
      %v939 = vld [vmem:[#allocation2 + $0x8c] sm:$0x1]
      %v940 = vsel %vm905, %v878, %v939
      %941 = vst [vmem:[#allocation2 + $0x8c] sm:$0x1] %v940
      %v942 = vld [vmem:[#allocation2 + $0x98] sm:$0x1]
      %v943 = vsel %vm905, %v880, %v942
      %944 = vst [vmem:[#allocation2 + $0x98] sm:$0x1] %v943
      %v945 = vld [vmem:[#allocation2 + $0xa4] sm:$0x1]
      %v946 = vsel %vm905, %v882, %v945
      %947 = vst [vmem:[#allocation2 + $0xa4] sm:$0x1] %v946
      %v948 = vld [vmem:[#allocation2 + $0xb0] sm:$0x1]
      %v949 = vsel %vm905, %v884, %v948
      %950 = vst [vmem:[#allocation2 + $0xb0] sm:$0x1] %v949
      %v951 = vld [vmem:[#allocation2 + $0xbc] sm:$0x1]
      %v952 = vsel %vm905, %v886, %v951
      %953 = vst [vmem:[#allocation2 + $0xbc] sm:$0x1] %v952
      %v954 = vld [vmem:[#allocation2 + $0xc8] sm:$0x1]
      %v955 = vsel %vm905, %v888, %v954
      %956 = vst [vmem:[#allocation2 + $0xc8] sm:$0x1] %v955
      %v957 = vld [vmem:[#allocation2 + $0xd4] sm:$0x1]
      %v958 = vsel %vm905, %v886, %v957
      %959 = vst [vmem:[#allocation2 + $0xd4] sm:$0x1] %v958
      %v960 = vld [vmem:[#allocation2] sm:$0xf]
      %v961 = vld [vmem:[#allocation2 + $0x4] sm:$0xf]
      %v962 = vld [vmem:[#allocation2 + $0x8] sm:$0x1]
      %v963 = vld [vmem:[#allocation2 + $0xc] sm:$0xf]
      %v964 = vld [vmem:[#allocation2 + $0x10] sm:$0xf]
      %v965 = vld [vmem:[#allocation2 + $0x14] sm:$0x1]
      %v966 = vld [vmem:[#allocation2 + $0x18] sm:$0xf]
      %v967 = vld [vmem:[#allocation2 + $0x1c] sm:$0xf]
      %v968 = vld [vmem:[#allocation2 + $0x20] sm:$0x1]
      %v969 = vld [vmem:[#allocation2 + $0x24] sm:$0xf]
      %v970 = vld [vmem:[#allocation2 + $0x28] sm:$0xf]
      %v971 = vld [vmem:[#allocation2 + $0x2c] sm:$0x1]
      %v972 = vld [vmem:[#allocation2 + $0x30] sm:$0xf]
      %v973 = vld [vmem:[#allocation2 + $0x34] sm:$0xf]
      %v974 = vld [vmem:[#allocation2 + $0x38] sm:$0x1]
      %v975 = vld [vmem:[#allocation2 + $0x3c] sm:$0xf]
      %v976 = vld [vmem:[#allocation2 + $0x40] sm:$0xf]
      %v977 = vld [vmem:[#allocation2 + $0x44] sm:$0x1]
      %v978 = vld [vmem:[#allocation2 + $0x48] sm:$0xf]
      %v979 = vld [vmem:[#allocation2 + $0x4c] sm:$0xf]
      %v980 = vld [vmem:[#allocation2 + $0x50] sm:$0x1]
      %v981 = vld [vmem:[#allocation2 + $0x54] sm:$0xf]
      %v982 = vld [vmem:[#allocation2 + $0x58] sm:$0xf]
      %v983 = vld [vmem:[#allocation2 + $0x5c] sm:$0x1]
      %v984 = vld [vmem:[#allocation2 + $0x60] sm:$0xf]
      %v985 = vld [vmem:[#allocation2 + $0x64] sm:$0xf]
      %v986 = vld [vmem:[#allocation2 + $0x68] sm:$0x1]
      %v987 = vld [vmem:[#allocation2 + $0x6c] sm:$0xf]
      %v988 = vld [vmem:[#allocation2 + $0x70] sm:$0xf]
      %v989 = vld [vmem:[#allocation2 + $0x74] sm:$0x1]
      %v990 = vld [vmem:[#allocation2 + $0x78] sm:$0xf]
      %v991 = vld [vmem:[#allocation2 + $0x7c] sm:$0xf]
      %v992 = vld [vmem:[#allocation2 + $0x80] sm:$0x1]
      %v993 = vld [vmem:[#allocation2 + $0x84] sm:$0xf]
      %v994 = vld [vmem:[#allocation2 + $0x88] sm:$0xf]
      %v995 = vld [vmem:[#allocation2 + $0x8c] sm:$0x1]
      %v996 = vld [vmem:[#allocation2 + $0x90] sm:$0xf]
      %v997 = vld [vmem:[#allocation2 + $0x94] sm:$0xf]
      %v998 = vld [vmem:[#allocation2 + $0x98] sm:$0x1]
      %v999 = vld [vmem:[#allocation2 + $0x9c] sm:$0xf]
      %v1000 = vld [vmem:[#allocation2 + $0xa0] sm:$0xf]
      %v1001 = vld [vmem:[#allocation2 + $0xa4] sm:$0x1]
      %v1002 = vld [vmem:[#allocation2 + $0xa8] sm:$0xf]
      %v1003 = vld [vmem:[#allocation2 + $0xac] sm:$0xf]
      %v1004 = vld [vmem:[#allocation2 + $0xb0] sm:$0x1]
      %v1005 = vld [vmem:[#allocation2 + $0xb4] sm:$0xf]
      %v1006 = vld [vmem:[#allocation2 + $0xb8] sm:$0xf]
      %v1007 = vld [vmem:[#allocation2 + $0xbc] sm:$0x1]
      %1008 = vst.msk [vmem:[#allocation3] sm:$0xf] %vm629, %v960
      %1009 = vst.msk [vmem:[#allocation3 + $0x4] sm:$0xf] %vm629, %v961
      %vm1010 = vcmask 24576
      %1011 = vst.msk [vmem:[#allocation3 + $0x8] sm:$0x1] %vm1010, %v962
      %1012 = vst.msk [vmem:[#allocation3 + $0xc] sm:$0xf] %vm629, %v963
      %1013 = vst.msk [vmem:[#allocation3 + $0x10] sm:$0xf] %vm629, %v964
      %1014 = vst.msk [vmem:[#allocation3 + $0x14] sm:$0x1] %vm1010, %v965
      %1015 = vst.msk [vmem:[#allocation3 + $0x18] sm:$0xf] %vm629, %v966
      %1016 = vst.msk [vmem:[#allocation3 + $0x1c] sm:$0xf] %vm629, %v967
      %1017 = vst.msk [vmem:[#allocation3 + $0x20] sm:$0x1] %vm1010, %v968
      %1018 = vst.msk [vmem:[#allocation3 + $0x24] sm:$0xf] %vm629, %v969
      %1019 = vst.msk [vmem:[#allocation3 + $0x28] sm:$0xf] %vm629, %v970
      %1020 = vst.msk [vmem:[#allocation3 + $0x2c] sm:$0x1] %vm1010, %v971
      %1021 = vst.msk [vmem:[#allocation3 + $0x30] sm:$0xf] %vm629, %v972
      %1022 = vst.msk [vmem:[#allocation3 + $0x34] sm:$0xf] %vm629, %v973
      %1023 = vst.msk [vmem:[#allocation3 + $0x38] sm:$0x1] %vm1010, %v974
      %1024 = vst.msk [vmem:[#allocation3 + $0x3c] sm:$0xf] %vm629, %v975
      %1025 = vst.msk [vmem:[#allocation3 + $0x40] sm:$0xf] %vm629, %v976
      %1026 = vst.msk [vmem:[#allocation3 + $0x44] sm:$0x1] %vm1010, %v977
      %1027 = vst.msk [vmem:[#allocation3 + $0x48] sm:$0xf] %vm629, %v978
      %1028 = vst.msk [vmem:[#allocation3 + $0x4c] sm:$0xf] %vm629, %v979
      %1029 = vst.msk [vmem:[#allocation3 + $0x50] sm:$0x1] %vm1010, %v980
      %1030 = vst.msk [vmem:[#allocation3 + $0x54] sm:$0xf] %vm629, %v981
      %1031 = vst.msk [vmem:[#allocation3 + $0x58] sm:$0xf] %vm629, %v982
      %1032 = vst.msk [vmem:[#allocation3 + $0x5c] sm:$0x1] %vm1010, %v983
      %1033 = vst.msk [vmem:[#allocation3 + $0x60] sm:$0xf] %vm629, %v984
      %1034 = vst.msk [vmem:[#allocation3 + $0x64] sm:$0xf] %vm629, %v985
      %1035 = vst.msk [vmem:[#allocation3 + $0x68] sm:$0x1] %vm1010, %v986
      %1036 = vst.msk [vmem:[#allocation3 + $0x6c] sm:$0xf] %vm629, %v987
      %1037 = vst.msk [vmem:[#allocation3 + $0x70] sm:$0xf] %vm629, %v988
      %1038 = vst.msk [vmem:[#allocation3 + $0x74] sm:$0x1] %vm1010, %v989
      %1039 = vst.msk [vmem:[#allocation3 + $0x78] sm:$0xf] %vm629, %v990
      %1040 = vst.msk [vmem:[#allocation3 + $0x7c] sm:$0xf] %vm629, %v991
      %1041 = vst.msk [vmem:[#allocation3 + $0x80] sm:$0x1] %vm1010, %v992
      %1042 = vst.msk [vmem:[#allocation3 + $0x84] sm:$0xf] %vm629, %v993
      %1043 = vst.msk [vmem:[#allocation3 + $0x88] sm:$0xf] %vm629, %v994
      %1044 = vst.msk [vmem:[#allocation3 + $0x8c] sm:$0x1] %vm1010, %v995
      %1045 = vst.msk [vmem:[#allocation3 + $0x90] sm:$0xf] %vm629, %v996
      %1046 = vst.msk [vmem:[#allocation3 + $0x94] sm:$0xf] %vm629, %v997
      %1047 = vst.msk [vmem:[#allocation3 + $0x98] sm:$0x1] %vm1010, %v998
      %1048 = vst.msk [vmem:[#allocation3 + $0x9c] sm:$0xf] %vm629, %v999
      %1049 = vst.msk [vmem:[#allocation3 + $0xa0] sm:$0xf] %vm629, %v1000
      %1050 = vst.msk [vmem:[#allocation3 + $0xa4] sm:$0x1] %vm1010, %v1001
      %1051 = vst.msk [vmem:[#allocation3 + $0xa8] sm:$0xf] %vm629, %v1002
      %1052 = vst.msk [vmem:[#allocation3 + $0xac] sm:$0xf] %vm629, %v1003
      %1053 = vst.msk [vmem:[#allocation3 + $0xb0] sm:$0x1] %vm1010, %v1004
      %1054 = vst.msk [vmem:[#allocation3 + $0xb4] sm:$0xf] %vm629, %v1005
      %1055 = vst.msk [vmem:[#allocation3 + $0xb8] sm:$0xf] %vm629, %v1006
      %1056 = vst.msk [vmem:[#allocation3 + $0xbc] sm:$0x1] %vm1010, %v1007
      %s1057 = scalar_lea.vmem [#allocation2], 12
      %v1058 = vld [vmem:[%s1057] sm:$0xf]
      %v1059 = vld [vmem:[%s1057 + $0x4] sm:$0xf]
      %v1060 = vld [vmem:[%s1057 + $0x8] sm:$0x1]
      %v1061 = vld [vmem:[%s1057 + $0xc] sm:$0xf]
      %v1062 = vld [vmem:[%s1057 + $0x10] sm:$0xf]
      %v1063 = vld [vmem:[%s1057 + $0x14] sm:$0x1]
      %v1064 = vld [vmem:[%s1057 + $0x18] sm:$0xf]
      %v1065 = vld [vmem:[%s1057 + $0x1c] sm:$0xf]
      %v1066 = vld [vmem:[%s1057 + $0x20] sm:$0x1]
      %v1067 = vld [vmem:[%s1057 + $0x24] sm:$0xf]
      %v1068 = vld [vmem:[%s1057 + $0x28] sm:$0xf]
      %v1069 = vld [vmem:[%s1057 + $0x2c] sm:$0x1]
      %v1070 = vld [vmem:[%s1057 + $0x30] sm:$0xf]
      %v1071 = vld [vmem:[%s1057 + $0x34] sm:$0xf]
      %v1072 = vld [vmem:[%s1057 + $0x38] sm:$0x1]
      %v1073 = vld [vmem:[%s1057 + $0x3c] sm:$0xf]
      %v1074 = vld [vmem:[%s1057 + $0x40] sm:$0xf]
      %v1075 = vld [vmem:[%s1057 + $0x44] sm:$0x1]
      %v1076 = vld [vmem:[%s1057 + $0x48] sm:$0xf]
      %v1077 = vld [vmem:[%s1057 + $0x4c] sm:$0xf]
      %v1078 = vld [vmem:[%s1057 + $0x50] sm:$0x1]
      %v1079 = vld [vmem:[%s1057 + $0x54] sm:$0xf]
      %v1080 = vld [vmem:[%s1057 + $0x58] sm:$0xf]
      %v1081 = vld [vmem:[%s1057 + $0x5c] sm:$0x1]
      %v1082 = vld [vmem:[%s1057 + $0x60] sm:$0xf]
      %v1083 = vld [vmem:[%s1057 + $0x64] sm:$0xf]
      %v1084 = vld [vmem:[%s1057 + $0x68] sm:$0x1]
      %v1085 = vld [vmem:[%s1057 + $0x6c] sm:$0xf]
      %v1086 = vld [vmem:[%s1057 + $0x70] sm:$0xf]
      %v1087 = vld [vmem:[%s1057 + $0x74] sm:$0x1]
      %v1088 = vld [vmem:[%s1057 + $0x78] sm:$0xf]
      %v1089 = vld [vmem:[%s1057 + $0x7c] sm:$0xf]
      %v1090 = vld [vmem:[%s1057 + $0x80] sm:$0x1]
      %v1091 = vld [vmem:[%s1057 + $0x84] sm:$0xf]
      %v1092 = vld [vmem:[%s1057 + $0x88] sm:$0xf]
      %v1093 = vld [vmem:[%s1057 + $0x8c] sm:$0x1]
      %v1094 = vld [vmem:[%s1057 + $0x90] sm:$0xf]
      %v1095 = vld [vmem:[%s1057 + $0x94] sm:$0xf]
      %v1096 = vld [vmem:[%s1057 + $0x98] sm:$0x1]
      %v1097 = vld [vmem:[%s1057 + $0x9c] sm:$0xf]
      %v1098 = vld [vmem:[%s1057 + $0xa0] sm:$0xf]
      %v1099 = vld [vmem:[%s1057 + $0xa4] sm:$0x1]
      %v1100 = vld [vmem:[%s1057 + $0xa8] sm:$0xf]
      %v1101 = vld [vmem:[%s1057 + $0xac] sm:$0xf]
      %v1102 = vld [vmem:[%s1057 + $0xb0] sm:$0x1]
      %v1103 = vld [vmem:[%s1057 + $0xb4] sm:$0xf]
      %v1104 = vld [vmem:[%s1057 + $0xb8] sm:$0xf]
      %v1105 = vld [vmem:[%s1057 + $0xbc] sm:$0x1]
      %1154 = vrot.lane.b32.xlu0 %v1058, 4
      %v1155 = vpop.permute.xlu0 %1154
      %1156 = vrot.lane.b32.xlu0 %v1059, 4
      %v1157 = vpop.permute.xlu0 %1156
      %1158 = vrot.lane.b32.xlu0 %v1060, 4
      %v1159 = vpop.permute.xlu0 %1158
      %1160 = vrot.lane.b32.xlu0 %v1061, 4
      %v1161 = vpop.permute.xlu0 %1160
      %1162 = vrot.lane.b32.xlu0 %v1062, 4
      %v1163 = vpop.permute.xlu0 %1162
      %1164 = vrot.lane.b32.xlu0 %v1063, 4
      %v1165 = vpop.permute.xlu0 %1164
      %1166 = vrot.lane.b32.xlu0 %v1064, 4
      %v1167 = vpop.permute.xlu0 %1166
      %1168 = vrot.lane.b32.xlu0 %v1065, 4
      %v1169 = vpop.permute.xlu0 %1168
      %1170 = vrot.lane.b32.xlu0 %v1066, 4
      %v1171 = vpop.permute.xlu0 %1170
      %1172 = vrot.lane.b32.xlu0 %v1067, 4
      %v1173 = vpop.permute.xlu0 %1172
      %1174 = vrot.lane.b32.xlu0 %v1068, 4
      %v1175 = vpop.permute.xlu0 %1174
      %1176 = vrot.lane.b32.xlu0 %v1069, 4
      %v1177 = vpop.permute.xlu0 %1176
      %1178 = vrot.lane.b32.xlu0 %v1070, 4
      %v1179 = vpop.permute.xlu0 %1178
      %1180 = vrot.lane.b32.xlu0 %v1071, 4
      %v1181 = vpop.permute.xlu0 %1180
      %1182 = vrot.lane.b32.xlu0 %v1072, 4
      %v1183 = vpop.permute.xlu0 %1182
      %1184 = vrot.lane.b32.xlu0 %v1073, 4
      %v1185 = vpop.permute.xlu0 %1184
      %1186 = vrot.lane.b32.xlu0 %v1074, 4
      %v1187 = vpop.permute.xlu0 %1186
      %1188 = vrot.lane.b32.xlu0 %v1075, 4
      %v1189 = vpop.permute.xlu0 %1188
      %1190 = vrot.lane.b32.xlu0 %v1076, 4
      %v1191 = vpop.permute.xlu0 %1190
      %1192 = vrot.lane.b32.xlu0 %v1077, 4
      %v1193 = vpop.permute.xlu0 %1192
      %1194 = vrot.lane.b32.xlu0 %v1078, 4
      %v1195 = vpop.permute.xlu0 %1194
      %1196 = vrot.lane.b32.xlu0 %v1079, 4
      %v1197 = vpop.permute.xlu0 %1196
      %1198 = vrot.lane.b32.xlu0 %v1080, 4
      %v1199 = vpop.permute.xlu0 %1198
      %1200 = vrot.lane.b32.xlu0 %v1081, 4
      %v1201 = vpop.permute.xlu0 %1200
      %1202 = vrot.lane.b32.xlu0 %v1082, 4
      %v1203 = vpop.permute.xlu0 %1202
      %1204 = vrot.lane.b32.xlu0 %v1083, 4
      %v1205 = vpop.permute.xlu0 %1204
      %1206 = vrot.lane.b32.xlu0 %v1084, 4
      %v1207 = vpop.permute.xlu0 %1206
      %1208 = vrot.lane.b32.xlu0 %v1085, 4
      %v1209 = vpop.permute.xlu0 %1208
      %1210 = vrot.lane.b32.xlu0 %v1086, 4
      %v1211 = vpop.permute.xlu0 %1210
      %1212 = vrot.lane.b32.xlu0 %v1087, 4
      %v1213 = vpop.permute.xlu0 %1212
      %1214 = vrot.lane.b32.xlu0 %v1088, 4
      %v1215 = vpop.permute.xlu0 %1214
      %1216 = vrot.lane.b32.xlu0 %v1089, 4
      %v1217 = vpop.permute.xlu0 %1216
      %1218 = vrot.lane.b32.xlu0 %v1090, 4
      %v1219 = vpop.permute.xlu0 %1218
      %1220 = vrot.lane.b32.xlu0 %v1091, 4
      %v1221 = vpop.permute.xlu0 %1220
      %1222 = vrot.lane.b32.xlu0 %v1092, 4
      %v1223 = vpop.permute.xlu0 %1222
      %1224 = vrot.lane.b32.xlu0 %v1093, 4
      %v1225 = vpop.permute.xlu0 %1224
      %1226 = vrot.lane.b32.xlu0 %v1094, 4
      %v1227 = vpop.permute.xlu0 %1226
      %1228 = vrot.lane.b32.xlu0 %v1095, 4
      %v1229 = vpop.permute.xlu0 %1228
      %1230 = vrot.lane.b32.xlu0 %v1096, 4
      %v1231 = vpop.permute.xlu0 %1230
      %1232 = vrot.lane.b32.xlu0 %v1097, 4
      %v1233 = vpop.permute.xlu0 %1232
      %1234 = vrot.lane.b32.xlu0 %v1098, 4
      %v1235 = vpop.permute.xlu0 %1234
      %1236 = vrot.lane.b32.xlu0 %v1099, 4
      %v1237 = vpop.permute.xlu0 %1236
      %1238 = vrot.lane.b32.xlu0 %v1100, 4
      %v1239 = vpop.permute.xlu0 %1238
      %1240 = vrot.lane.b32.xlu0 %v1101, 4
      %v1241 = vpop.permute.xlu0 %1240
      %1242 = vrot.lane.b32.xlu0 %v1102, 4
      %v1243 = vpop.permute.xlu0 %1242
      %1244 = vrot.lane.b32.xlu0 %v1103, 4
      %v1245 = vpop.permute.xlu0 %1244
      %1246 = vrot.lane.b32.xlu0 %v1104, 4
      %v1247 = vpop.permute.xlu0 %1246
      %1248 = vrot.lane.b32.xlu0 %v1105, 4
      %v1249 = vpop.permute.xlu0 %1248
      %vm1298 = vcmask 60448
      %1299 = vst.msk [vmem:[#allocation3] sm:$0xf] %vm1298, %v1155
      %1300 = vst.msk [vmem:[#allocation3 + $0x4] sm:$0xf] %vm1298, %v1157
      %vm1301 = vcmask 57376
      %1302 = vst.msk [vmem:[#allocation3 + $0x8] sm:$0x1] %vm1301, %v1159
      %1303 = vst.msk [vmem:[#allocation3 + $0xc] sm:$0xf] %vm1298, %v1161
      %1304 = vst.msk [vmem:[#allocation3 + $0x10] sm:$0xf] %vm1298, %v1163
      %1305 = vst.msk [vmem:[#allocation3 + $0x14] sm:$0x1] %vm1301, %v1165
      %1306 = vst.msk [vmem:[#allocation3 + $0x18] sm:$0xf] %vm1298, %v1167
      %1307 = vst.msk [vmem:[#allocation3 + $0x1c] sm:$0xf] %vm1298, %v1169
      %1308 = vst.msk [vmem:[#allocation3 + $0x20] sm:$0x1] %vm1301, %v1171
      %1309 = vst.msk [vmem:[#allocation3 + $0x24] sm:$0xf] %vm1298, %v1173
      %1310 = vst.msk [vmem:[#allocation3 + $0x28] sm:$0xf] %vm1298, %v1175
      %1311 = vst.msk [vmem:[#allocation3 + $0x2c] sm:$0x1] %vm1301, %v1177
      %1312 = vst.msk [vmem:[#allocation3 + $0x30] sm:$0xf] %vm1298, %v1179
      %1313 = vst.msk [vmem:[#allocation3 + $0x34] sm:$0xf] %vm1298, %v1181
      %1314 = vst.msk [vmem:[#allocation3 + $0x38] sm:$0x1] %vm1301, %v1183
      %1315 = vst.msk [vmem:[#allocation3 + $0x3c] sm:$0xf] %vm1298, %v1185
      %1316 = vst.msk [vmem:[#allocation3 + $0x40] sm:$0xf] %vm1298, %v1187
      %1317 = vst.msk [vmem:[#allocation3 + $0x44] sm:$0x1] %vm1301, %v1189
      %1318 = vst.msk [vmem:[#allocation3 + $0x48] sm:$0xf] %vm1298, %v1191
      %1319 = vst.msk [vmem:[#allocation3 + $0x4c] sm:$0xf] %vm1298, %v1193
      %1320 = vst.msk [vmem:[#allocation3 + $0x50] sm:$0x1] %vm1301, %v1195
      %1321 = vst.msk [vmem:[#allocation3 + $0x54] sm:$0xf] %vm1298, %v1197
      %1322 = vst.msk [vmem:[#allocation3 + $0x58] sm:$0xf] %vm1298, %v1199
      %1323 = vst.msk [vmem:[#allocation3 + $0x5c] sm:$0x1] %vm1301, %v1201
      %1324 = vst.msk [vmem:[#allocation3 + $0x60] sm:$0xf] %vm1298, %v1203
      %1325 = vst.msk [vmem:[#allocation3 + $0x64] sm:$0xf] %vm1298, %v1205
      %1326 = vst.msk [vmem:[#allocation3 + $0x68] sm:$0x1] %vm1301, %v1207
      %1327 = vst.msk [vmem:[#allocation3 + $0x6c] sm:$0xf] %vm1298, %v1209
      %1328 = vst.msk [vmem:[#allocation3 + $0x70] sm:$0xf] %vm1298, %v1211
      %1329 = vst.msk [vmem:[#allocation3 + $0x74] sm:$0x1] %vm1301, %v1213
      %1330 = vst.msk [vmem:[#allocation3 + $0x78] sm:$0xf] %vm1298, %v1215
      %1331 = vst.msk [vmem:[#allocation3 + $0x7c] sm:$0xf] %vm1298, %v1217
      %1332 = vst.msk [vmem:[#allocation3 + $0x80] sm:$0x1] %vm1301, %v1219
      %1333 = vst.msk [vmem:[#allocation3 + $0x84] sm:$0xf] %vm1298, %v1221
      %1334 = vst.msk [vmem:[#allocation3 + $0x88] sm:$0xf] %vm1298, %v1223
      %1335 = vst.msk [vmem:[#allocation3 + $0x8c] sm:$0x1] %vm1301, %v1225
      %1336 = vst.msk [vmem:[#allocation3 + $0x90] sm:$0xf] %vm1298, %v1227
      %1337 = vst.msk [vmem:[#allocation3 + $0x94] sm:$0xf] %vm1298, %v1229
      %1338 = vst.msk [vmem:[#allocation3 + $0x98] sm:$0x1] %vm1301, %v1231
      %1339 = vst.msk [vmem:[#allocation3 + $0x9c] sm:$0xf] %vm1298, %v1233
      %1340 = vst.msk [vmem:[#allocation3 + $0xa0] sm:$0xf] %vm1298, %v1235
      %1341 = vst.msk [vmem:[#allocation3 + $0xa4] sm:$0x1] %vm1301, %v1237
      %1342 = vst.msk [vmem:[#allocation3 + $0xa8] sm:$0xf] %vm1298, %v1239
      %1343 = vst.msk [vmem:[#allocation3 + $0xac] sm:$0xf] %vm1298, %v1241
      %1344 = vst.msk [vmem:[#allocation3 + $0xb0] sm:$0x1] %vm1301, %v1243
      %1345 = vst.msk [vmem:[#allocation3 + $0xb4] sm:$0xf] %vm1298, %v1245
      %1346 = vst.msk [vmem:[#allocation3 + $0xb8] sm:$0xf] %vm1298, %v1247
      %1347 = vst.msk [vmem:[#allocation3 + $0xbc] sm:$0x1] %vm1301, %v1249
      %s1348 = scalar_lea.vmem [#allocation2], 24
      %v1349 = vld [vmem:[%s1348] sm:$0xf]
      %v1350 = vld [vmem:[%s1348 + $0x4] sm:$0xf]
      %v1351 = vld [vmem:[%s1348 + $0x8] sm:$0x1]
      %v1352 = vld [vmem:[%s1348 + $0xc] sm:$0xf]
      %v1353 = vld [vmem:[%s1348 + $0x10] sm:$0xf]
      %v1354 = vld [vmem:[%s1348 + $0x14] sm:$0x1]
      %v1355 = vld [vmem:[%s1348 + $0x18] sm:$0xf]
      %v1356 = vld [vmem:[%s1348 + $0x1c] sm:$0xf]
      %v1357 = vld [vmem:[%s1348 + $0x20] sm:$0x1]
      %v1358 = vld [vmem:[%s1348 + $0x24] sm:$0xf]
      %v1359 = vld [vmem:[%s1348 + $0x28] sm:$0xf]
      %v1360 = vld [vmem:[%s1348 + $0x2c] sm:$0x1]
      %v1361 = vld [vmem:[%s1348 + $0x30] sm:$0xf]
      %v1362 = vld [vmem:[%s1348 + $0x34] sm:$0xf]
      %v1363 = vld [vmem:[%s1348 + $0x38] sm:$0x1]
      %v1364 = vld [vmem:[%s1348 + $0x3c] sm:$0xf]
      %v1365 = vld [vmem:[%s1348 + $0x40] sm:$0xf]
      %v1366 = vld [vmem:[%s1348 + $0x44] sm:$0x1]
      %v1367 = vld [vmem:[%s1348 + $0x48] sm:$0xf]
      %v1368 = vld [vmem:[%s1348 + $0x4c] sm:$0xf]
      %v1369 = vld [vmem:[%s1348 + $0x50] sm:$0x1]
      %v1370 = vld [vmem:[%s1348 + $0x54] sm:$0xf]
      %v1371 = vld [vmem:[%s1348 + $0x58] sm:$0xf]
      %v1372 = vld [vmem:[%s1348 + $0x5c] sm:$0x1]
      %v1373 = vld [vmem:[%s1348 + $0x60] sm:$0xf]
      %v1374 = vld [vmem:[%s1348 + $0x64] sm:$0xf]
      %v1375 = vld [vmem:[%s1348 + $0x68] sm:$0x1]
      %v1376 = vld [vmem:[%s1348 + $0x6c] sm:$0xf]
      %v1377 = vld [vmem:[%s1348 + $0x70] sm:$0xf]
      %v1378 = vld [vmem:[%s1348 + $0x74] sm:$0x1]
      %v1379 = vld [vmem:[%s1348 + $0x78] sm:$0xf]
      %v1380 = vld [vmem:[%s1348 + $0x7c] sm:$0xf]
      %v1381 = vld [vmem:[%s1348 + $0x80] sm:$0x1]
      %v1382 = vld [vmem:[%s1348 + $0x84] sm:$0xf]
      %v1383 = vld [vmem:[%s1348 + $0x88] sm:$0xf]
      %v1384 = vld [vmem:[%s1348 + $0x8c] sm:$0x1]
      %v1385 = vld [vmem:[%s1348 + $0x90] sm:$0xf]
      %v1386 = vld [vmem:[%s1348 + $0x94] sm:$0xf]
      %v1387 = vld [vmem:[%s1348 + $0x98] sm:$0x1]
      %v1388 = vld [vmem:[%s1348 + $0x9c] sm:$0xf]
      %v1389 = vld [vmem:[%s1348 + $0xa0] sm:$0xf]
      %v1390 = vld [vmem:[%s1348 + $0xa4] sm:$0x1]
      %v1391 = vld [vmem:[%s1348 + $0xa8] sm:$0xf]
      %v1392 = vld [vmem:[%s1348 + $0xac] sm:$0xf]
      %v1393 = vld [vmem:[%s1348 + $0xb0] sm:$0x1]
      %v1394 = vld [vmem:[%s1348 + $0xb4] sm:$0xf]
      %v1395 = vld [vmem:[%s1348 + $0xb8] sm:$0xf]
      %v1396 = vld [vmem:[%s1348 + $0xbc] sm:$0x1]
      %1445 = vrot.lane.b32.xlu0 %v1349, 8
      %v1446 = vpop.permute.xlu0 %1445
      %1447 = vrot.lane.b32.xlu0 %v1350, 8
      %v1448 = vpop.permute.xlu0 %1447
      %1449 = vrot.lane.b32.xlu0 %v1351, 8
      %v1450 = vpop.permute.xlu0 %1449
      %1451 = vrot.lane.b32.xlu0 %v1352, 8
      %v1452 = vpop.permute.xlu0 %1451
      %1453 = vrot.lane.b32.xlu0 %v1353, 8
      %v1454 = vpop.permute.xlu0 %1453
      %1455 = vrot.lane.b32.xlu0 %v1354, 8
      %v1456 = vpop.permute.xlu0 %1455
      %1457 = vrot.lane.b32.xlu0 %v1355, 8
      %v1458 = vpop.permute.xlu0 %1457
      %1459 = vrot.lane.b32.xlu0 %v1356, 8
      %v1460 = vpop.permute.xlu0 %1459
      %1461 = vrot.lane.b32.xlu0 %v1357, 8
      %v1462 = vpop.permute.xlu0 %1461
      %1463 = vrot.lane.b32.xlu0 %v1358, 8
      %v1464 = vpop.permute.xlu0 %1463
      %1465 = vrot.lane.b32.xlu0 %v1359, 8
      %v1466 = vpop.permute.xlu0 %1465
      %1467 = vrot.lane.b32.xlu0 %v1360, 8
      %v1468 = vpop.permute.xlu0 %1467
      %1469 = vrot.lane.b32.xlu0 %v1361, 8
      %v1470 = vpop.permute.xlu0 %1469
      %1471 = vrot.lane.b32.xlu0 %v1362, 8
      %v1472 = vpop.permute.xlu0 %1471
      %1473 = vrot.lane.b32.xlu0 %v1363, 8
      %v1474 = vpop.permute.xlu0 %1473
      %1475 = vrot.lane.b32.xlu0 %v1364, 8
      %v1476 = vpop.permute.xlu0 %1475
      %1477 = vrot.lane.b32.xlu0 %v1365, 8
      %v1478 = vpop.permute.xlu0 %1477
      %1479 = vrot.lane.b32.xlu0 %v1366, 8
      %v1480 = vpop.permute.xlu0 %1479
      %1481 = vrot.lane.b32.xlu0 %v1367, 8
      %v1482 = vpop.permute.xlu0 %1481
      %1483 = vrot.lane.b32.xlu0 %v1368, 8
      %v1484 = vpop.permute.xlu0 %1483
      %1485 = vrot.lane.b32.xlu0 %v1369, 8
      %v1486 = vpop.permute.xlu0 %1485
      %1487 = vrot.lane.b32.xlu0 %v1370, 8
      %v1488 = vpop.permute.xlu0 %1487
      %1489 = vrot.lane.b32.xlu0 %v1371, 8
      %v1490 = vpop.permute.xlu0 %1489
      %1491 = vrot.lane.b32.xlu0 %v1372, 8
      %v1492 = vpop.permute.xlu0 %1491
      %1493 = vrot.lane.b32.xlu0 %v1373, 8
      %v1494 = vpop.permute.xlu0 %1493
      %1495 = vrot.lane.b32.xlu0 %v1374, 8
      %v1496 = vpop.permute.xlu0 %1495
      %1497 = vrot.lane.b32.xlu0 %v1375, 8
      %v1498 = vpop.permute.xlu0 %1497
      %1499 = vrot.lane.b32.xlu0 %v1376, 8
      %v1500 = vpop.permute.xlu0 %1499
      %1501 = vrot.lane.b32.xlu0 %v1377, 8
      %v1502 = vpop.permute.xlu0 %1501
      %1503 = vrot.lane.b32.xlu0 %v1378, 8
      %v1504 = vpop.permute.xlu0 %1503
      %1505 = vrot.lane.b32.xlu0 %v1379, 8
      %v1506 = vpop.permute.xlu0 %1505
      %1507 = vrot.lane.b32.xlu0 %v1380, 8
      %v1508 = vpop.permute.xlu0 %1507
      %1509 = vrot.lane.b32.xlu0 %v1381, 8
      %v1510 = vpop.permute.xlu0 %1509
      %1511 = vrot.lane.b32.xlu0 %v1382, 8
      %v1512 = vpop.permute.xlu0 %1511
      %1513 = vrot.lane.b32.xlu0 %v1383, 8
      %v1514 = vpop.permute.xlu0 %1513
      %1515 = vrot.lane.b32.xlu0 %v1384, 8
      %v1516 = vpop.permute.xlu0 %1515
      %1517 = vrot.lane.b32.xlu0 %v1385, 8
      %v1518 = vpop.permute.xlu0 %1517
      %1519 = vrot.lane.b32.xlu0 %v1386, 8
      %v1520 = vpop.permute.xlu0 %1519
      %1521 = vrot.lane.b32.xlu0 %v1387, 8
      %v1522 = vpop.permute.xlu0 %1521
      %1523 = vrot.lane.b32.xlu0 %v1388, 8
      %v1524 = vpop.permute.xlu0 %1523
      %1525 = vrot.lane.b32.xlu0 %v1389, 8
      %v1526 = vpop.permute.xlu0 %1525
      %1527 = vrot.lane.b32.xlu0 %v1390, 8
      %v1528 = vpop.permute.xlu0 %1527
      %1529 = vrot.lane.b32.xlu0 %v1391, 8
      %v1530 = vpop.permute.xlu0 %1529
      %1531 = vrot.lane.b32.xlu0 %v1392, 8
      %v1532 = vpop.permute.xlu0 %1531
      %1533 = vrot.lane.b32.xlu0 %v1393, 8
      %v1534 = vpop.permute.xlu0 %1533
      %1535 = vrot.lane.b32.xlu0 %v1394, 8
      %v1536 = vpop.permute.xlu0 %1535
      %1537 = vrot.lane.b32.xlu0 %v1395, 8
      %v1538 = vpop.permute.xlu0 %1537
      %1539 = vrot.lane.b32.xlu0 %v1396, 8
      %v1540 = vpop.permute.xlu0 %1539
      %vm1589 = vcmask 93248
      %1590 = vst.msk [vmem:[#allocation3] sm:$0xf] %vm1589, %v1446
      %1591 = vst.msk [vmem:[#allocation3 + $0x4] sm:$0xf] %vm1589, %v1448
      %vm1592 = vcmask 90176
      %1593 = vst.msk [vmem:[#allocation3 + $0x8] sm:$0x1] %vm1592, %v1450
      %1594 = vst.msk [vmem:[#allocation3 + $0xc] sm:$0xf] %vm1589, %v1452
      %1595 = vst.msk [vmem:[#allocation3 + $0x10] sm:$0xf] %vm1589, %v1454
      %1596 = vst.msk [vmem:[#allocation3 + $0x14] sm:$0x1] %vm1592, %v1456
      %1597 = vst.msk [vmem:[#allocation3 + $0x18] sm:$0xf] %vm1589, %v1458
      %1598 = vst.msk [vmem:[#allocation3 + $0x1c] sm:$0xf] %vm1589, %v1460
      %1599 = vst.msk [vmem:[#allocation3 + $0x20] sm:$0x1] %vm1592, %v1462
      %1600 = vst.msk [vmem:[#allocation3 + $0x24] sm:$0xf] %vm1589, %v1464
      %1601 = vst.msk [vmem:[#allocation3 + $0x28] sm:$0xf] %vm1589, %v1466
      %1602 = vst.msk [vmem:[#allocation3 + $0x2c] sm:$0x1] %vm1592, %v1468
      %1603 = vst.msk [vmem:[#allocation3 + $0x30] sm:$0xf] %vm1589, %v1470
      %1604 = vst.msk [vmem:[#allocation3 + $0x34] sm:$0xf] %vm1589, %v1472
      %1605 = vst.msk [vmem:[#allocation3 + $0x38] sm:$0x1] %vm1592, %v1474
      %1606 = vst.msk [vmem:[#allocation3 + $0x3c] sm:$0xf] %vm1589, %v1476
      %1607 = vst.msk [vmem:[#allocation3 + $0x40] sm:$0xf] %vm1589, %v1478
      %1608 = vst.msk [vmem:[#allocation3 + $0x44] sm:$0x1] %vm1592, %v1480
      %1609 = vst.msk [vmem:[#allocation3 + $0x48] sm:$0xf] %vm1589, %v1482
      %1610 = vst.msk [vmem:[#allocation3 + $0x4c] sm:$0xf] %vm1589, %v1484
      %1611 = vst.msk [vmem:[#allocation3 + $0x50] sm:$0x1] %vm1592, %v1486
      %1612 = vst.msk [vmem:[#allocation3 + $0x54] sm:$0xf] %vm1589, %v1488
      %1613 = vst.msk [vmem:[#allocation3 + $0x58] sm:$0xf] %vm1589, %v1490
      %1614 = vst.msk [vmem:[#allocation3 + $0x5c] sm:$0x1] %vm1592, %v1492
      %1615 = vst.msk [vmem:[#allocation3 + $0x60] sm:$0xf] %vm1589, %v1494
      %1616 = vst.msk [vmem:[#allocation3 + $0x64] sm:$0xf] %vm1589, %v1496
      %1617 = vst.msk [vmem:[#allocation3 + $0x68] sm:$0x1] %vm1592, %v1498
      %1618 = vst.msk [vmem:[#allocation3 + $0x6c] sm:$0xf] %vm1589, %v1500
      %1619 = vst.msk [vmem:[#allocation3 + $0x70] sm:$0xf] %vm1589, %v1502
      %1620 = vst.msk [vmem:[#allocation3 + $0x74] sm:$0x1] %vm1592, %v1504
      %1621 = vst.msk [vmem:[#allocation3 + $0x78] sm:$0xf] %vm1589, %v1506
      %1622 = vst.msk [vmem:[#allocation3 + $0x7c] sm:$0xf] %vm1589, %v1508
      %1623 = vst.msk [vmem:[#allocation3 + $0x80] sm:$0x1] %vm1592, %v1510
      %1624 = vst.msk [vmem:[#allocation3 + $0x84] sm:$0xf] %vm1589, %v1512
      %1625 = vst.msk [vmem:[#allocation3 + $0x88] sm:$0xf] %vm1589, %v1514
      %1626 = vst.msk [vmem:[#allocation3 + $0x8c] sm:$0x1] %vm1592, %v1516
      %1627 = vst.msk [vmem:[#allocation3 + $0x90] sm:$0xf] %vm1589, %v1518
      %1628 = vst.msk [vmem:[#allocation3 + $0x94] sm:$0xf] %vm1589, %v1520
      %1629 = vst.msk [vmem:[#allocation3 + $0x98] sm:$0x1] %vm1592, %v1522
      %1630 = vst.msk [vmem:[#allocation3 + $0x9c] sm:$0xf] %vm1589, %v1524
      %1631 = vst.msk [vmem:[#allocation3 + $0xa0] sm:$0xf] %vm1589, %v1526
      %1632 = vst.msk [vmem:[#allocation3 + $0xa4] sm:$0x1] %vm1592, %v1528
      %1633 = vst.msk [vmem:[#allocation3 + $0xa8] sm:$0xf] %vm1589, %v1530
      %1634 = vst.msk [vmem:[#allocation3 + $0xac] sm:$0xf] %vm1589, %v1532
      %1635 = vst.msk [vmem:[#allocation3 + $0xb0] sm:$0x1] %vm1592, %v1534
      %1636 = vst.msk [vmem:[#allocation3 + $0xb4] sm:$0xf] %vm1589, %v1536
      %1637 = vst.msk [vmem:[#allocation3 + $0xb8] sm:$0xf] %vm1589, %v1538
      %1638 = vst.msk [vmem:[#allocation3 + $0xbc] sm:$0x1] %vm1592, %v1540
      %v1639 = vld [vmem:[#allocation3] sm:$0xf]
      %v1640 = vld [vmem:[#allocation3 + $0x4] sm:$0xf]
      %v1641 = vld [vmem:[#allocation3 + $0xc] sm:$0xf]
      %v1642 = vld [vmem:[#allocation3 + $0x10] sm:$0xf]
      %v1643 = vld [vmem:[#allocation3 + $0x18] sm:$0xf]
      %v1644 = vld [vmem:[#allocation3 + $0x1c] sm:$0xf]
      %v1645 = vld [vmem:[#allocation3 + $0x24] sm:$0xf]
      %v1646 = vld [vmem:[#allocation3 + $0x28] sm:$0xf]
      %v1647 = vld [vmem:[#allocation3 + $0x30] sm:$0xf]
      %v1648 = vld [vmem:[#allocation3 + $0x34] sm:$0xf]
      %v1649 = vld [vmem:[#allocation3 + $0x3c] sm:$0xf]
      %v1650 = vld [vmem:[#allocation3 + $0x40] sm:$0xf]
      %v1651 = vld [vmem:[#allocation3 + $0x48] sm:$0xf]
      %v1652 = vld [vmem:[#allocation3 + $0x4c] sm:$0xf]
      %v1653 = vld [vmem:[#allocation3 + $0x54] sm:$0xf]
      %v1654 = vld [vmem:[#allocation3 + $0x58] sm:$0xf]
      %v1655 = vld [vmem:[#allocation3 + $0x60] sm:$0xf]
      %v1656 = vld [vmem:[#allocation3 + $0x64] sm:$0xf]
      %v1657 = vld [vmem:[#allocation3 + $0x6c] sm:$0xf]
      %v1658 = vld [vmem:[#allocation3 + $0x70] sm:$0xf]
      %v1659 = vld [vmem:[#allocation3 + $0x78] sm:$0xf]
      %v1660 = vld [vmem:[#allocation3 + $0x7c] sm:$0xf]
      %v1661 = vld [vmem:[#allocation3 + $0x84] sm:$0xf]
      %v1662 = vld [vmem:[#allocation3 + $0x88] sm:$0xf]
      %v1663 = vld [vmem:[#allocation3 + $0x90] sm:$0xf]
      %v1664 = vld [vmem:[#allocation3 + $0x94] sm:$0xf]
      %v1665 = vld [vmem:[#allocation3 + $0x9c] sm:$0xf]
      %v1666 = vld [vmem:[#allocation3 + $0xa0] sm:$0xf]
      %v1667 = vld [vmem:[#allocation3 + $0xa8] sm:$0xf]
      %v1668 = vld [vmem:[#allocation3 + $0xac] sm:$0xf]
      %v1669 = vld [vmem:[#allocation3 + $0xb4] sm:$0xf]
      %v1670 = vld [vmem:[#allocation3 + $0xb8] sm:$0xf]
      %v1671 = vld [vmem:[%s1] sm:$0xf]
      %v1672 = vld [vmem:[%s1 + $0x4] sm:$0x3]
      %v1673 = vld [vmem:[#allocation3 + $0x8] sm:$0x1]
      %v1674 = vld [vmem:[#allocation3 + $0x14] sm:$0x1]
      %v1675 = vld [vmem:[#allocation3 + $0x20] sm:$0x1]
      %v1676 = vld [vmem:[#allocation3 + $0x2c] sm:$0x1]
      %v1677 = vld [vmem:[#allocation3 + $0x38] sm:$0x1]
      %v1678 = vld [vmem:[#allocation3 + $0x44] sm:$0x1]
      %v1679 = vld [vmem:[#allocation3 + $0x50] sm:$0x1]
      %v1680 = vld [vmem:[#allocation3 + $0x5c] sm:$0x1]
      %v1681 = vld [vmem:[#allocation3 + $0x68] sm:$0x1]
      %v1682 = vld [vmem:[#allocation3 + $0x74] sm:$0x1]
      %v1683 = vld [vmem:[#allocation3 + $0x80] sm:$0x1]
      %v1684 = vld [vmem:[#allocation3 + $0x8c] sm:$0x1]
      %v1685 = vld [vmem:[#allocation3 + $0x98] sm:$0x1]
      %v1686 = vld [vmem:[#allocation3 + $0xa4] sm:$0x1]
      %v1687 = vld [vmem:[#allocation3 + $0xb0] sm:$0x1]
      %v1688 = vld [vmem:[#allocation3 + $0xbc] sm:$0x1]
      %s1689 = scalar_lea.vmem %s1, 8
      %v1690 = vld [vmem:[%s1689] sm:$0xf]
      %v1691 = vld [vmem:[%s1689 + $0x4] sm:$0x3]
      %vm1692 = vsmask.f32 3328
      %vm1693 = vsmask.f32 7440
      %vm1694 = vmor %vm1692, %vm1693
      %v1696 = vshrl.u32 %v1639, 16
      %v1698 = vrot.slane %v1696, 4
      %v1699 = vshll.u32 %v1639, 16
      %v1701 = vrot.slane %v1699, 5
      %v1702 = vor.u32 %v1698, %v1701
      %v1703 = vrot.slane %v1702, 4
      %v1705 = vshll.u32 %v1640, 16
      %v1707 = vrot.slane %v1705, 5
      %v1708 = vsel %vm1694, %v1703, %v1707
      %v1709 = vshrl.u32 %v1640, 16
      %v1711 = vrot.slane %v1709, 4
      %v1712 = vor.u32 %v1711, %v1707
      %v1713 = vrot.slane %v1712, 4
      %v1715 = vshll.u32 %v1673, 16
      %v1717 = vrot.slane %v1715, 5
      %v1718 = vsel %vm1694, %v1713, %v1717
      %v1720 = vshrl.u32 %v1641, 16
      %v1722 = vrot.slane %v1720, 4
      %v1723 = vshll.u32 %v1641, 16
      %v1725 = vrot.slane %v1723, 5
      %v1726 = vor.u32 %v1722, %v1725
      %v1727 = vrot.slane %v1726, 4
      %v1729 = vshll.u32 %v1642, 16
      %v1731 = vrot.slane %v1729, 5
      %v1732 = vsel %vm1694, %v1727, %v1731
      %v1733 = vshrl.u32 %v1642, 16
      %v1735 = vrot.slane %v1733, 4
      %v1736 = vor.u32 %v1735, %v1731
      %v1737 = vrot.slane %v1736, 4
      %v1739 = vshll.u32 %v1674, 16
      %v1741 = vrot.slane %v1739, 5
      %v1742 = vsel %vm1694, %v1737, %v1741
      %v1744 = vshrl.u32 %v1643, 16
      %v1746 = vrot.slane %v1744, 4
      %v1747 = vshll.u32 %v1643, 16
      %v1749 = vrot.slane %v1747, 5
      %v1750 = vor.u32 %v1746, %v1749
      %v1751 = vrot.slane %v1750, 4
      %v1753 = vshll.u32 %v1644, 16
      %v1755 = vrot.slane %v1753, 5
      %v1756 = vsel %vm1694, %v1751, %v1755
      %v1757 = vshrl.u32 %v1644, 16
      %v1759 = vrot.slane %v1757, 4
      %v1760 = vor.u32 %v1759, %v1755
      %v1761 = vrot.slane %v1760, 4
      %v1763 = vshll.u32 %v1675, 16
      %v1765 = vrot.slane %v1763, 5
      %v1766 = vsel %vm1694, %v1761, %v1765
      %v1768 = vshrl.u32 %v1645, 16
      %v1770 = vrot.slane %v1768, 4
      %v1771 = vshll.u32 %v1645, 16
      %v1773 = vrot.slane %v1771, 5
      %v1774 = vor.u32 %v1770, %v1773
      %v1775 = vrot.slane %v1774, 4
      %v1777 = vshll.u32 %v1646, 16
      %v1779 = vrot.slane %v1777, 5
      %v1780 = vsel %vm1694, %v1775, %v1779
      %v1781 = vshrl.u32 %v1646, 16
      %v1783 = vrot.slane %v1781, 4
      %v1784 = vor.u32 %v1783, %v1779
      %v1785 = vrot.slane %v1784, 4
      %v1787 = vshll.u32 %v1676, 16
      %v1789 = vrot.slane %v1787, 5
      %v1790 = vsel %vm1694, %v1785, %v1789
      %v1792 = vshrl.u32 %v1647, 16
      %v1794 = vrot.slane %v1792, 4
      %v1795 = vshll.u32 %v1647, 16
      %v1797 = vrot.slane %v1795, 5
      %v1798 = vor.u32 %v1794, %v1797
      %v1799 = vrot.slane %v1798, 4
      %v1801 = vshll.u32 %v1648, 16
      %v1803 = vrot.slane %v1801, 5
      %v1804 = vsel %vm1694, %v1799, %v1803
      %v1805 = vshrl.u32 %v1648, 16
      %v1807 = vrot.slane %v1805, 4
      %v1808 = vor.u32 %v1807, %v1803
      %v1809 = vrot.slane %v1808, 4
      %v1811 = vshll.u32 %v1677, 16
      %v1813 = vrot.slane %v1811, 5
      %v1814 = vsel %vm1694, %v1809, %v1813
      %v1816 = vshrl.u32 %v1649, 16
      %v1818 = vrot.slane %v1816, 4
      %v1819 = vshll.u32 %v1649, 16
      %v1821 = vrot.slane %v1819, 5
      %v1822 = vor.u32 %v1818, %v1821
      %v1823 = vrot.slane %v1822, 4
      %v1825 = vshll.u32 %v1650, 16
      %v1827 = vrot.slane %v1825, 5
      %v1828 = vsel %vm1694, %v1823, %v1827
      %v1829 = vshrl.u32 %v1650, 16
      %v1831 = vrot.slane %v1829, 4
      %v1832 = vor.u32 %v1831, %v1827
      %v1833 = vrot.slane %v1832, 4
      %v1835 = vshll.u32 %v1678, 16
      %v1837 = vrot.slane %v1835, 5
      %v1838 = vsel %vm1694, %v1833, %v1837
      %v1840 = vshrl.u32 %v1651, 16
      %v1842 = vrot.slane %v1840, 4
      %v1843 = vshll.u32 %v1651, 16
      %v1845 = vrot.slane %v1843, 5
      %v1846 = vor.u32 %v1842, %v1845
      %v1847 = vrot.slane %v1846, 4
      %v1849 = vshll.u32 %v1652, 16
      %v1851 = vrot.slane %v1849, 5
      %v1852 = vsel %vm1694, %v1847, %v1851
      %v1853 = vshrl.u32 %v1652, 16
      %v1855 = vrot.slane %v1853, 4
      %v1856 = vor.u32 %v1855, %v1851
      %v1857 = vrot.slane %v1856, 4
      %v1859 = vshll.u32 %v1679, 16
      %v1861 = vrot.slane %v1859, 5
      %v1862 = vsel %vm1694, %v1857, %v1861
      %v1864 = vshrl.u32 %v1653, 16
      %v1866 = vrot.slane %v1864, 4
      %v1867 = vshll.u32 %v1653, 16
      %v1869 = vrot.slane %v1867, 5
      %v1870 = vor.u32 %v1866, %v1869
      %v1871 = vrot.slane %v1870, 4
      %v1873 = vshll.u32 %v1654, 16
      %v1875 = vrot.slane %v1873, 5
      %v1876 = vsel %vm1694, %v1871, %v1875
      %v1877 = vshrl.u32 %v1654, 16
      %v1879 = vrot.slane %v1877, 4
      %v1880 = vor.u32 %v1879, %v1875
      %v1881 = vrot.slane %v1880, 4
      %v1883 = vshll.u32 %v1680, 16
      %v1885 = vrot.slane %v1883, 5
      %v1886 = vsel %vm1694, %v1881, %v1885
      %v1888 = vshrl.u32 %v1655, 16
      %v1890 = vrot.slane %v1888, 4
      %v1891 = vshll.u32 %v1655, 16
      %v1893 = vrot.slane %v1891, 5
      %v1894 = vor.u32 %v1890, %v1893
      %v1895 = vrot.slane %v1894, 4
      %v1897 = vshll.u32 %v1656, 16
      %v1899 = vrot.slane %v1897, 5
      %v1900 = vsel %vm1694, %v1895, %v1899
      %v1901 = vshrl.u32 %v1656, 16
      %v1903 = vrot.slane %v1901, 4
      %v1904 = vor.u32 %v1903, %v1899
      %v1905 = vrot.slane %v1904, 4
      %v1907 = vshll.u32 %v1681, 16
      %v1909 = vrot.slane %v1907, 5
      %v1910 = vsel %vm1694, %v1905, %v1909
      %v1912 = vshrl.u32 %v1657, 16
      %v1914 = vrot.slane %v1912, 4
      %v1915 = vshll.u32 %v1657, 16
      %v1917 = vrot.slane %v1915, 5
      %v1918 = vor.u32 %v1914, %v1917
      %v1919 = vrot.slane %v1918, 4
      %v1921 = vshll.u32 %v1658, 16
      %v1923 = vrot.slane %v1921, 5
      %v1924 = vsel %vm1694, %v1919, %v1923
      %v1925 = vshrl.u32 %v1658, 16
      %v1927 = vrot.slane %v1925, 4
      %v1928 = vor.u32 %v1927, %v1923
      %v1929 = vrot.slane %v1928, 4
      %v1931 = vshll.u32 %v1682, 16
      %v1933 = vrot.slane %v1931, 5
      %v1934 = vsel %vm1694, %v1929, %v1933
      %v1936 = vshrl.u32 %v1659, 16
      %v1938 = vrot.slane %v1936, 4
      %v1939 = vshll.u32 %v1659, 16
      %v1941 = vrot.slane %v1939, 5
      %v1942 = vor.u32 %v1938, %v1941
      %v1943 = vrot.slane %v1942, 4
      %v1945 = vshll.u32 %v1660, 16
      %v1947 = vrot.slane %v1945, 5
      %v1948 = vsel %vm1694, %v1943, %v1947
      %v1949 = vshrl.u32 %v1660, 16
      %v1951 = vrot.slane %v1949, 4
      %v1952 = vor.u32 %v1951, %v1947
      %v1953 = vrot.slane %v1952, 4
      %v1955 = vshll.u32 %v1683, 16
      %v1957 = vrot.slane %v1955, 5
      %v1958 = vsel %vm1694, %v1953, %v1957
      %v1960 = vshrl.u32 %v1661, 16
      %v1962 = vrot.slane %v1960, 4
      %v1963 = vshll.u32 %v1661, 16
      %v1965 = vrot.slane %v1963, 5
      %v1966 = vor.u32 %v1962, %v1965
      %v1967 = vrot.slane %v1966, 4
      %v1969 = vshll.u32 %v1662, 16
      %v1971 = vrot.slane %v1969, 5
      %v1972 = vsel %vm1694, %v1967, %v1971
      %v1973 = vshrl.u32 %v1662, 16
      %v1975 = vrot.slane %v1973, 4
      %v1976 = vor.u32 %v1975, %v1971
      %v1977 = vrot.slane %v1976, 4
      %v1979 = vshll.u32 %v1684, 16
      %v1981 = vrot.slane %v1979, 5
      %v1982 = vsel %vm1694, %v1977, %v1981
      %v1984 = vshrl.u32 %v1663, 16
      %v1986 = vrot.slane %v1984, 4
      %v1987 = vshll.u32 %v1663, 16
      %v1989 = vrot.slane %v1987, 5
      %v1990 = vor.u32 %v1986, %v1989
      %v1991 = vrot.slane %v1990, 4
      %v1993 = vshll.u32 %v1664, 16
      %v1995 = vrot.slane %v1993, 5
      %v1996 = vsel %vm1694, %v1991, %v1995
      %v1997 = vshrl.u32 %v1664, 16
      %v1999 = vrot.slane %v1997, 4
      %v2000 = vor.u32 %v1999, %v1995
      %v2001 = vrot.slane %v2000, 4
      %v2003 = vshll.u32 %v1685, 16
      %v2005 = vrot.slane %v2003, 5
      %v2006 = vsel %vm1694, %v2001, %v2005
      %v2008 = vshrl.u32 %v1665, 16
      %v2010 = vrot.slane %v2008, 4
      %v2011 = vshll.u32 %v1665, 16
      %v2013 = vrot.slane %v2011, 5
      %v2014 = vor.u32 %v2010, %v2013
      %v2015 = vrot.slane %v2014, 4
      %v2017 = vshll.u32 %v1666, 16
      %v2019 = vrot.slane %v2017, 5
      %v2020 = vsel %vm1694, %v2015, %v2019
      %v2021 = vshrl.u32 %v1666, 16
      %v2023 = vrot.slane %v2021, 4
      %v2024 = vor.u32 %v2023, %v2019
      %v2025 = vrot.slane %v2024, 4
      %v2027 = vshll.u32 %v1686, 16
      %v2029 = vrot.slane %v2027, 5
      %v2030 = vsel %vm1694, %v2025, %v2029
      %v2032 = vshrl.u32 %v1667, 16
      %v2034 = vrot.slane %v2032, 4
      %v2035 = vshll.u32 %v1667, 16
      %v2037 = vrot.slane %v2035, 5
      %v2038 = vor.u32 %v2034, %v2037
      %v2039 = vrot.slane %v2038, 4
      %v2041 = vshll.u32 %v1668, 16
      %v2043 = vrot.slane %v2041, 5
      %v2044 = vsel %vm1694, %v2039, %v2043
      %v2045 = vshrl.u32 %v1668, 16
      %v2047 = vrot.slane %v2045, 4
      %v2048 = vor.u32 %v2047, %v2043
      %v2049 = vrot.slane %v2048, 4
      %v2051 = vshll.u32 %v1687, 16
      %v2053 = vrot.slane %v2051, 5
      %v2054 = vsel %vm1694, %v2049, %v2053
      %v2056 = vshrl.u32 %v1669, 16
      %v2058 = vrot.slane %v2056, 4
      %v2059 = vshll.u32 %v1669, 16
      %v2061 = vrot.slane %v2059, 5
      %v2062 = vor.u32 %v2058, %v2061
      %v2063 = vrot.slane %v2062, 4
      %v2065 = vshll.u32 %v1670, 16
      %v2067 = vrot.slane %v2065, 5
      %v2068 = vsel %vm1694, %v2063, %v2067
      %v2069 = vshrl.u32 %v1670, 16
      %v2071 = vrot.slane %v2069, 4
      %v2072 = vor.u32 %v2071, %v2067
      %v2073 = vrot.slane %v2072, 4
      %v2075 = vshll.u32 %v1688, 16
      %v2077 = vrot.slane %v2075, 5
      %v2078 = vsel %vm1694, %v2073, %v2077
      %v2079 = vunpack.c.l.b16 %v1708
      %v2080 = vunpack.c.l.b16 %v1718
      %v2081 = vunpack.c.l.b16 %v1732
      %v2082 = vunpack.c.l.b16 %v1742
      %v2083 = vunpack.c.l.b16 %v1756
      %v2084 = vunpack.c.l.b16 %v1766
      %v2085 = vunpack.c.l.b16 %v1780
      %v2086 = vunpack.c.l.b16 %v1790
      %v2087 = vunpack.c.l.b16 %v1804
      %v2088 = vunpack.c.l.b16 %v1814
      %v2089 = vunpack.c.l.b16 %v1828
      %v2090 = vunpack.c.l.b16 %v1838
      %v2091 = vunpack.c.l.b16 %v1852
      %v2092 = vunpack.c.l.b16 %v1862
      %v2093 = vunpack.c.l.b16 %v1876
      %v2094 = vunpack.c.l.b16 %v1886
      %v2095 = vunpack.c.l.b16 %v1900
      %v2096 = vunpack.c.l.b16 %v1910
      %v2097 = vunpack.c.l.b16 %v1924
      %v2098 = vunpack.c.l.b16 %v1934
      %v2099 = vunpack.c.l.b16 %v1948
      %v2100 = vunpack.c.l.b16 %v1958
      %v2101 = vunpack.c.l.b16 %v1972
      %v2102 = vunpack.c.l.b16 %v1982
      %v2103 = vunpack.c.l.b16 %v1996
      %v2104 = vunpack.c.l.b16 %v2006
      %v2105 = vunpack.c.l.b16 %v2020
      %v2106 = vunpack.c.l.b16 %v2030
      %v2107 = vunpack.c.l.b16 %v2044
      %v2108 = vunpack.c.l.b16 %v2054
      %v2109 = vunpack.c.l.b16 %v2068
      %v2110 = vunpack.c.l.b16 %v2078
      %v2111 = vpack.c.b16 %v2080, %v2079
      %v2112 = vpack.c.b16 %v2082, %v2081
      %v2113 = vpack.c.b16 %v2084, %v2083
      %v2114 = vpack.c.b16 %v2086, %v2085
      %v2115 = vpack.c.b16 %v2088, %v2087
      %v2116 = vpack.c.b16 %v2090, %v2089
      %v2117 = vpack.c.b16 %v2092, %v2091
      %v2118 = vpack.c.b16 %v2094, %v2093
      %v2119 = vpack.c.b16 %v2096, %v2095
      %v2120 = vpack.c.b16 %v2098, %v2097
      %v2121 = vpack.c.b16 %v2100, %v2099
      %v2122 = vpack.c.b16 %v2102, %v2101
      %v2123 = vpack.c.b16 %v2104, %v2103
      %v2124 = vpack.c.b16 %v2106, %v2105
      %v2125 = vpack.c.b16 %v2108, %v2107
      %v2126 = vpack.c.b16 %v2110, %v2109
      %v2129 = vunpack.c.l.b16 %v1690
      %v2130 = vunpack.c.l.b16 %v1691
      %v2131 = vpack.c.b16 %v2130, %v2129
      %vm2132 = vcmask 97280
      %v2134 = vsel %vm2132, %v2111, 0
      %v2137 = vsel %vm2132, %v2112, 0
      %v2140 = vsel %vm2132, %v2113, 0
      %v2143 = vsel %vm2132, %v2114, 0
      %v2146 = vsel %vm2132, %v2115, 0
      %v2149 = vsel %vm2132, %v2116, 0
      %v2152 = vsel %vm2132, %v2117, 0
      %v2155 = vsel %vm2132, %v2118, 0
      %v2158 = vsel %vm2132, %v2119, 0
      %v2161 = vsel %vm2132, %v2120, 0
      %v2164 = vsel %vm2132, %v2121, 0
      %v2167 = vsel %vm2132, %v2122, 0
      %v2170 = vsel %vm2132, %v2123, 0
      %v2173 = vsel %vm2132, %v2124, 0
      %v2176 = vsel %vm2132, %v2125, 0
      %v2179 = vsel %vm2132, %v2126, 0
      %vm2181 = vcmask 1045504
      %v2183 = vsel %vm2181, %v2131, 0
      %2185 = vmatprep.subr.bf16.mxu0 0
      %2186 = vmatpush1.bf16.msra.mxu0 %v2183
      %2187 = vmatprep.subr.bf16.mxu0 0
      %2188 = vmatpush1.bf16.msra.mxu0 0
      %2189 = vmatprep.subr.bf16.mxu0 0
      %2190 = vmatpush1.bf16.msra.mxu0 0
      %2191 = vmatprep.subr.bf16.mxu0 0
      %2192 = vmatpush1.bf16.msra.mxu0 0
      %2193 = vmatprep.subr.bf16.mxu0 0
      %2194 = vmatpush1.bf16.msra.mxu0 0
      %2195 = vmatprep.subr.bf16.mxu0 0
      %2196 = vmatpush1.bf16.msra.mxu0 0
      %2197 = vmatprep.subr.bf16.mxu0 0
      %2198 = vmatpush1.bf16.msra.mxu0 0
      %2199 = vmatprep.subr.bf16.mxu0 0
      %2200 = vmatpush1.bf16.msra.mxu0 0
      %2201 = vmatprep.subr.bf16.mxu0 0
      %2202 = vmatpush1.bf16.msra.mxu0 0
      %2203 = vmatprep.subr.bf16.mxu0 0
      %2204 = vmatpush1.bf16.msra.mxu0 0
      %2205 = vmatprep.subr.bf16.mxu0 0
      %2206 = vmatpush1.bf16.msra.mxu0 0
      %2207 = vmatprep.subr.bf16.mxu0 0
      %2208 = vmatpush1.bf16.msra.mxu0 0
      %2209 = vmatprep.subr.bf16.mxu0 0
      %2210 = vmatpush1.bf16.msra.mxu0 0
      %2211 = vmatprep.subr.bf16.mxu0 0
      %2212 = vmatpush1.bf16.msra.mxu0 0
      %2213 = vmatprep.subr.bf16.mxu0 0
      %2214 = vmatpush1.bf16.msra.mxu0 0
      %2215 = vmatprep.subr.bf16.mxu0 0
      %2216 = vmatpush1.bf16.msra.mxu0 0
      %2217 = vmatprep.mubr.bf16.mxu0 0
      %2218 = vmatmul.mubr.bf16.gmra.mrb[0].mxu0 %v2134
      %v2219 = vpop.f32.mrb[0].mxu0
      %v2220 = vadd.f32 0.0, %v2219
      %v2221 = vpop.f32.mrb[0].mxu0
      %v2222 = vpop.f32.mrb[0].mxu0
      %v2223 = vadd.f32 0.0, %v2222
      %v2224 = vpop.f32.mrb[0].mxu0
      %2225 = vmatprep.mubr.bf16.mxu0 0
      %2226 = vmatmul.mubr.bf16.gmra.mrb[0].mxu0 %v2137
      %v2227 = vpop.f32.mrb[0].mxu0
      %v2228 = vadd.f32 0.0, %v2227
      %v2229 = vpop.f32.mrb[0].mxu0
      %v2230 = vpop.f32.mrb[0].mxu0
      %v2231 = vadd.f32 0.0, %v2230
      %v2232 = vpop.f32.mrb[0].mxu0
      %2233 = vmatprep.mubr.bf16.mxu0 0
      %2234 = vmatmul.mubr.bf16.gmra.mrb[0].mxu0 %v2140
      %v2235 = vpop.f32.mrb[0].mxu0
      %v2236 = vadd.f32 0.0, %v2235
      %v2237 = vpop.f32.mrb[0].mxu0
      %v2238 = vpop.f32.mrb[0].mxu0
      %v2239 = vadd.f32 0.0, %v2238
      %v2240 = vpop.f32.mrb[0].mxu0
      %2241 = vmatprep.mubr.bf16.mxu0 0
      %2242 = vmatmul.mubr.bf16.gmra.mrb[0].mxu0 %v2143
      %v2243 = vpop.f32.mrb[0].mxu0
      %v2244 = vadd.f32 0.0, %v2243
      %v2245 = vpop.f32.mrb[0].mxu0
      %v2246 = vpop.f32.mrb[0].mxu0
      %v2247 = vadd.f32 0.0, %v2246
      %v2248 = vpop.f32.mrb[0].mxu0
      %2249 = vmatprep.mubr.bf16.mxu0 0
      %2250 = vmatmul.mubr.bf16.gmra.mrb[0].mxu0 %v2146
      %v2251 = vpop.f32.mrb[0].mxu0
      %v2252 = vadd.f32 0.0, %v2251
      %v2253 = vpop.f32.mrb[0].mxu0
      %v2254 = vpop.f32.mrb[0].mxu0
      %v2255 = vadd.f32 0.0, %v2254
      %v2256 = vpop.f32.mrb[0].mxu0
      %2257 = vmatprep.mubr.bf16.mxu0 0
      %2258 = vmatmul.mubr.bf16.gmra.mrb[0].mxu0 %v2149
      %v2259 = vpop.f32.mrb[0].mxu0
      %v2260 = vadd.f32 0.0, %v2259
      %v2261 = vpop.f32.mrb[0].mxu0
      %v2262 = vpop.f32.mrb[0].mxu0
      %v2263 = vadd.f32 0.0, %v2262
      %v2264 = vpop.f32.mrb[0].mxu0
      %2265 = vmatprep.mubr.bf16.mxu0 0
      %2266 = vmatmul.mubr.bf16.gmra.mrb[0].mxu0 %v2152
      %v2267 = vpop.f32.mrb[0].mxu0
      %v2268 = vadd.f32 0.0, %v2267
      %v2269 = vpop.f32.mrb[0].mxu0
      %v2270 = vpop.f32.mrb[0].mxu0
      %v2271 = vadd.f32 0.0, %v2270
      %v2272 = vpop.f32.mrb[0].mxu0
      %2273 = vmatprep.mubr.bf16.mxu0 0
      %2274 = vmatmul.mubr.bf16.gmra.mrb[0].mxu0 %v2155
      %v2275 = vpop.f32.mrb[0].mxu0
      %v2276 = vadd.f32 0.0, %v2275
      %v2277 = vpop.f32.mrb[0].mxu0
      %v2278 = vpop.f32.mrb[0].mxu0
      %v2279 = vadd.f32 0.0, %v2278
      %v2280 = vpop.f32.mrb[0].mxu0
      %2281 = vmatprep.mubr.bf16.mxu0 0
      %2282 = vmatmul.mubr.bf16.gmra.mrb[0].mxu0 %v2158
      %v2283 = vpop.f32.mrb[0].mxu0
      %v2284 = vadd.f32 0.0, %v2283
      %v2285 = vpop.f32.mrb[0].mxu0
      %v2286 = vpop.f32.mrb[0].mxu0
      %v2287 = vadd.f32 0.0, %v2286
      %v2288 = vpop.f32.mrb[0].mxu0
      %2289 = vmatprep.mubr.bf16.mxu0 0
      %2290 = vmatmul.mubr.bf16.gmra.mrb[0].mxu0 %v2161
      %v2291 = vpop.f32.mrb[0].mxu0
      %v2292 = vadd.f32 0.0, %v2291
      %v2293 = vpop.f32.mrb[0].mxu0
      %v2294 = vpop.f32.mrb[0].mxu0
      %v2295 = vadd.f32 0.0, %v2294
      %v2296 = vpop.f32.mrb[0].mxu0
      %2297 = vmatprep.mubr.bf16.mxu0 0
      %2298 = vmatmul.mubr.bf16.gmra.mrb[0].mxu0 %v2164
      %v2299 = vpop.f32.mrb[0].mxu0
      %v2300 = vadd.f32 0.0, %v2299
      %v2301 = vpop.f32.mrb[0].mxu0
      %v2302 = vpop.f32.mrb[0].mxu0
      %v2303 = vadd.f32 0.0, %v2302
      %v2304 = vpop.f32.mrb[0].mxu0
      %2305 = vmatprep.mubr.bf16.mxu0 0
      %2306 = vmatmul.mubr.bf16.gmra.mrb[0].mxu0 %v2167
      %v2307 = vpop.f32.mrb[0].mxu0
      %v2308 = vadd.f32 0.0, %v2307
      %v2309 = vpop.f32.mrb[0].mxu0
      %v2310 = vpop.f32.mrb[0].mxu0
      %v2311 = vadd.f32 0.0, %v2310
      %v2312 = vpop.f32.mrb[0].mxu0
      %2313 = vmatprep.mubr.bf16.mxu0 0
      %2314 = vmatmul.mubr.bf16.gmra.mrb[0].mxu0 %v2170
      %v2315 = vpop.f32.mrb[0].mxu0
      %v2316 = vadd.f32 0.0, %v2315
      %v2317 = vpop.f32.mrb[0].mxu0
      %v2318 = vpop.f32.mrb[0].mxu0
      %v2319 = vadd.f32 0.0, %v2318
      %v2320 = vpop.f32.mrb[0].mxu0
      %2321 = vmatprep.mubr.bf16.mxu0 0
      %2322 = vmatmul.mubr.bf16.gmra.mrb[0].mxu0 %v2173
      %v2323 = vpop.f32.mrb[0].mxu0
      %v2324 = vadd.f32 0.0, %v2323
      %v2325 = vpop.f32.mrb[0].mxu0
      %v2326 = vpop.f32.mrb[0].mxu0
      %v2327 = vadd.f32 0.0, %v2326
      %v2328 = vpop.f32.mrb[0].mxu0
      %2329 = vmatprep.mubr.bf16.mxu0 0
      %2330 = vmatmul.mubr.bf16.gmra.mrb[0].mxu0 %v2176
      %v2331 = vpop.f32.mrb[0].mxu0
      %v2332 = vadd.f32 0.0, %v2331
      %v2333 = vpop.f32.mrb[0].mxu0
      %v2334 = vpop.f32.mrb[0].mxu0
      %v2335 = vadd.f32 0.0, %v2334
      %v2336 = vpop.f32.mrb[0].mxu0
      %2337 = vmatprep.mubr.bf16.mxu0 0
      %2338 = vmatmul.mubr.bf16.gmra.mrb[0].mxu0 %v2179
      %v2339 = vpop.f32.mrb[0].mxu0
      %v2340 = vadd.f32 0.0, %v2339
      %v2341 = vpop.f32.mrb[0].mxu0
      %v2342 = vpop.f32.mrb[0].mxu0
      %v2343 = vadd.f32 0.0, %v2342
      %v2344 = vpop.f32.mrb[0].mxu0
      %2345 = vdwg.mxu0
      %v2378 = vunpack.c.l.b16 %v1639
      %v2379 = vunpack.c.l.b16 %v1640
      %v2380 = vunpack.c.l.b16 %v1641
      %v2381 = vunpack.c.l.b16 %v1642
      %v2382 = vunpack.c.l.b16 %v1643
      %v2383 = vunpack.c.l.b16 %v1644
      %v2384 = vunpack.c.l.b16 %v1645
      %v2385 = vunpack.c.l.b16 %v1646
      %v2386 = vunpack.c.l.b16 %v1647
      %v2387 = vunpack.c.l.b16 %v1648
      %v2388 = vunpack.c.l.b16 %v1649
      %v2389 = vunpack.c.l.b16 %v1650
      %v2390 = vunpack.c.l.b16 %v1651
      %v2391 = vunpack.c.l.b16 %v1652
      %v2392 = vunpack.c.l.b16 %v1653
      %v2393 = vunpack.c.l.b16 %v1654
      %v2394 = vunpack.c.l.b16 %v1655
      %v2395 = vunpack.c.l.b16 %v1656
      %v2396 = vunpack.c.l.b16 %v1657
      %v2397 = vunpack.c.l.b16 %v1658
      %v2398 = vunpack.c.l.b16 %v1659
      %v2399 = vunpack.c.l.b16 %v1660
      %v2400 = vunpack.c.l.b16 %v1661
      %v2401 = vunpack.c.l.b16 %v1662
      %v2402 = vunpack.c.l.b16 %v1663
      %v2403 = vunpack.c.l.b16 %v1664
      %v2404 = vunpack.c.l.b16 %v1665
      %v2405 = vunpack.c.l.b16 %v1666
      %v2406 = vunpack.c.l.b16 %v1667
      %v2407 = vunpack.c.l.b16 %v1668
      %v2408 = vunpack.c.l.b16 %v1669
      %v2409 = vunpack.c.l.b16 %v1670
      %v2410 = vpack.c.b16 %v2379, %v2378
      %v2411 = vpack.c.b16 %v2381, %v2380
      %v2412 = vpack.c.b16 %v2383, %v2382
      %v2413 = vpack.c.b16 %v2385, %v2384
      %v2414 = vpack.c.b16 %v2387, %v2386
      %v2415 = vpack.c.b16 %v2389, %v2388
      %v2416 = vpack.c.b16 %v2391, %v2390
      %v2417 = vpack.c.b16 %v2393, %v2392
      %v2418 = vpack.c.b16 %v2395, %v2394
      %v2419 = vpack.c.b16 %v2397, %v2396
      %v2420 = vpack.c.b16 %v2399, %v2398
      %v2421 = vpack.c.b16 %v2401, %v2400
      %v2422 = vpack.c.b16 %v2403, %v2402
      %v2423 = vpack.c.b16 %v2405, %v2404
      %v2424 = vpack.c.b16 %v2407, %v2406
      %v2425 = vpack.c.b16 %v2409, %v2408
      %v2428 = vunpack.c.l.b16 %v1671
      %v2429 = vunpack.c.l.b16 %v1672
      %v2430 = vpack.c.b16 %v2429, %v2428
      %v2432 = vsel %vm2132, %v2410, 0
      %v2435 = vsel %vm2132, %v2411, 0
      %v2438 = vsel %vm2132, %v2412, 0
      %v2441 = vsel %vm2132, %v2413, 0
      %v2444 = vsel %vm2132, %v2414, 0
      %v2447 = vsel %vm2132, %v2415, 0
      %v2450 = vsel %vm2132, %v2416, 0
      %v2453 = vsel %vm2132, %v2417, 0
      %v2456 = vsel %vm2132, %v2418, 0
      %v2459 = vsel %vm2132, %v2419, 0
      %v2462 = vsel %vm2132, %v2420, 0
      %v2465 = vsel %vm2132, %v2421, 0
      %v2468 = vsel %vm2132, %v2422, 0
      %v2471 = vsel %vm2132, %v2423, 0
      %v2474 = vsel %vm2132, %v2424, 0
      %v2477 = vsel %vm2132, %v2425, 0
      %v2480 = vsel %vm2181, %v2430, 0
      %2482 = vmatprep.subr.bf16.mxu0 0
      %2483 = vmatpush1.bf16.msra.mxu0 %v2480
      %2484 = vmatprep.subr.bf16.mxu0 0
      %2485 = vmatpush1.bf16.msra.mxu0 0
      %2486 = vmatprep.subr.bf16.mxu0 0
      %2487 = vmatpush1.bf16.msra.mxu0 0
      %2488 = vmatprep.subr.bf16.mxu0 0
      %2489 = vmatpush1.bf16.msra.mxu0 0
      %2490 = vmatprep.subr.bf16.mxu0 0
      %2491 = vmatpush1.bf16.msra.mxu0 0
      %2492 = vmatprep.subr.bf16.mxu0 0
      %2493 = vmatpush1.bf16.msra.mxu0 0
      %2494 = vmatprep.subr.bf16.mxu0 0
      %2495 = vmatpush1.bf16.msra.mxu0 0
      %2496 = vmatprep.subr.bf16.mxu0 0
      %2497 = vmatpush1.bf16.msra.mxu0 0
      %2498 = vmatprep.subr.bf16.mxu0 0
      %2499 = vmatpush1.bf16.msra.mxu0 0
      %2500 = vmatprep.subr.bf16.mxu0 0
      %2501 = vmatpush1.bf16.msra.mxu0 0
      %2502 = vmatprep.subr.bf16.mxu0 0
      %2503 = vmatpush1.bf16.msra.mxu0 0
      %2504 = vmatprep.subr.bf16.mxu0 0
      %2505 = vmatpush1.bf16.msra.mxu0 0
      %2506 = vmatprep.subr.bf16.mxu0 0
      %2507 = vmatpush1.bf16.msra.mxu0 0
      %2508 = vmatprep.subr.bf16.mxu0 0
      %2509 = vmatpush1.bf16.msra.mxu0 0
      %2510 = vmatprep.subr.bf16.mxu0 0
      %2511 = vmatpush1.bf16.msra.mxu0 0
      %2512 = vmatprep.subr.bf16.mxu0 0
      %2513 = vmatpush1.bf16.msra.mxu0 0
      %2514 = vmatprep.mubr.bf16.mxu0 0
      %2515 = vmatmul.mubr.bf16.gmra.mrb[0].mxu0 %v2432
      %v2516 = vpop.f32.mrb[0].mxu0
      %v2517 = vadd.f32 %v2220, %v2516
      %v2518 = vpop.f32.mrb[0].mxu0
      %v2519 = vpop.f32.mrb[0].mxu0
      %v2520 = vadd.f32 %v2223, %v2519
      %v2521 = vpop.f32.mrb[0].mxu0
      %2522 = vmatprep.mubr.bf16.mxu0 0
      %2523 = vmatmul.mubr.bf16.gmra.mrb[0].mxu0 %v2435
      %v2524 = vpop.f32.mrb[0].mxu0
      %v2525 = vadd.f32 %v2228, %v2524
      %v2526 = vpop.f32.mrb[0].mxu0
      %v2527 = vpop.f32.mrb[0].mxu0
      %v2528 = vadd.f32 %v2231, %v2527
      %v2529 = vpop.f32.mrb[0].mxu0
      %2530 = vmatprep.mubr.bf16.mxu0 0
      %2531 = vmatmul.mubr.bf16.gmra.mrb[0].mxu0 %v2438
      %v2532 = vpop.f32.mrb[0].mxu0
      %v2533 = vadd.f32 %v2236, %v2532
      %v2534 = vpop.f32.mrb[0].mxu0
      %v2535 = vpop.f32.mrb[0].mxu0
      %v2536 = vadd.f32 %v2239, %v2535
      %v2537 = vpop.f32.mrb[0].mxu0
      %2538 = vmatprep.mubr.bf16.mxu0 0
      %2539 = vmatmul.mubr.bf16.gmra.mrb[0].mxu0 %v2441
      %v2540 = vpop.f32.mrb[0].mxu0
      %v2541 = vadd.f32 %v2244, %v2540
      %v2542 = vpop.f32.mrb[0].mxu0
      %v2543 = vpop.f32.mrb[0].mxu0
      %v2544 = vadd.f32 %v2247, %v2543
      %v2545 = vpop.f32.mrb[0].mxu0
      %2546 = vmatprep.mubr.bf16.mxu0 0
      %2547 = vmatmul.mubr.bf16.gmra.mrb[0].mxu0 %v2444
      %v2548 = vpop.f32.mrb[0].mxu0
      %v2549 = vadd.f32 %v2252, %v2548
      %v2550 = vpop.f32.mrb[0].mxu0
      %v2551 = vpop.f32.mrb[0].mxu0
      %v2552 = vadd.f32 %v2255, %v2551
      %v2553 = vpop.f32.mrb[0].mxu0
      %2554 = vmatprep.mubr.bf16.mxu0 0
      %2555 = vmatmul.mubr.bf16.gmra.mrb[0].mxu0 %v2447
      %v2556 = vpop.f32.mrb[0].mxu0
      %v2557 = vadd.f32 %v2260, %v2556
      %v2558 = vpop.f32.mrb[0].mxu0
      %v2559 = vpop.f32.mrb[0].mxu0
      %v2560 = vadd.f32 %v2263, %v2559
      %v2561 = vpop.f32.mrb[0].mxu0
      %2562 = vmatprep.mubr.bf16.mxu0 0
      %2563 = vmatmul.mubr.bf16.gmra.mrb[0].mxu0 %v2450
      %v2564 = vpop.f32.mrb[0].mxu0
      %v2565 = vadd.f32 %v2268, %v2564
      %v2566 = vpop.f32.mrb[0].mxu0
      %v2567 = vpop.f32.mrb[0].mxu0
      %v2568 = vadd.f32 %v2271, %v2567
      %v2569 = vpop.f32.mrb[0].mxu0
      %2570 = vmatprep.mubr.bf16.mxu0 0
      %2571 = vmatmul.mubr.bf16.gmra.mrb[0].mxu0 %v2453
      %v2572 = vpop.f32.mrb[0].mxu0
      %v2573 = vadd.f32 %v2276, %v2572
      %v2574 = vpop.f32.mrb[0].mxu0
      %v2575 = vpop.f32.mrb[0].mxu0
      %v2576 = vadd.f32 %v2279, %v2575
      %v2577 = vpop.f32.mrb[0].mxu0
      %2578 = vmatprep.mubr.bf16.mxu0 0
      %2579 = vmatmul.mubr.bf16.gmra.mrb[0].mxu0 %v2456
      %v2580 = vpop.f32.mrb[0].mxu0
      %v2581 = vadd.f32 %v2284, %v2580
      %v2582 = vpop.f32.mrb[0].mxu0
      %v2583 = vpop.f32.mrb[0].mxu0
      %v2584 = vadd.f32 %v2287, %v2583
      %v2585 = vpop.f32.mrb[0].mxu0
      %2586 = vmatprep.mubr.bf16.mxu0 0
      %2587 = vmatmul.mubr.bf16.gmra.mrb[0].mxu0 %v2459
      %v2588 = vpop.f32.mrb[0].mxu0
      %v2589 = vadd.f32 %v2292, %v2588
      %v2590 = vpop.f32.mrb[0].mxu0
      %v2591 = vpop.f32.mrb[0].mxu0
      %v2592 = vadd.f32 %v2295, %v2591
      %v2593 = vpop.f32.mrb[0].mxu0
      %2594 = vmatprep.mubr.bf16.mxu0 0
      %2595 = vmatmul.mubr.bf16.gmra.mrb[0].mxu0 %v2462
      %v2596 = vpop.f32.mrb[0].mxu0
      %v2597 = vadd.f32 %v2300, %v2596
      %v2598 = vpop.f32.mrb[0].mxu0
      %v2599 = vpop.f32.mrb[0].mxu0
      %v2600 = vadd.f32 %v2303, %v2599
      %v2601 = vpop.f32.mrb[0].mxu0
      %2602 = vmatprep.mubr.bf16.mxu0 0
      %2603 = vmatmul.mubr.bf16.gmra.mrb[0].mxu0 %v2465
      %v2604 = vpop.f32.mrb[0].mxu0
      %v2605 = vadd.f32 %v2308, %v2604
      %v2606 = vpop.f32.mrb[0].mxu0
      %v2607 = vpop.f32.mrb[0].mxu0
      %v2608 = vadd.f32 %v2311, %v2607
      %v2609 = vpop.f32.mrb[0].mxu0
      %2610 = vmatprep.mubr.bf16.mxu0 0
      %2611 = vmatmul.mubr.bf16.gmra.mrb[0].mxu0 %v2468
      %v2612 = vpop.f32.mrb[0].mxu0
      %v2613 = vadd.f32 %v2316, %v2612
      %v2614 = vpop.f32.mrb[0].mxu0
      %v2615 = vpop.f32.mrb[0].mxu0
      %v2616 = vadd.f32 %v2319, %v2615
      %v2617 = vpop.f32.mrb[0].mxu0
      %2618 = vmatprep.mubr.bf16.mxu0 0
      %2619 = vmatmul.mubr.bf16.gmra.mrb[0].mxu0 %v2471
      %v2620 = vpop.f32.mrb[0].mxu0
      %v2621 = vadd.f32 %v2324, %v2620
      %v2622 = vpop.f32.mrb[0].mxu0
      %v2623 = vpop.f32.mrb[0].mxu0
      %v2624 = vadd.f32 %v2327, %v2623
      %v2625 = vpop.f32.mrb[0].mxu0
      %2626 = vmatprep.mubr.bf16.mxu0 0
      %2627 = vmatmul.mubr.bf16.gmra.mrb[0].mxu0 %v2474
      %v2628 = vpop.f32.mrb[0].mxu0
      %v2629 = vadd.f32 %v2332, %v2628
      %v2630 = vpop.f32.mrb[0].mxu0
      %v2631 = vpop.f32.mrb[0].mxu0
      %v2632 = vadd.f32 %v2335, %v2631
      %v2633 = vpop.f32.mrb[0].mxu0
      %2634 = vmatprep.mubr.bf16.mxu0 0
      %2635 = vmatmul.mubr.bf16.gmra.mrb[0].mxu0 %v2477
      %v2636 = vpop.f32.mrb[0].mxu0
      %v2637 = vadd.f32 %v2340, %v2636
      %v2638 = vpop.f32.mrb[0].mxu0
      %v2639 = vpop.f32.mrb[0].mxu0
      %v2640 = vadd.f32 %v2343, %v2639
      %v2641 = vpop.f32.mrb[0].mxu0
      %2642 = vdwg.mxu0
      %v2643 = vld [vmem:[#allocation3] sm:$0xe]
      %v2644 = vld [vmem:[#allocation3 + $0xc] sm:$0xe]
      %v2645 = vld [vmem:[#allocation3 + $0x18] sm:$0xe]
      %v2646 = vld [vmem:[#allocation3 + $0x24] sm:$0xe]
      %v2647 = vld [vmem:[#allocation3 + $0x30] sm:$0xe]
      %v2648 = vld [vmem:[#allocation3 + $0x3c] sm:$0xe]
      %v2649 = vld [vmem:[#allocation3 + $0x48] sm:$0xe]
      %v2650 = vld [vmem:[#allocation3 + $0x54] sm:$0xe]
      %v2651 = vld [vmem:[#allocation3 + $0x60] sm:$0xe]
      %v2652 = vld [vmem:[#allocation3 + $0x6c] sm:$0xe]
      %v2653 = vld [vmem:[#allocation3 + $0x78] sm:$0xe]
      %v2654 = vld [vmem:[#allocation3 + $0x84] sm:$0xe]
      %v2655 = vld [vmem:[#allocation3 + $0x90] sm:$0xe]
      %v2656 = vld [vmem:[#allocation3 + $0x9c] sm:$0xe]
      %v2657 = vld [vmem:[#allocation3 + $0xa8] sm:$0xe]
      %v2658 = vld [vmem:[#allocation3 + $0xb4] sm:$0xe]
      %s2659 = scalar_lea.vmem %s1, 16
      %v2660 = vld [vmem:[%s2659] sm:$0xf]
      %v2661 = vld [vmem:[%s2659 + $0x4] sm:$0x3]
      %vm2694 = vcmask 1042432
      %vm2695 = vcmask 1046532
      %vm2696 = vmor %vm2694, %vm2695
      %v2697 = vrot.slane %v2643, 5
      %v2698 = vrot.slane %v2697, 4
      %v2699 = vrot.slane %v1640, 5
      %v2700 = vsel %vm2696, %v2698, %v2699
      %v2701 = vrot.slane %v2699, 4
      %v2702 = vrot.slane %v1673, 5
      %v2703 = vsel %vm2696, %v2701, %v2702
      %v2704 = vrot.slane %v2644, 5
      %v2705 = vrot.slane %v2704, 4
      %v2706 = vrot.slane %v1642, 5
      %v2707 = vsel %vm2696, %v2705, %v2706
      %v2708 = vrot.slane %v2706, 4
      %v2709 = vrot.slane %v1674, 5
      %v2710 = vsel %vm2696, %v2708, %v2709
      %v2711 = vrot.slane %v2645, 5
      %v2712 = vrot.slane %v2711, 4
      %v2713 = vrot.slane %v1644, 5
      %v2714 = vsel %vm2696, %v2712, %v2713
      %v2715 = vrot.slane %v2713, 4
      %v2716 = vrot.slane %v1675, 5
      %v2717 = vsel %vm2696, %v2715, %v2716
      %v2718 = vrot.slane %v2646, 5
      %v2719 = vrot.slane %v2718, 4
      %v2720 = vrot.slane %v1646, 5
      %v2721 = vsel %vm2696, %v2719, %v2720
      %v2722 = vrot.slane %v2720, 4
      %v2723 = vrot.slane %v1676, 5
      %v2724 = vsel %vm2696, %v2722, %v2723
      %v2725 = vrot.slane %v2647, 5
      %v2726 = vrot.slane %v2725, 4
      %v2727 = vrot.slane %v1648, 5
      %v2728 = vsel %vm2696, %v2726, %v2727
      %v2729 = vrot.slane %v2727, 4
      %v2730 = vrot.slane %v1677, 5
      %v2731 = vsel %vm2696, %v2729, %v2730
      %v2732 = vrot.slane %v2648, 5
      %v2733 = vrot.slane %v2732, 4
      %v2734 = vrot.slane %v1650, 5
      %v2735 = vsel %vm2696, %v2733, %v2734
      %v2736 = vrot.slane %v2734, 4
      %v2737 = vrot.slane %v1678, 5
      %v2738 = vsel %vm2696, %v2736, %v2737
      %v2739 = vrot.slane %v2649, 5
      %v2740 = vrot.slane %v2739, 4
      %v2741 = vrot.slane %v1652, 5
      %v2742 = vsel %vm2696, %v2740, %v2741
      %v2743 = vrot.slane %v2741, 4
      %v2744 = vrot.slane %v1679, 5
      %v2745 = vsel %vm2696, %v2743, %v2744
      %v2746 = vrot.slane %v2650, 5
      %v2747 = vrot.slane %v2746, 4
      %v2748 = vrot.slane %v1654, 5
      %v2749 = vsel %vm2696, %v2747, %v2748
      %v2750 = vrot.slane %v2748, 4
      %v2751 = vrot.slane %v1680, 5
      %v2752 = vsel %vm2696, %v2750, %v2751
      %v2753 = vrot.slane %v2651, 5
      %v2754 = vrot.slane %v2753, 4
      %v2755 = vrot.slane %v1656, 5
      %v2756 = vsel %vm2696, %v2754, %v2755
      %v2757 = vrot.slane %v2755, 4
      %v2758 = vrot.slane %v1681, 5
      %v2759 = vsel %vm2696, %v2757, %v2758
      %v2760 = vrot.slane %v2652, 5
      %v2761 = vrot.slane %v2760, 4
      %v2762 = vrot.slane %v1658, 5
      %v2763 = vsel %vm2696, %v2761, %v2762
      %v2764 = vrot.slane %v2762, 4
      %v2765 = vrot.slane %v1682, 5
      %v2766 = vsel %vm2696, %v2764, %v2765
      %v2767 = vrot.slane %v2653, 5
      %v2768 = vrot.slane %v2767, 4
      %v2769 = vrot.slane %v1660, 5
      %v2770 = vsel %vm2696, %v2768, %v2769
      %v2771 = vrot.slane %v2769, 4
      %v2772 = vrot.slane %v1683, 5
      %v2773 = vsel %vm2696, %v2771, %v2772
      %v2774 = vrot.slane %v2654, 5
      %v2775 = vrot.slane %v2774, 4
      %v2776 = vrot.slane %v1662, 5
      %v2777 = vsel %vm2696, %v2775, %v2776
      %v2778 = vrot.slane %v2776, 4
      %v2779 = vrot.slane %v1684, 5
      %v2780 = vsel %vm2696, %v2778, %v2779
      %v2781 = vrot.slane %v2655, 5
      %v2782 = vrot.slane %v2781, 4
      %v2783 = vrot.slane %v1664, 5
      %v2784 = vsel %vm2696, %v2782, %v2783
      %v2785 = vrot.slane %v2783, 4
      %v2786 = vrot.slane %v1685, 5
      %v2787 = vsel %vm2696, %v2785, %v2786
      %v2788 = vrot.slane %v2656, 5
      %v2789 = vrot.slane %v2788, 4
      %v2790 = vrot.slane %v1666, 5
      %v2791 = vsel %vm2696, %v2789, %v2790
      %v2792 = vrot.slane %v2790, 4
      %v2793 = vrot.slane %v1686, 5
      %v2794 = vsel %vm2696, %v2792, %v2793
      %v2795 = vrot.slane %v2657, 5
      %v2796 = vrot.slane %v2795, 4
      %v2797 = vrot.slane %v1668, 5
      %v2798 = vsel %vm2696, %v2796, %v2797
      %v2799 = vrot.slane %v2797, 4
      %v2800 = vrot.slane %v1687, 5
      %v2801 = vsel %vm2696, %v2799, %v2800
      %v2802 = vrot.slane %v2658, 5
      %v2803 = vrot.slane %v2802, 4
      %v2804 = vrot.slane %v1670, 5
      %v2805 = vsel %vm2696, %v2803, %v2804
      %v2806 = vrot.slane %v2804, 4
      %v2807 = vrot.slane %v1688, 5
      %v2808 = vsel %vm2696, %v2806, %v2807
      %v2809 = vunpack.c.l.b16 %v2700
      %v2810 = vunpack.c.l.b16 %v2703
      %v2811 = vunpack.c.l.b16 %v2707
      %v2812 = vunpack.c.l.b16 %v2710
      %v2813 = vunpack.c.l.b16 %v2714
      %v2814 = vunpack.c.l.b16 %v2717
      %v2815 = vunpack.c.l.b16 %v2721
      %v2816 = vunpack.c.l.b16 %v2724
      %v2817 = vunpack.c.l.b16 %v2728
      %v2818 = vunpack.c.l.b16 %v2731
      %v2819 = vunpack.c.l.b16 %v2735
      %v2820 = vunpack.c.l.b16 %v2738
      %v2821 = vunpack.c.l.b16 %v2742
      %v2822 = vunpack.c.l.b16 %v2745
      %v2823 = vunpack.c.l.b16 %v2749
      %v2824 = vunpack.c.l.b16 %v2752
      %v2825 = vunpack.c.l.b16 %v2756
      %v2826 = vunpack.c.l.b16 %v2759
      %v2827 = vunpack.c.l.b16 %v2763
      %v2828 = vunpack.c.l.b16 %v2766
      %v2829 = vunpack.c.l.b16 %v2770
      %v2830 = vunpack.c.l.b16 %v2773
      %v2831 = vunpack.c.l.b16 %v2777
      %v2832 = vunpack.c.l.b16 %v2780
      %v2833 = vunpack.c.l.b16 %v2784
      %v2834 = vunpack.c.l.b16 %v2787
      %v2835 = vunpack.c.l.b16 %v2791
      %v2836 = vunpack.c.l.b16 %v2794
      %v2837 = vunpack.c.l.b16 %v2798
      %v2838 = vunpack.c.l.b16 %v2801
      %v2839 = vunpack.c.l.b16 %v2805
      %v2840 = vunpack.c.l.b16 %v2808
      %v2841 = vpack.c.b16 %v2810, %v2809
      %v2842 = vpack.c.b16 %v2812, %v2811
      %v2843 = vpack.c.b16 %v2814, %v2813
      %v2844 = vpack.c.b16 %v2816, %v2815
      %v2845 = vpack.c.b16 %v2818, %v2817
      %v2846 = vpack.c.b16 %v2820, %v2819
      %v2847 = vpack.c.b16 %v2822, %v2821
      %v2848 = vpack.c.b16 %v2824, %v2823
      %v2849 = vpack.c.b16 %v2826, %v2825
      %v2850 = vpack.c.b16 %v2828, %v2827
      %v2851 = vpack.c.b16 %v2830, %v2829
      %v2852 = vpack.c.b16 %v2832, %v2831
      %v2853 = vpack.c.b16 %v2834, %v2833
      %v2854 = vpack.c.b16 %v2836, %v2835
      %v2855 = vpack.c.b16 %v2838, %v2837
      %v2856 = vpack.c.b16 %v2840, %v2839
      %v2859 = vunpack.c.l.b16 %v2660
      %v2860 = vunpack.c.l.b16 %v2661
      %v2861 = vpack.c.b16 %v2860, %v2859
      %v2863 = vsel %vm2132, %v2841, 0
      %v2866 = vsel %vm2132, %v2842, 0
      %v2869 = vsel %vm2132, %v2843, 0
      %v2872 = vsel %vm2132, %v2844, 0
      %v2875 = vsel %vm2132, %v2845, 0
      %v2878 = vsel %vm2132, %v2846, 0
      %v2881 = vsel %vm2132, %v2847, 0
      %v2884 = vsel %vm2132, %v2848, 0
      %v2887 = vsel %vm2132, %v2849, 0
      %v2890 = vsel %vm2132, %v2850, 0
      %v2893 = vsel %vm2132, %v2851, 0
      %v2896 = vsel %vm2132, %v2852, 0
      %v2899 = vsel %vm2132, %v2853, 0
      %v2902 = vsel %vm2132, %v2854, 0
      %v2905 = vsel %vm2132, %v2855, 0
      %v2908 = vsel %vm2132, %v2856, 0
      %v2911 = vsel %vm2181, %v2861, 0
      %2913 = vmatprep.subr.bf16.mxu0 0
      %2914 = vmatpush1.bf16.msra.mxu0 %v2911
      %2915 = vmatprep.subr.bf16.mxu0 0
      %2916 = vmatpush1.bf16.msra.mxu0 0
      %2917 = vmatprep.subr.bf16.mxu0 0
      %2918 = vmatpush1.bf16.msra.mxu0 0
      %2919 = vmatprep.subr.bf16.mxu0 0
      %2920 = vmatpush1.bf16.msra.mxu0 0
      %2921 = vmatprep.subr.bf16.mxu0 0
      %2922 = vmatpush1.bf16.msra.mxu0 0
      %2923 = vmatprep.subr.bf16.mxu0 0
      %2924 = vmatpush1.bf16.msra.mxu0 0
      %2925 = vmatprep.subr.bf16.mxu0 0
      %2926 = vmatpush1.bf16.msra.mxu0 0
      %2927 = vmatprep.subr.bf16.mxu0 0
      %2928 = vmatpush1.bf16.msra.mxu0 0
      %2929 = vmatprep.subr.bf16.mxu0 0
      %2930 = vmatpush1.bf16.msra.mxu0 0
      %2931 = vmatprep.subr.bf16.mxu0 0
      %2932 = vmatpush1.bf16.msra.mxu0 0
      %2933 = vmatprep.subr.bf16.mxu0 0
      %2934 = vmatpush1.bf16.msra.mxu0 0
      %2935 = vmatprep.subr.bf16.mxu0 0
      %2936 = vmatpush1.bf16.msra.mxu0 0
      %2937 = vmatprep.subr.bf16.mxu0 0
      %2938 = vmatpush1.bf16.msra.mxu0 0
      %2939 = vmatprep.subr.bf16.mxu0 0
      %2940 = vmatpush1.bf16.msra.mxu0 0
      %2941 = vmatprep.subr.bf16.mxu0 0
      %2942 = vmatpush1.bf16.msra.mxu0 0
      %2943 = vmatprep.subr.bf16.mxu0 0
      %2944 = vmatpush1.bf16.msra.mxu0 0
      %2945 = vmatprep.mubr.bf16.mxu0 0
      %2946 = vmatmul.mubr.bf16.gmra.mrb[0].mxu0 %v2863
      %v2947 = vpop.f32.mrb[0].mxu0
      %v2948 = vadd.f32 0.0, %v2947
      %v2949 = vpop.f32.mrb[0].mxu0
      %v2950 = vpop.f32.mrb[0].mxu0
      %v2951 = vadd.f32 0.0, %v2950
      %v2952 = vpop.f32.mrb[0].mxu0
      %2953 = vmatprep.mubr.bf16.mxu0 0
      %2954 = vmatmul.mubr.bf16.gmra.mrb[0].mxu0 %v2866
      %v2955 = vpop.f32.mrb[0].mxu0
      %v2956 = vadd.f32 0.0, %v2955
      %v2957 = vpop.f32.mrb[0].mxu0
      %v2958 = vpop.f32.mrb[0].mxu0
      %v2959 = vadd.f32 0.0, %v2958
      %v2960 = vpop.f32.mrb[0].mxu0
      %2961 = vmatprep.mubr.bf16.mxu0 0
      %2962 = vmatmul.mubr.bf16.gmra.mrb[0].mxu0 %v2869
      %v2963 = vpop.f32.mrb[0].mxu0
      %v2964 = vadd.f32 0.0, %v2963
      %v2965 = vpop.f32.mrb[0].mxu0
      %v2966 = vpop.f32.mrb[0].mxu0
      %v2967 = vadd.f32 0.0, %v2966
      %v2968 = vpop.f32.mrb[0].mxu0
      %2969 = vmatprep.mubr.bf16.mxu0 0
      %2970 = vmatmul.mubr.bf16.gmra.mrb[0].mxu0 %v2872
      %v2971 = vpop.f32.mrb[0].mxu0
      %v2972 = vadd.f32 0.0, %v2971
      %v2973 = vpop.f32.mrb[0].mxu0
      %v2974 = vpop.f32.mrb[0].mxu0
      %v2975 = vadd.f32 0.0, %v2974
      %v2976 = vpop.f32.mrb[0].mxu0
      %2977 = vmatprep.mubr.bf16.mxu0 0
      %2978 = vmatmul.mubr.bf16.gmra.mrb[0].mxu0 %v2875
      %v2979 = vpop.f32.mrb[0].mxu0
      %v2980 = vadd.f32 0.0, %v2979
      %v2981 = vpop.f32.mrb[0].mxu0
      %v2982 = vpop.f32.mrb[0].mxu0
      %v2983 = vadd.f32 0.0, %v2982
      %v2984 = vpop.f32.mrb[0].mxu0
      %2985 = vmatprep.mubr.bf16.mxu0 0
      %2986 = vmatmul.mubr.bf16.gmra.mrb[0].mxu0 %v2878
      %v2987 = vpop.f32.mrb[0].mxu0
      %v2988 = vadd.f32 0.0, %v2987
      %v2989 = vpop.f32.mrb[0].mxu0
      %v2990 = vpop.f32.mrb[0].mxu0
      %v2991 = vadd.f32 0.0, %v2990
      %v2992 = vpop.f32.mrb[0].mxu0
      %2993 = vmatprep.mubr.bf16.mxu0 0
      %2994 = vmatmul.mubr.bf16.gmra.mrb[0].mxu0 %v2881
      %v2995 = vpop.f32.mrb[0].mxu0
      %v2996 = vadd.f32 0.0, %v2995
      %v2997 = vpop.f32.mrb[0].mxu0
      %v2998 = vpop.f32.mrb[0].mxu0
      %v2999 = vadd.f32 0.0, %v2998
      %v3000 = vpop.f32.mrb[0].mxu0
      %3001 = vmatprep.mubr.bf16.mxu0 0
      %3002 = vmatmul.mubr.bf16.gmra.mrb[0].mxu0 %v2884
      %v3003 = vpop.f32.mrb[0].mxu0
      %v3004 = vadd.f32 0.0, %v3003
      %v3005 = vpop.f32.mrb[0].mxu0
      %v3006 = vpop.f32.mrb[0].mxu0
      %v3007 = vadd.f32 0.0, %v3006
      %v3008 = vpop.f32.mrb[0].mxu0
      %3009 = vmatprep.mubr.bf16.mxu0 0
      %3010 = vmatmul.mubr.bf16.gmra.mrb[0].mxu0 %v2887
      %v3011 = vpop.f32.mrb[0].mxu0
      %v3012 = vadd.f32 0.0, %v3011
      %v3013 = vpop.f32.mrb[0].mxu0
      %v3014 = vpop.f32.mrb[0].mxu0
      %v3015 = vadd.f32 0.0, %v3014
      %v3016 = vpop.f32.mrb[0].mxu0
      %3017 = vmatprep.mubr.bf16.mxu0 0
      %3018 = vmatmul.mubr.bf16.gmra.mrb[0].mxu0 %v2890
      %v3019 = vpop.f32.mrb[0].mxu0
      %v3020 = vadd.f32 0.0, %v3019
      %v3021 = vpop.f32.mrb[0].mxu0
      %v3022 = vpop.f32.mrb[0].mxu0
      %v3023 = vadd.f32 0.0, %v3022
      %v3024 = vpop.f32.mrb[0].mxu0
      %3025 = vmatprep.mubr.bf16.mxu0 0
      %3026 = vmatmul.mubr.bf16.gmra.mrb[0].mxu0 %v2893
      %v3027 = vpop.f32.mrb[0].mxu0
      %v3028 = vadd.f32 0.0, %v3027
      %v3029 = vpop.f32.mrb[0].mxu0
      %v3030 = vpop.f32.mrb[0].mxu0
      %v3031 = vadd.f32 0.0, %v3030
      %v3032 = vpop.f32.mrb[0].mxu0
      %3033 = vmatprep.mubr.bf16.mxu0 0
      %3034 = vmatmul.mubr.bf16.gmra.mrb[0].mxu0 %v2896
      %v3035 = vpop.f32.mrb[0].mxu0
      %v3036 = vadd.f32 0.0, %v3035
      %v3037 = vpop.f32.mrb[0].mxu0
      %v3038 = vpop.f32.mrb[0].mxu0
      %v3039 = vadd.f32 0.0, %v3038
      %v3040 = vpop.f32.mrb[0].mxu0
      %3041 = vmatprep.mubr.bf16.mxu0 0
      %3042 = vmatmul.mubr.bf16.gmra.mrb[0].mxu0 %v2899
      %v3043 = vpop.f32.mrb[0].mxu0
      %v3044 = vadd.f32 0.0, %v3043
      %v3045 = vpop.f32.mrb[0].mxu0
      %v3046 = vpop.f32.mrb[0].mxu0
      %v3047 = vadd.f32 0.0, %v3046
      %v3048 = vpop.f32.mrb[0].mxu0
      %3049 = vmatprep.mubr.bf16.mxu0 0
      %3050 = vmatmul.mubr.bf16.gmra.mrb[0].mxu0 %v2902
      %v3051 = vpop.f32.mrb[0].mxu0
      %v3052 = vadd.f32 0.0, %v3051
      %v3053 = vpop.f32.mrb[0].mxu0
      %v3054 = vpop.f32.mrb[0].mxu0
      %v3055 = vadd.f32 0.0, %v3054
      %v3056 = vpop.f32.mrb[0].mxu0
      %3057 = vmatprep.mubr.bf16.mxu0 0
      %3058 = vmatmul.mubr.bf16.gmra.mrb[0].mxu0 %v2905
      %v3059 = vpop.f32.mrb[0].mxu0
      %v3060 = vadd.f32 0.0, %v3059
      %v3061 = vpop.f32.mrb[0].mxu0
      %v3062 = vpop.f32.mrb[0].mxu0
      %v3063 = vadd.f32 0.0, %v3062
      %v3064 = vpop.f32.mrb[0].mxu0
      %3065 = vmatprep.mubr.bf16.mxu0 0
      %3066 = vmatmul.mubr.bf16.gmra.mrb[0].mxu0 %v2908
      %v3067 = vpop.f32.mrb[0].mxu0
      %v3068 = vadd.f32 0.0, %v3067
      %v3069 = vpop.f32.mrb[0].mxu0
      %v3070 = vpop.f32.mrb[0].mxu0
      %v3071 = vadd.f32 0.0, %v3070
      %v3072 = vpop.f32.mrb[0].mxu0
      %3073 = vdwg.mxu0
      %v3074 = vadd.f32 %v2517, %v2948
      %v3075 = vadd.f32 %v2520, %v2951
      %v3076 = vadd.f32 %v2525, %v2956
      %v3077 = vadd.f32 %v2528, %v2959
      %v3078 = vadd.f32 %v2533, %v2964
      %v3079 = vadd.f32 %v2536, %v2967
      %v3080 = vadd.f32 %v2541, %v2972
      %v3081 = vadd.f32 %v2544, %v2975
      %v3082 = vadd.f32 %v2549, %v2980
      %v3083 = vadd.f32 %v2552, %v2983
      %v3084 = vadd.f32 %v2557, %v2988
      %v3085 = vadd.f32 %v2560, %v2991
      %v3086 = vadd.f32 %v2565, %v2996
      %v3087 = vadd.f32 %v2568, %v2999
      %v3088 = vadd.f32 %v2573, %v3004
      %v3089 = vadd.f32 %v2576, %v3007
      %v3090 = vadd.f32 %v2581, %v3012
      %v3091 = vadd.f32 %v2584, %v3015
      %v3092 = vadd.f32 %v2589, %v3020
      %v3093 = vadd.f32 %v2592, %v3023
      %v3094 = vadd.f32 %v2597, %v3028
      %v3095 = vadd.f32 %v2600, %v3031
      %v3096 = vadd.f32 %v2605, %v3036
      %v3097 = vadd.f32 %v2608, %v3039
      %v3098 = vadd.f32 %v2613, %v3044
      %v3099 = vadd.f32 %v2616, %v3047
      %v3100 = vadd.f32 %v2621, %v3052
      %v3101 = vadd.f32 %v2624, %v3055
      %v3102 = vadd.f32 %v2629, %v3060
      %v3103 = vadd.f32 %v2632, %v3063
      %v3104 = vadd.f32 %v2637, %v3068
      %v3105 = vadd.f32 %v2640, %v3071
      %vm3106 = vcmask 31744
      %v3107 = vsel %vm3106, %v3074, 0.0
      %v3108 = vsel %vm3106, %v3075, 0.0
      %v3109 = vadd.f32 %v3107, %v3108
      %v3110 = vsel %vm3106, %v3076, 0.0
      %v3111 = vadd.f32 %v3109, %v3110
      %v3112 = vsel %vm3106, %v3077, 0.0
      %v3113 = vadd.f32 %v3111, %v3112
      %v3114 = vsel %vm3106, %v3078, 0.0
      %v3115 = vadd.f32 %v3113, %v3114
      %v3116 = vsel %vm3106, %v3079, 0.0
      %v3117 = vadd.f32 %v3115, %v3116
      %v3118 = vsel %vm3106, %v3080, 0.0
      %v3119 = vadd.f32 %v3117, %v3118
      %v3120 = vsel %vm3106, %v3081, 0.0
      %v3121 = vadd.f32 %v3119, %v3120
      %v3122 = vsel %vm3106, %v3082, 0.0
      %v3123 = vadd.f32 %v3121, %v3122
      %v3124 = vsel %vm3106, %v3083, 0.0
      %v3125 = vadd.f32 %v3123, %v3124
      %v3126 = vsel %vm3106, %v3084, 0.0
      %v3127 = vadd.f32 %v3125, %v3126
      %v3128 = vsel %vm3106, %v3085, 0.0
      %v3129 = vadd.f32 %v3127, %v3128
      %v3130 = vsel %vm3106, %v3086, 0.0
      %v3131 = vadd.f32 %v3129, %v3130
      %v3132 = vsel %vm3106, %v3087, 0.0
      %v3133 = vadd.f32 %v3131, %v3132
      %v3134 = vsel %vm3106, %v3088, 0.0
      %v3135 = vadd.f32 %v3133, %v3134
      %v3136 = vsel %vm3106, %v3089, 0.0
      %v3137 = vadd.f32 %v3135, %v3136
      %v3138 = vsel %vm3106, %v3090, 0.0
      %v3139 = vadd.f32 %v3137, %v3138
      %v3140 = vsel %vm3106, %v3091, 0.0
      %v3141 = vadd.f32 %v3139, %v3140
      %v3142 = vsel %vm3106, %v3092, 0.0
      %v3143 = vadd.f32 %v3141, %v3142
      %v3144 = vsel %vm3106, %v3093, 0.0
      %v3145 = vadd.f32 %v3143, %v3144
      %v3146 = vsel %vm3106, %v3094, 0.0
      %v3147 = vadd.f32 %v3145, %v3146
      %v3148 = vsel %vm3106, %v3095, 0.0
      %v3149 = vadd.f32 %v3147, %v3148
      %v3150 = vsel %vm3106, %v3096, 0.0
      %v3151 = vadd.f32 %v3149, %v3150
      %v3152 = vsel %vm3106, %v3097, 0.0
      %v3153 = vadd.f32 %v3151, %v3152
      %v3154 = vsel %vm3106, %v3098, 0.0
      %v3155 = vadd.f32 %v3153, %v3154
      %v3156 = vsel %vm3106, %v3099, 0.0
      %v3157 = vadd.f32 %v3155, %v3156
      %v3158 = vsel %vm3106, %v3100, 0.0
      %v3159 = vadd.f32 %v3157, %v3158
      %v3160 = vsel %vm3106, %v3101, 0.0
      %v3161 = vadd.f32 %v3159, %v3160
      %v3162 = vsel %vm3106, %v3102, 0.0
      %v3163 = vadd.f32 %v3161, %v3162
      %v3164 = vsel %vm3106, %v3103, 0.0
      %v3165 = vadd.f32 %v3163, %v3164
      %v3166 = vsel %vm3106, %v3104, 0.0
      %v3167 = vadd.f32 %v3165, %v3166
      %v3168 = vsel %vm3106, %v3105, 0.0
      %v3169 = vadd.f32 %v3167, %v3168
      %v3170 = vrot.slane %v3169, 4
      %v3171 = vadd.f32 %v3169, %v3170
      %v3172 = vrot.slane %v3171, 2
      %v3173 = vadd.f32 %v3171, %v3172
      %v3174 = vrot.slane %v3173, 1
      %v3175 = vadd.f32 %v3173, %v3174
      %v3176 = vmul.f32 %v3074, %v3074
      %v3177 = vmul.f32 %v3075, %v3075
      %v3178 = vmul.f32 %v3076, %v3076
      %v3179 = vmul.f32 %v3077, %v3077
      %v3180 = vmul.f32 %v3078, %v3078
      %v3181 = vmul.f32 %v3079, %v3079
      %v3182 = vmul.f32 %v3080, %v3080
      %v3183 = vmul.f32 %v3081, %v3081
      %v3184 = vmul.f32 %v3082, %v3082
      %v3185 = vmul.f32 %v3083, %v3083
      %v3186 = vmul.f32 %v3084, %v3084
      %v3187 = vmul.f32 %v3085, %v3085
      %v3188 = vmul.f32 %v3086, %v3086
      %v3189 = vmul.f32 %v3087, %v3087
      %v3190 = vmul.f32 %v3088, %v3088
      %v3191 = vmul.f32 %v3089, %v3089
      %v3192 = vmul.f32 %v3090, %v3090
      %v3193 = vmul.f32 %v3091, %v3091
      %v3194 = vmul.f32 %v3092, %v3092
      %v3195 = vmul.f32 %v3093, %v3093
      %v3196 = vmul.f32 %v3094, %v3094
      %v3197 = vmul.f32 %v3095, %v3095
      %v3198 = vmul.f32 %v3096, %v3096
      %v3199 = vmul.f32 %v3097, %v3097
      %v3200 = vmul.f32 %v3098, %v3098
      %v3201 = vmul.f32 %v3099, %v3099
      %v3202 = vmul.f32 %v3100, %v3100
      %v3203 = vmul.f32 %v3101, %v3101
      %v3204 = vmul.f32 %v3102, %v3102
      %v3205 = vmul.f32 %v3103, %v3103
      %v3206 = vmul.f32 %v3104, %v3104
      %v3207 = vmul.f32 %v3105, %v3105
      %v3208 = vsel %vm3106, %v3176, 0.0
      %v3209 = vsel %vm3106, %v3177, 0.0
      %v3210 = vadd.f32 %v3208, %v3209
      %v3211 = vsel %vm3106, %v3178, 0.0
      %v3212 = vadd.f32 %v3210, %v3211
      %v3213 = vsel %vm3106, %v3179, 0.0
      %v3214 = vadd.f32 %v3212, %v3213
      %v3215 = vsel %vm3106, %v3180, 0.0
      %v3216 = vadd.f32 %v3214, %v3215
      %v3217 = vsel %vm3106, %v3181, 0.0
      %v3218 = vadd.f32 %v3216, %v3217
      %v3219 = vsel %vm3106, %v3182, 0.0
      %v3220 = vadd.f32 %v3218, %v3219
      %v3221 = vsel %vm3106, %v3183, 0.0
      %v3222 = vadd.f32 %v3220, %v3221
      %v3223 = vsel %vm3106, %v3184, 0.0
      %v3224 = vadd.f32 %v3222, %v3223
      %v3225 = vsel %vm3106, %v3185, 0.0
      %v3226 = vadd.f32 %v3224, %v3225
      %v3227 = vsel %vm3106, %v3186, 0.0
      %v3228 = vadd.f32 %v3226, %v3227
      %v3229 = vsel %vm3106, %v3187, 0.0
      %v3230 = vadd.f32 %v3228, %v3229
      %v3231 = vsel %vm3106, %v3188, 0.0
      %v3232 = vadd.f32 %v3230, %v3231
      %v3233 = vsel %vm3106, %v3189, 0.0
      %v3234 = vadd.f32 %v3232, %v3233
      %v3235 = vsel %vm3106, %v3190, 0.0
      %v3236 = vadd.f32 %v3234, %v3235
      %v3237 = vsel %vm3106, %v3191, 0.0
      %v3238 = vadd.f32 %v3236, %v3237
      %v3239 = vsel %vm3106, %v3192, 0.0
      %v3240 = vadd.f32 %v3238, %v3239
      %v3241 = vsel %vm3106, %v3193, 0.0
      %v3242 = vadd.f32 %v3240, %v3241
      %v3243 = vsel %vm3106, %v3194, 0.0
      %v3244 = vadd.f32 %v3242, %v3243
      %v3245 = vsel %vm3106, %v3195, 0.0
      %v3246 = vadd.f32 %v3244, %v3245
      %v3247 = vsel %vm3106, %v3196, 0.0
      %v3248 = vadd.f32 %v3246, %v3247
      %v3249 = vsel %vm3106, %v3197, 0.0
      %v3250 = vadd.f32 %v3248, %v3249
      %v3251 = vsel %vm3106, %v3198, 0.0
      %v3252 = vadd.f32 %v3250, %v3251
      %v3253 = vsel %vm3106, %v3199, 0.0
      %v3254 = vadd.f32 %v3252, %v3253
      %v3255 = vsel %vm3106, %v3200, 0.0
      %v3256 = vadd.f32 %v3254, %v3255
      %v3257 = vsel %vm3106, %v3201, 0.0
      %v3258 = vadd.f32 %v3256, %v3257
      %v3259 = vsel %vm3106, %v3202, 0.0
      %v3260 = vadd.f32 %v3258, %v3259
      %v3261 = vsel %vm3106, %v3203, 0.0
      %v3262 = vadd.f32 %v3260, %v3261
      %v3263 = vsel %vm3106, %v3204, 0.0
      %v3264 = vadd.f32 %v3262, %v3263
      %v3265 = vsel %vm3106, %v3205, 0.0
      %v3266 = vadd.f32 %v3264, %v3265
      %v3267 = vsel %vm3106, %v3206, 0.0
      %v3268 = vadd.f32 %v3266, %v3267
      %v3269 = vsel %vm3106, %v3207, 0.0
      %v3270 = vadd.f32 %v3268, %v3269
      %v3271 = vrot.slane %v3270, 4
      %v3272 = vadd.f32 %v3270, %v3271
      %v3273 = vrot.slane %v3272, 2
      %v3274 = vadd.f32 %v3272, %v3273
      %v3275 = vrot.slane %v3274, 1
      %v3276 = vadd.f32 %v3274, %v3275
      %v3277 = vmul.f32 %v3175, 0.00390625
      %v3278 = vmul.f32 %v3276, 0.00390625
      %v3279 = vmul.f32 %v3277, %v3277
      %v3280 = vsub.f32 %v3278, %v3279
      %v3281 = vmax.f32 %v3280, 0.0
      %v3282 = vsub.f32 %v3074, %v3277
      %v3283 = vsub.f32 %v3075, %v3277
      %v3284 = vsub.f32 %v3076, %v3277
      %v3285 = vsub.f32 %v3077, %v3277
      %v3286 = vsub.f32 %v3078, %v3277
      %v3287 = vsub.f32 %v3079, %v3277
      %v3288 = vsub.f32 %v3080, %v3277
      %v3289 = vsub.f32 %v3081, %v3277
      %v3290 = vsub.f32 %v3082, %v3277
      %v3291 = vsub.f32 %v3083, %v3277
      %v3292 = vsub.f32 %v3084, %v3277
      %v3293 = vsub.f32 %v3085, %v3277
      %v3294 = vsub.f32 %v3086, %v3277
      %v3295 = vsub.f32 %v3087, %v3277
      %v3296 = vsub.f32 %v3088, %v3277
      %v3297 = vsub.f32 %v3089, %v3277
      %v3298 = vsub.f32 %v3090, %v3277
      %v3299 = vsub.f32 %v3091, %v3277
      %v3300 = vsub.f32 %v3092, %v3277
      %v3301 = vsub.f32 %v3093, %v3277
      %v3302 = vsub.f32 %v3094, %v3277
      %v3303 = vsub.f32 %v3095, %v3277
      %v3304 = vsub.f32 %v3096, %v3277
      %v3305 = vsub.f32 %v3097, %v3277
      %v3306 = vsub.f32 %v3098, %v3277
      %v3307 = vsub.f32 %v3099, %v3277
      %v3308 = vsub.f32 %v3100, %v3277
      %v3309 = vsub.f32 %v3101, %v3277
      %v3310 = vsub.f32 %v3102, %v3277
      %v3311 = vsub.f32 %v3103, %v3277
      %v3312 = vsub.f32 %v3104, %v3277
      %v3313 = vsub.f32 %v3105, %v3277
      %v3314 = vadd.f32 %v3281, 1e-05
      %v3315 = vrsqrt.pop %v3314
      %v3316 = vmul.f32 %v3282, %v3315
      %v3317 = vmul.f32 %v3283, %v3315
      %v3318 = vmul.f32 %v3284, %v3315
      %v3319 = vmul.f32 %v3285, %v3315
      %v3320 = vmul.f32 %v3286, %v3315
      %v3321 = vmul.f32 %v3287, %v3315
      %v3322 = vmul.f32 %v3288, %v3315
      %v3323 = vmul.f32 %v3289, %v3315
      %v3324 = vmul.f32 %v3290, %v3315
      %v3325 = vmul.f32 %v3291, %v3315
      %v3326 = vmul.f32 %v3292, %v3315
      %v3327 = vmul.f32 %v3293, %v3315
      %v3328 = vmul.f32 %v3294, %v3315
      %v3329 = vmul.f32 %v3295, %v3315
      %v3330 = vmul.f32 %v3296, %v3315
      %v3331 = vmul.f32 %v3297, %v3315
      %v3332 = vmul.f32 %v3298, %v3315
      %v3333 = vmul.f32 %v3299, %v3315
      %v3334 = vmul.f32 %v3300, %v3315
      %v3335 = vmul.f32 %v3301, %v3315
      %v3336 = vmul.f32 %v3302, %v3315
      %v3337 = vmul.f32 %v3303, %v3315
      %v3338 = vmul.f32 %v3304, %v3315
      %v3339 = vmul.f32 %v3305, %v3315
      %v3340 = vmul.f32 %v3306, %v3315
      %v3341 = vmul.f32 %v3307, %v3315
      %v3342 = vmul.f32 %v3308, %v3315
      %v3343 = vmul.f32 %v3309, %v3315
      %v3344 = vmul.f32 %v3310, %v3315
      %v3345 = vmul.f32 %v3311, %v3315
      %v3346 = vmul.f32 %v3312, %v3315
      %v3347 = vmul.f32 %v3313, %v3315
      %v3348 = vmax.f32 %v3316, 0.0
      %v3349 = vmax.f32 %v3317, 0.0
      %v3350 = vmax.f32 %v3318, 0.0
      %v3351 = vmax.f32 %v3319, 0.0
      %v3352 = vmax.f32 %v3320, 0.0
      %v3353 = vmax.f32 %v3321, 0.0
      %v3354 = vmax.f32 %v3322, 0.0
      %v3355 = vmax.f32 %v3323, 0.0
      %v3356 = vmax.f32 %v3324, 0.0
      %v3357 = vmax.f32 %v3325, 0.0
      %v3358 = vmax.f32 %v3326, 0.0
      %v3359 = vmax.f32 %v3327, 0.0
      %v3360 = vmax.f32 %v3328, 0.0
      %v3361 = vmax.f32 %v3329, 0.0
      %v3362 = vmax.f32 %v3330, 0.0
      %v3363 = vmax.f32 %v3331, 0.0
      %v3364 = vmax.f32 %v3332, 0.0
      %v3365 = vmax.f32 %v3333, 0.0
      %v3366 = vmax.f32 %v3334, 0.0
      %v3367 = vmax.f32 %v3335, 0.0
      %v3368 = vmax.f32 %v3336, 0.0
      %v3369 = vmax.f32 %v3337, 0.0
      %v3370 = vmax.f32 %v3338, 0.0
      %v3371 = vmax.f32 %v3339, 0.0
      %v3372 = vmax.f32 %v3340, 0.0
      %v3373 = vmax.f32 %v3341, 0.0
      %v3374 = vmax.f32 %v3342, 0.0
      %v3375 = vmax.f32 %v3343, 0.0
      %v3376 = vmax.f32 %v3344, 0.0
      %v3377 = vmax.f32 %v3345, 0.0
      %v3378 = vmax.f32 %v3346, 0.0
      %v3379 = vmax.f32 %v3347, 0.0
      %v3380 = vpack.c.bf16 %v3349, %v3348
      %v3381 = vpack.c.bf16 %v3351, %v3350
      %v3382 = vpack.c.bf16 %v3353, %v3352
      %v3383 = vpack.c.bf16 %v3355, %v3354
      %v3384 = vpack.c.bf16 %v3357, %v3356
      %v3385 = vpack.c.bf16 %v3359, %v3358
      %v3386 = vpack.c.bf16 %v3361, %v3360
      %v3387 = vpack.c.bf16 %v3363, %v3362
      %v3388 = vpack.c.bf16 %v3365, %v3364
      %v3389 = vpack.c.bf16 %v3367, %v3366
      %v3390 = vpack.c.bf16 %v3369, %v3368
      %v3391 = vpack.c.bf16 %v3371, %v3370
      %v3392 = vpack.c.bf16 %v3373, %v3372
      %v3393 = vpack.c.bf16 %v3375, %v3374
      %v3394 = vpack.c.bf16 %v3377, %v3376
      %v3395 = vpack.c.bf16 %v3379, %v3378
      %v3412 = vunpack.c.l.b16 %v3381
      %v3413 = vunpack.c.h.b16 %v3381
      %v3414 = vunpack.c.l.b16 %v3380
      %v3415 = vunpack.c.h.b16 %v3380
      %v3416 = vunpack.c.l.b16 %v3382
      %v3417 = vunpack.c.h.b16 %v3382
      %v3418 = vunpack.c.l.b16 %v3383
      %v3419 = vunpack.c.h.b16 %v3383
      %v3420 = vunpack.c.l.b16 %v3384
      %v3421 = vunpack.c.h.b16 %v3384
      %v3422 = vunpack.c.l.b16 %v3385
      %v3423 = vunpack.c.h.b16 %v3385
      %v3424 = vunpack.c.l.b16 %v3386
      %v3425 = vunpack.c.h.b16 %v3386
      %v3426 = vunpack.c.l.b16 %v3387
      %v3427 = vunpack.c.h.b16 %v3387
      %v3428 = vunpack.c.l.b16 %v3388
      %v3429 = vunpack.c.h.b16 %v3388
      %v3430 = vunpack.c.l.b16 %v3389
      %v3431 = vunpack.c.h.b16 %v3389
      %v3432 = vunpack.c.l.b16 %v3390
      %v3433 = vunpack.c.h.b16 %v3390
      %v3434 = vunpack.c.l.b16 %v3391
      %v3435 = vunpack.c.h.b16 %v3391
      %v3436 = vunpack.c.l.b16 %v3392
      %v3437 = vunpack.c.h.b16 %v3392
      %v3438 = vunpack.c.l.b16 %v3393
      %v3439 = vunpack.c.h.b16 %v3393
      %v3440 = vunpack.c.l.b16 %v3394
      %v3441 = vunpack.c.h.b16 %v3394
      %v3442 = vunpack.c.l.b16 %v3395
      %v3443 = vunpack.c.h.b16 %v3395
      %v3444 = vpack.c.b16 %v3412, %v3412
      %v3445 = vpack.c.b16 %v3413, %v3413
      %v3446 = vpack.c.b16 %v3414, %v3414
      %v3447 = vpack.c.b16 %v3415, %v3415
      %v3448 = vpack.c.b16 %v3416, %v3416
      %v3449 = vpack.c.b16 %v3417, %v3417
      %v3450 = vpack.c.b16 %v3418, %v3418
      %v3451 = vpack.c.b16 %v3419, %v3419
      %v3452 = vpack.c.b16 %v3420, %v3420
      %v3453 = vpack.c.b16 %v3421, %v3421
      %v3454 = vpack.c.b16 %v3422, %v3422
      %v3455 = vpack.c.b16 %v3423, %v3423
      %v3456 = vpack.c.b16 %v3424, %v3424
      %v3457 = vpack.c.b16 %v3425, %v3425
      %v3458 = vpack.c.b16 %v3426, %v3426
      %v3459 = vpack.c.b16 %v3427, %v3427
      %v3460 = vpack.c.b16 %v3428, %v3428
      %v3461 = vpack.c.b16 %v3429, %v3429
      %v3462 = vpack.c.b16 %v3430, %v3430
      %v3463 = vpack.c.b16 %v3431, %v3431
      %v3464 = vpack.c.b16 %v3432, %v3432
      %v3465 = vpack.c.b16 %v3433, %v3433
      %v3466 = vpack.c.b16 %v3434, %v3434
      %v3467 = vpack.c.b16 %v3435, %v3435
      %v3468 = vpack.c.b16 %v3436, %v3436
      %v3469 = vpack.c.b16 %v3437, %v3437
      %v3470 = vpack.c.b16 %v3438, %v3438
      %v3471 = vpack.c.b16 %v3439, %v3439
      %v3472 = vpack.c.b16 %v3440, %v3440
      %v3473 = vpack.c.b16 %v3441, %v3441
      %v3474 = vpack.c.b16 %v3442, %v3442
      %v3475 = vpack.c.b16 %v3443, %v3443
      %v3477 = vshrl.u32 %v3444, 16
      %v3479 = vrot.slane %v3477, 7
      %v3480 = vshll.u32 %v3444, 16
      %v3482 = vor.u32 %v3479, %v3480
      %v3483 = vrot.slane %v3479, 4
      %v3485 = vshrl.u32 %v3445, 16
      %v3487 = vrot.slane %v3485, 7
      %v3488 = vshll.u32 %v3445, 16
      %v3490 = vor.u32 %v3487, %v3488
      %v3491 = vsel %vm302, %v3483, %v3490
      %v3492 = vrot.slane %v3487, 4
      %v3494 = vshrl.u32 %v3446, 16
      %v3496 = vrot.slane %v3494, 7
      %v3497 = vshll.u32 %v3446, 16
      %v3499 = vor.u32 %v3496, %v3497
      %v3500 = vrot.slane %v3496, 4
      %v3502 = vshrl.u32 %v3447, 16
      %v3504 = vrot.slane %v3502, 7
      %v3505 = vshll.u32 %v3447, 16
      %v3507 = vor.u32 %v3504, %v3505
      %v3508 = vsel %vm302, %v3500, %v3507
      %v3509 = vrot.slane %v3504, 4
      %v3511 = vshrl.u32 %v3448, 16
      %v3513 = vrot.slane %v3511, 7
      %v3514 = vshll.u32 %v3448, 16
      %v3516 = vor.u32 %v3513, %v3514
      %v3517 = vrot.slane %v3513, 4
      %v3519 = vshrl.u32 %v3449, 16
      %v3521 = vrot.slane %v3519, 7
      %v3522 = vshll.u32 %v3449, 16
      %v3524 = vor.u32 %v3521, %v3522
      %v3525 = vsel %vm302, %v3517, %v3524
      %v3526 = vrot.slane %v3521, 4
      %v3528 = vshrl.u32 %v3450, 16
      %v3530 = vrot.slane %v3528, 7
      %v3531 = vshll.u32 %v3450, 16
      %v3533 = vor.u32 %v3530, %v3531
      %v3534 = vrot.slane %v3530, 4
      %v3536 = vshrl.u32 %v3451, 16
      %v3538 = vrot.slane %v3536, 7
      %v3539 = vshll.u32 %v3451, 16
      %v3541 = vor.u32 %v3538, %v3539
      %v3542 = vsel %vm302, %v3534, %v3541
      %v3543 = vrot.slane %v3538, 4
      %v3545 = vshrl.u32 %v3452, 16
      %v3547 = vrot.slane %v3545, 7
      %v3548 = vshll.u32 %v3452, 16
      %v3550 = vor.u32 %v3547, %v3548
      %v3551 = vrot.slane %v3547, 4
      %v3553 = vshrl.u32 %v3453, 16
      %v3555 = vrot.slane %v3553, 7
      %v3556 = vshll.u32 %v3453, 16
      %v3558 = vor.u32 %v3555, %v3556
      %v3559 = vsel %vm302, %v3551, %v3558
      %v3560 = vrot.slane %v3555, 4
      %v3562 = vshrl.u32 %v3454, 16
      %v3564 = vrot.slane %v3562, 7
      %v3565 = vshll.u32 %v3454, 16
      %v3567 = vor.u32 %v3564, %v3565
      %v3568 = vrot.slane %v3564, 4
      %v3570 = vshrl.u32 %v3455, 16
      %v3572 = vrot.slane %v3570, 7
      %v3573 = vshll.u32 %v3455, 16
      %v3575 = vor.u32 %v3572, %v3573
      %v3576 = vsel %vm302, %v3568, %v3575
      %v3577 = vrot.slane %v3572, 4
      %v3579 = vshrl.u32 %v3456, 16
      %v3581 = vrot.slane %v3579, 7
      %v3582 = vshll.u32 %v3456, 16
      %v3584 = vor.u32 %v3581, %v3582
      %v3585 = vrot.slane %v3581, 4
      %v3587 = vshrl.u32 %v3457, 16
      %v3589 = vrot.slane %v3587, 7
      %v3590 = vshll.u32 %v3457, 16
      %v3592 = vor.u32 %v3589, %v3590
      %v3593 = vsel %vm302, %v3585, %v3592
      %v3594 = vrot.slane %v3589, 4
      %v3596 = vshrl.u32 %v3458, 16
      %v3598 = vrot.slane %v3596, 7
      %v3599 = vshll.u32 %v3458, 16
      %v3601 = vor.u32 %v3598, %v3599
      %v3602 = vrot.slane %v3598, 4
      %v3604 = vshrl.u32 %v3459, 16
      %v3606 = vrot.slane %v3604, 7
      %v3607 = vshll.u32 %v3459, 16
      %v3609 = vor.u32 %v3606, %v3607
      %v3610 = vsel %vm302, %v3602, %v3609
      %v3611 = vrot.slane %v3606, 4
      %v3613 = vshrl.u32 %v3460, 16
      %v3615 = vrot.slane %v3613, 7
      %v3616 = vshll.u32 %v3460, 16
      %v3618 = vor.u32 %v3615, %v3616
      %v3619 = vrot.slane %v3615, 4
      %v3621 = vshrl.u32 %v3461, 16
      %v3623 = vrot.slane %v3621, 7
      %v3624 = vshll.u32 %v3461, 16
      %v3626 = vor.u32 %v3623, %v3624
      %v3627 = vsel %vm302, %v3619, %v3626
      %v3628 = vrot.slane %v3623, 4
      %v3630 = vshrl.u32 %v3462, 16
      %v3632 = vrot.slane %v3630, 7
      %v3633 = vshll.u32 %v3462, 16
      %v3635 = vor.u32 %v3632, %v3633
      %v3636 = vrot.slane %v3632, 4
      %v3638 = vshrl.u32 %v3463, 16
      %v3640 = vrot.slane %v3638, 7
      %v3641 = vshll.u32 %v3463, 16
      %v3643 = vor.u32 %v3640, %v3641
      %v3644 = vsel %vm302, %v3636, %v3643
      %v3645 = vrot.slane %v3640, 4
      %v3647 = vshrl.u32 %v3464, 16
      %v3649 = vrot.slane %v3647, 7
      %v3650 = vshll.u32 %v3464, 16
      %v3652 = vor.u32 %v3649, %v3650
      %v3653 = vrot.slane %v3649, 4
      %v3655 = vshrl.u32 %v3465, 16
      %v3657 = vrot.slane %v3655, 7
      %v3658 = vshll.u32 %v3465, 16
      %v3660 = vor.u32 %v3657, %v3658
      %v3661 = vsel %vm302, %v3653, %v3660
      %v3662 = vrot.slane %v3657, 4
      %v3664 = vshrl.u32 %v3466, 16
      %v3666 = vrot.slane %v3664, 7
      %v3667 = vshll.u32 %v3466, 16
      %v3669 = vor.u32 %v3666, %v3667
      %v3670 = vrot.slane %v3666, 4
      %v3672 = vshrl.u32 %v3467, 16
      %v3674 = vrot.slane %v3672, 7
      %v3675 = vshll.u32 %v3467, 16
      %v3677 = vor.u32 %v3674, %v3675
      %v3678 = vsel %vm302, %v3670, %v3677
      %v3679 = vrot.slane %v3674, 4
      %v3681 = vshrl.u32 %v3468, 16
      %v3683 = vrot.slane %v3681, 7
      %v3684 = vshll.u32 %v3468, 16
      %v3686 = vor.u32 %v3683, %v3684
      %v3687 = vrot.slane %v3683, 4
      %v3689 = vshrl.u32 %v3469, 16
      %v3691 = vrot.slane %v3689, 7
      %v3692 = vshll.u32 %v3469, 16
      %v3694 = vor.u32 %v3691, %v3692
      %v3695 = vsel %vm302, %v3687, %v3694
      %v3696 = vrot.slane %v3691, 4
      %v3698 = vshrl.u32 %v3470, 16
      %v3700 = vrot.slane %v3698, 7
      %v3701 = vshll.u32 %v3470, 16
      %v3703 = vor.u32 %v3700, %v3701
      %v3704 = vrot.slane %v3700, 4
      %v3706 = vshrl.u32 %v3471, 16
      %v3708 = vrot.slane %v3706, 7
      %v3709 = vshll.u32 %v3471, 16
      %v3711 = vor.u32 %v3708, %v3709
      %v3712 = vsel %vm302, %v3704, %v3711
      %v3713 = vrot.slane %v3708, 4
      %v3715 = vshrl.u32 %v3472, 16
      %v3717 = vrot.slane %v3715, 7
      %v3718 = vshll.u32 %v3472, 16
      %v3720 = vor.u32 %v3717, %v3718
      %v3721 = vrot.slane %v3717, 4
      %v3723 = vshrl.u32 %v3473, 16
      %v3725 = vrot.slane %v3723, 7
      %v3726 = vshll.u32 %v3473, 16
      %v3728 = vor.u32 %v3725, %v3726
      %v3729 = vsel %vm302, %v3721, %v3728
      %v3730 = vrot.slane %v3725, 4
      %v3732 = vshrl.u32 %v3474, 16
      %v3734 = vrot.slane %v3732, 7
      %v3735 = vshll.u32 %v3474, 16
      %v3737 = vor.u32 %v3734, %v3735
      %v3738 = vrot.slane %v3734, 4
      %v3740 = vshrl.u32 %v3475, 16
      %v3742 = vrot.slane %v3740, 7
      %v3743 = vshll.u32 %v3475, 16
      %v3745 = vor.u32 %v3742, %v3743
      %v3746 = vsel %vm302, %v3738, %v3745
      %v3747 = vrot.slane %v3742, 4
      %v3796 = vld [vmem:[#allocation2] sm:$0xf]
      %v3797 = vsel %vm625, %v3482, %v3796
      %3798 = vst [vmem:[#allocation2] sm:$0xf] %v3797
      %3799 = vst.msk [vmem:[#allocation2 + $0x4] sm:$0xf] %vm629, %v3491
      %v3800 = vld [vmem:[#allocation2 + $0x8] sm:$0x1]
      %v3801 = vsel %vm632, %v3492, %v3800
      %3802 = vst [vmem:[#allocation2 + $0x8] sm:$0x1] %v3801
      %v3803 = vld [vmem:[#allocation2 + $0xc] sm:$0xf]
      %v3804 = vsel %vm625, %v3499, %v3803
      %3805 = vst [vmem:[#allocation2 + $0xc] sm:$0xf] %v3804
      %3806 = vst.msk [vmem:[#allocation2 + $0x10] sm:$0xf] %vm629, %v3508
      %v3807 = vld [vmem:[#allocation2 + $0x14] sm:$0x1]
      %v3808 = vsel %vm632, %v3509, %v3807
      %3809 = vst [vmem:[#allocation2 + $0x14] sm:$0x1] %v3808
      %v3810 = vld [vmem:[#allocation2 + $0x18] sm:$0xf]
      %v3811 = vsel %vm625, %v3482, %v3810
      %3812 = vst [vmem:[#allocation2 + $0x18] sm:$0xf] %v3811
      %3813 = vst.msk [vmem:[#allocation2 + $0x1c] sm:$0xf] %vm629, %v3491
      %v3814 = vld [vmem:[#allocation2 + $0x20] sm:$0x1]
      %v3815 = vsel %vm632, %v3492, %v3814
      %3816 = vst [vmem:[#allocation2 + $0x20] sm:$0x1] %v3815
      %v3817 = vld [vmem:[#allocation2 + $0x24] sm:$0xf]
      %v3818 = vsel %vm625, %v3516, %v3817
      %3819 = vst [vmem:[#allocation2 + $0x24] sm:$0xf] %v3818
      %3820 = vst.msk [vmem:[#allocation2 + $0x28] sm:$0xf] %vm629, %v3525
      %v3821 = vld [vmem:[#allocation2 + $0x2c] sm:$0x1]
      %v3822 = vsel %vm632, %v3526, %v3821
      %3823 = vst [vmem:[#allocation2 + $0x2c] sm:$0x1] %v3822
      %v3824 = vld [vmem:[#allocation2 + $0x30] sm:$0xf]
      %v3825 = vsel %vm625, %v3533, %v3824
      %3826 = vst [vmem:[#allocation2 + $0x30] sm:$0xf] %v3825
      %3827 = vst.msk [vmem:[#allocation2 + $0x34] sm:$0xf] %vm629, %v3542
      %v3828 = vld [vmem:[#allocation2 + $0x38] sm:$0x1]
      %v3829 = vsel %vm632, %v3543, %v3828
      %3830 = vst [vmem:[#allocation2 + $0x38] sm:$0x1] %v3829
      %v3831 = vld [vmem:[#allocation2 + $0x3c] sm:$0xf]
      %v3832 = vsel %vm625, %v3550, %v3831
      %3833 = vst [vmem:[#allocation2 + $0x3c] sm:$0xf] %v3832
      %3834 = vst.msk [vmem:[#allocation2 + $0x40] sm:$0xf] %vm629, %v3559
      %v3835 = vld [vmem:[#allocation2 + $0x44] sm:$0x1]
      %v3836 = vsel %vm632, %v3560, %v3835
      %3837 = vst [vmem:[#allocation2 + $0x44] sm:$0x1] %v3836
      %v3838 = vld [vmem:[#allocation2 + $0x48] sm:$0xf]
      %v3839 = vsel %vm625, %v3567, %v3838
      %3840 = vst [vmem:[#allocation2 + $0x48] sm:$0xf] %v3839
      %3841 = vst.msk [vmem:[#allocation2 + $0x4c] sm:$0xf] %vm629, %v3576
      %v3842 = vld [vmem:[#allocation2 + $0x50] sm:$0x1]
      %v3843 = vsel %vm632, %v3577, %v3842
      %3844 = vst [vmem:[#allocation2 + $0x50] sm:$0x1] %v3843
      %v3845 = vld [vmem:[#allocation2 + $0x54] sm:$0xf]
      %v3846 = vsel %vm625, %v3584, %v3845
      %3847 = vst [vmem:[#allocation2 + $0x54] sm:$0xf] %v3846
      %3848 = vst.msk [vmem:[#allocation2 + $0x58] sm:$0xf] %vm629, %v3593
      %v3849 = vld [vmem:[#allocation2 + $0x5c] sm:$0x1]
      %v3850 = vsel %vm632, %v3594, %v3849
      %3851 = vst [vmem:[#allocation2 + $0x5c] sm:$0x1] %v3850
      %v3852 = vld [vmem:[#allocation2 + $0x60] sm:$0xf]
      %v3853 = vsel %vm625, %v3601, %v3852
      %3854 = vst [vmem:[#allocation2 + $0x60] sm:$0xf] %v3853
      %3855 = vst.msk [vmem:[#allocation2 + $0x64] sm:$0xf] %vm629, %v3610
      %v3856 = vld [vmem:[#allocation2 + $0x68] sm:$0x1]
      %v3857 = vsel %vm632, %v3611, %v3856
      %3858 = vst [vmem:[#allocation2 + $0x68] sm:$0x1] %v3857
      %v3859 = vld [vmem:[#allocation2 + $0x6c] sm:$0xf]
      %v3860 = vsel %vm625, %v3618, %v3859
      %3861 = vst [vmem:[#allocation2 + $0x6c] sm:$0xf] %v3860
      %3862 = vst.msk [vmem:[#allocation2 + $0x70] sm:$0xf] %vm629, %v3627
      %v3863 = vld [vmem:[#allocation2 + $0x74] sm:$0x1]
      %v3864 = vsel %vm632, %v3628, %v3863
      %3865 = vst [vmem:[#allocation2 + $0x74] sm:$0x1] %v3864
      %v3866 = vld [vmem:[#allocation2 + $0x78] sm:$0xf]
      %v3867 = vsel %vm625, %v3635, %v3866
      %3868 = vst [vmem:[#allocation2 + $0x78] sm:$0xf] %v3867
      %3869 = vst.msk [vmem:[#allocation2 + $0x7c] sm:$0xf] %vm629, %v3644
      %v3870 = vld [vmem:[#allocation2 + $0x80] sm:$0x1]
      %v3871 = vsel %vm632, %v3645, %v3870
      %3872 = vst [vmem:[#allocation2 + $0x80] sm:$0x1] %v3871
      %v3873 = vld [vmem:[#allocation2 + $0x84] sm:$0xf]
      %v3874 = vsel %vm625, %v3652, %v3873
      %3875 = vst [vmem:[#allocation2 + $0x84] sm:$0xf] %v3874
      %3876 = vst.msk [vmem:[#allocation2 + $0x88] sm:$0xf] %vm629, %v3661
      %v3877 = vld [vmem:[#allocation2 + $0x8c] sm:$0x1]
      %v3878 = vsel %vm632, %v3662, %v3877
      %3879 = vst [vmem:[#allocation2 + $0x8c] sm:$0x1] %v3878
      %v3880 = vld [vmem:[#allocation2 + $0x90] sm:$0xf]
      %v3881 = vsel %vm625, %v3669, %v3880
      %3882 = vst [vmem:[#allocation2 + $0x90] sm:$0xf] %v3881
      %3883 = vst.msk [vmem:[#allocation2 + $0x94] sm:$0xf] %vm629, %v3678
      %v3884 = vld [vmem:[#allocation2 + $0x98] sm:$0x1]
      %v3885 = vsel %vm632, %v3679, %v3884
      %3886 = vst [vmem:[#allocation2 + $0x98] sm:$0x1] %v3885
      %v3887 = vld [vmem:[#allocation2 + $0x9c] sm:$0xf]
      %v3888 = vsel %vm625, %v3686, %v3887
      %3889 = vst [vmem:[#allocation2 + $0x9c] sm:$0xf] %v3888
      %3890 = vst.msk [vmem:[#allocation2 + $0xa0] sm:$0xf] %vm629, %v3695
      %v3891 = vld [vmem:[#allocation2 + $0xa4] sm:$0x1]
      %v3892 = vsel %vm632, %v3696, %v3891
      %3893 = vst [vmem:[#allocation2 + $0xa4] sm:$0x1] %v3892
      %v3894 = vld [vmem:[#allocation2 + $0xa8] sm:$0xf]
      %v3895 = vsel %vm625, %v3703, %v3894
      %3896 = vst [vmem:[#allocation2 + $0xa8] sm:$0xf] %v3895
      %3897 = vst.msk [vmem:[#allocation2 + $0xac] sm:$0xf] %vm629, %v3712
      %v3898 = vld [vmem:[#allocation2 + $0xb0] sm:$0x1]
      %v3899 = vsel %vm632, %v3713, %v3898
      %3900 = vst [vmem:[#allocation2 + $0xb0] sm:$0x1] %v3899
      %v3901 = vld [vmem:[#allocation2 + $0xb4] sm:$0xf]
      %v3902 = vsel %vm625, %v3720, %v3901
      %3903 = vst [vmem:[#allocation2 + $0xb4] sm:$0xf] %v3902
      %3904 = vst.msk [vmem:[#allocation2 + $0xb8] sm:$0xf] %vm629, %v3729
      %v3905 = vld [vmem:[#allocation2 + $0xbc] sm:$0x1]
      %v3906 = vsel %vm632, %v3730, %v3905
      %3907 = vst [vmem:[#allocation2 + $0xbc] sm:$0x1] %v3906
      %v3908 = vld [vmem:[#allocation2 + $0xc0] sm:$0xf]
      %v3909 = vsel %vm625, %v3737, %v3908
      %3910 = vst [vmem:[#allocation2 + $0xc0] sm:$0xf] %v3909
      %3911 = vst.msk [vmem:[#allocation2 + $0xc4] sm:$0xf] %vm629, %v3746
      %v3912 = vld [vmem:[#allocation2 + $0xc8] sm:$0x1]
      %v3913 = vsel %vm632, %v3747, %v3912
      %3914 = vst [vmem:[#allocation2 + $0xc8] sm:$0x1] %v3913
      %v3915 = vld [vmem:[#allocation2 + $0xcc] sm:$0xf]
      %v3916 = vsel %vm625, %v3720, %v3915
      %3917 = vst [vmem:[#allocation2 + $0xcc] sm:$0xf] %v3916
      %3918 = vst.msk [vmem:[#allocation2 + $0xd0] sm:$0xf] %vm629, %v3729
      %v3919 = vld [vmem:[#allocation2 + $0xd4] sm:$0x1]
      %v3920 = vsel %vm632, %v3730, %v3919
      %3921 = vst [vmem:[#allocation2 + $0xd4] sm:$0x1] %v3920
      %v3922 = vrot.slane %v3477, 4
      %v3923 = vrot.slane %v3922, 4
      %v3924 = vrot.slane %v3494, 4
      %v3925 = vrot.slane %v3924, 4
      %v3926 = vrot.slane %v3511, 4
      %v3927 = vrot.slane %v3926, 4
      %v3928 = vrot.slane %v3528, 4
      %v3929 = vrot.slane %v3928, 4
      %v3930 = vrot.slane %v3545, 4
      %v3931 = vrot.slane %v3930, 4
      %v3932 = vrot.slane %v3562, 4
      %v3933 = vrot.slane %v3932, 4
      %v3934 = vrot.slane %v3579, 4
      %v3935 = vrot.slane %v3934, 4
      %v3936 = vrot.slane %v3596, 4
      %v3937 = vrot.slane %v3936, 4
      %v3938 = vrot.slane %v3613, 4
      %v3939 = vrot.slane %v3938, 4
      %v3940 = vrot.slane %v3630, 4
      %v3941 = vrot.slane %v3940, 4
      %v3942 = vrot.slane %v3647, 4
      %v3943 = vrot.slane %v3942, 4
      %v3944 = vrot.slane %v3664, 4
      %v3945 = vrot.slane %v3944, 4
      %v3946 = vrot.slane %v3681, 4
      %v3947 = vrot.slane %v3946, 4
      %v3948 = vrot.slane %v3698, 4
      %v3949 = vrot.slane %v3948, 4
      %v3950 = vrot.slane %v3715, 4
      %v3951 = vrot.slane %v3950, 4
      %v3952 = vrot.slane %v3732, 4
      %v3953 = vrot.slane %v3952, 4
      %v3970 = vld [vmem:[#allocation2] sm:$0x1]
      %v3971 = vsel %vm632, %v3923, %v3970
      %3972 = vst [vmem:[#allocation2] sm:$0x1] %v3971
      %v3973 = vld [vmem:[#allocation2 + $0xc] sm:$0x1]
      %v3974 = vsel %vm632, %v3925, %v3973
      %3975 = vst [vmem:[#allocation2 + $0xc] sm:$0x1] %v3974
      %v3976 = vld [vmem:[#allocation2 + $0x18] sm:$0x1]
      %v3977 = vsel %vm632, %v3923, %v3976
      %3978 = vst [vmem:[#allocation2 + $0x18] sm:$0x1] %v3977
      %v3979 = vld [vmem:[#allocation2 + $0x24] sm:$0x1]
      %v3980 = vsel %vm632, %v3927, %v3979
      %3981 = vst [vmem:[#allocation2 + $0x24] sm:$0x1] %v3980
      %v3982 = vld [vmem:[#allocation2 + $0x30] sm:$0x1]
      %v3983 = vsel %vm632, %v3929, %v3982
      %3984 = vst [vmem:[#allocation2 + $0x30] sm:$0x1] %v3983
      %v3985 = vld [vmem:[#allocation2 + $0x3c] sm:$0x1]
      %v3986 = vsel %vm632, %v3931, %v3985
      %3987 = vst [vmem:[#allocation2 + $0x3c] sm:$0x1] %v3986
      %v3988 = vld [vmem:[#allocation2 + $0x48] sm:$0x1]
      %v3989 = vsel %vm632, %v3933, %v3988
      %3990 = vst [vmem:[#allocation2 + $0x48] sm:$0x1] %v3989
      %v3991 = vld [vmem:[#allocation2 + $0x54] sm:$0x1]
      %v3992 = vsel %vm632, %v3935, %v3991
      %3993 = vst [vmem:[#allocation2 + $0x54] sm:$0x1] %v3992
      %v3994 = vld [vmem:[#allocation2 + $0x60] sm:$0x1]
      %v3995 = vsel %vm632, %v3937, %v3994
      %3996 = vst [vmem:[#allocation2 + $0x60] sm:$0x1] %v3995
      %v3997 = vld [vmem:[#allocation2 + $0x6c] sm:$0x1]
      %v3998 = vsel %vm632, %v3939, %v3997
      %3999 = vst [vmem:[#allocation2 + $0x6c] sm:$0x1] %v3998
      %v4000 = vld [vmem:[#allocation2 + $0x78] sm:$0x1]
      %v4001 = vsel %vm632, %v3941, %v4000
      %4002 = vst [vmem:[#allocation2 + $0x78] sm:$0x1] %v4001
      %v4003 = vld [vmem:[#allocation2 + $0x84] sm:$0x1]
      %v4004 = vsel %vm632, %v3943, %v4003
      %4005 = vst [vmem:[#allocation2 + $0x84] sm:$0x1] %v4004
      %v4006 = vld [vmem:[#allocation2 + $0x90] sm:$0x1]
      %v4007 = vsel %vm632, %v3945, %v4006
      %4008 = vst [vmem:[#allocation2 + $0x90] sm:$0x1] %v4007
      %v4009 = vld [vmem:[#allocation2 + $0x9c] sm:$0x1]
      %v4010 = vsel %vm632, %v3947, %v4009
      %4011 = vst [vmem:[#allocation2 + $0x9c] sm:$0x1] %v4010
      %v4012 = vld [vmem:[#allocation2 + $0xa8] sm:$0x1]
      %v4013 = vsel %vm632, %v3949, %v4012
      %4014 = vst [vmem:[#allocation2 + $0xa8] sm:$0x1] %v4013
      %v4015 = vld [vmem:[#allocation2 + $0xb4] sm:$0x1]
      %v4016 = vsel %vm632, %v3951, %v4015
      %4017 = vst [vmem:[#allocation2 + $0xb4] sm:$0x1] %v4016
      %v4018 = vld [vmem:[#allocation2 + $0xc0] sm:$0x1]
      %v4019 = vsel %vm632, %v3953, %v4018
      %4020 = vst [vmem:[#allocation2 + $0xc0] sm:$0x1] %v4019
      %v4021 = vld [vmem:[#allocation2 + $0xcc] sm:$0x1]
      %v4022 = vsel %vm632, %v3951, %v4021
      %4023 = vst [vmem:[#allocation2 + $0xcc] sm:$0x1] %v4022
      %v4024 = vrot.slane %v3488, 7
      %v4025 = vrot.slane %v4024, 4
      %v4026 = vrot.slane %v3505, 7
      %v4027 = vrot.slane %v4026, 4
      %v4028 = vrot.slane %v3522, 7
      %v4029 = vrot.slane %v4028, 4
      %v4030 = vrot.slane %v3539, 7
      %v4031 = vrot.slane %v4030, 4
      %v4032 = vrot.slane %v3556, 7
      %v4033 = vrot.slane %v4032, 4
      %v4034 = vrot.slane %v3573, 7
      %v4035 = vrot.slane %v4034, 4
      %v4036 = vrot.slane %v3590, 7
      %v4037 = vrot.slane %v4036, 4
      %v4038 = vrot.slane %v3607, 7
      %v4039 = vrot.slane %v4038, 4
      %v4040 = vrot.slane %v3624, 7
      %v4041 = vrot.slane %v4040, 4
      %v4042 = vrot.slane %v3641, 7
      %v4043 = vrot.slane %v4042, 4
      %v4044 = vrot.slane %v3658, 7
      %v4045 = vrot.slane %v4044, 4
      %v4046 = vrot.slane %v3675, 7
      %v4047 = vrot.slane %v4046, 4
      %v4048 = vrot.slane %v3692, 7
      %v4049 = vrot.slane %v4048, 4
      %v4050 = vrot.slane %v3709, 7
      %v4051 = vrot.slane %v4050, 4
      %v4052 = vrot.slane %v3726, 7
      %v4053 = vrot.slane %v4052, 4
      %v4054 = vrot.slane %v3743, 7
      %v4055 = vrot.slane %v4054, 4
      %v4072 = vld [vmem:[#allocation2 + $0x8] sm:$0x1]
      %v4073 = vsel %vm905, %v4025, %v4072
      %4074 = vst [vmem:[#allocation2 + $0x8] sm:$0x1] %v4073
      %v4075 = vld [vmem:[#allocation2 + $0x14] sm:$0x1]
      %v4076 = vsel %vm905, %v4027, %v4075
      %4077 = vst [vmem:[#allocation2 + $0x14] sm:$0x1] %v4076
      %v4078 = vld [vmem:[#allocation2 + $0x20] sm:$0x1]
      %v4079 = vsel %vm905, %v4025, %v4078
      %4080 = vst [vmem:[#allocation2 + $0x20] sm:$0x1] %v4079
      %v4081 = vld [vmem:[#allocation2 + $0x2c] sm:$0x1]
      %v4082 = vsel %vm905, %v4029, %v4081
      %4083 = vst [vmem:[#allocation2 + $0x2c] sm:$0x1] %v4082
      %v4084 = vld [vmem:[#allocation2 + $0x38] sm:$0x1]
      %v4085 = vsel %vm905, %v4031, %v4084
      %4086 = vst [vmem:[#allocation2 + $0x38] sm:$0x1] %v4085
      %v4087 = vld [vmem:[#allocation2 + $0x44] sm:$0x1]
      %v4088 = vsel %vm905, %v4033, %v4087
      %4089 = vst [vmem:[#allocation2 + $0x44] sm:$0x1] %v4088
      %v4090 = vld [vmem:[#allocation2 + $0x50] sm:$0x1]
      %v4091 = vsel %vm905, %v4035, %v4090
      %4092 = vst [vmem:[#allocation2 + $0x50] sm:$0x1] %v4091
      %v4093 = vld [vmem:[#allocation2 + $0x5c] sm:$0x1]
      %v4094 = vsel %vm905, %v4037, %v4093
      %4095 = vst [vmem:[#allocation2 + $0x5c] sm:$0x1] %v4094
      %v4096 = vld [vmem:[#allocation2 + $0x68] sm:$0x1]
      %v4097 = vsel %vm905, %v4039, %v4096
      %4098 = vst [vmem:[#allocation2 + $0x68] sm:$0x1] %v4097
      %v4099 = vld [vmem:[#allocation2 + $0x74] sm:$0x1]
      %v4100 = vsel %vm905, %v4041, %v4099
      %4101 = vst [vmem:[#allocation2 + $0x74] sm:$0x1] %v4100
      %v4102 = vld [vmem:[#allocation2 + $0x80] sm:$0x1]
      %v4103 = vsel %vm905, %v4043, %v4102
      %4104 = vst [vmem:[#allocation2 + $0x80] sm:$0x1] %v4103
      %v4105 = vld [vmem:[#allocation2 + $0x8c] sm:$0x1]
      %v4106 = vsel %vm905, %v4045, %v4105
      %4107 = vst [vmem:[#allocation2 + $0x8c] sm:$0x1] %v4106
      %v4108 = vld [vmem:[#allocation2 + $0x98] sm:$0x1]
      %v4109 = vsel %vm905, %v4047, %v4108
      %4110 = vst [vmem:[#allocation2 + $0x98] sm:$0x1] %v4109
      %v4111 = vld [vmem:[#allocation2 + $0xa4] sm:$0x1]
      %v4112 = vsel %vm905, %v4049, %v4111
      %4113 = vst [vmem:[#allocation2 + $0xa4] sm:$0x1] %v4112
      %v4114 = vld [vmem:[#allocation2 + $0xb0] sm:$0x1]
      %v4115 = vsel %vm905, %v4051, %v4114
      %4116 = vst [vmem:[#allocation2 + $0xb0] sm:$0x1] %v4115
      %v4117 = vld [vmem:[#allocation2 + $0xbc] sm:$0x1]
      %v4118 = vsel %vm905, %v4053, %v4117
      %4119 = vst [vmem:[#allocation2 + $0xbc] sm:$0x1] %v4118
      %v4120 = vld [vmem:[#allocation2 + $0xc8] sm:$0x1]
      %v4121 = vsel %vm905, %v4055, %v4120
      %4122 = vst [vmem:[#allocation2 + $0xc8] sm:$0x1] %v4121
      %v4123 = vld [vmem:[#allocation2 + $0xd4] sm:$0x1]
      %v4124 = vsel %vm905, %v4053, %v4123
      %4125 = vst [vmem:[#allocation2 + $0xd4] sm:$0x1] %v4124
      %v4126 = vld [vmem:[#allocation2] sm:$0xf]
      %v4127 = vld [vmem:[#allocation2 + $0x4] sm:$0xf]
      %v4128 = vld [vmem:[#allocation2 + $0x8] sm:$0x1]
      %v4129 = vld [vmem:[#allocation2 + $0xc] sm:$0xf]
      %v4130 = vld [vmem:[#allocation2 + $0x10] sm:$0xf]
      %v4131 = vld [vmem:[#allocation2 + $0x14] sm:$0x1]
      %v4132 = vld [vmem:[#allocation2 + $0x18] sm:$0xf]
      %v4133 = vld [vmem:[#allocation2 + $0x1c] sm:$0xf]
      %v4134 = vld [vmem:[#allocation2 + $0x20] sm:$0x1]
      %v4135 = vld [vmem:[#allocation2 + $0x24] sm:$0xf]
      %v4136 = vld [vmem:[#allocation2 + $0x28] sm:$0xf]
      %v4137 = vld [vmem:[#allocation2 + $0x2c] sm:$0x1]
      %v4138 = vld [vmem:[#allocation2 + $0x30] sm:$0xf]
      %v4139 = vld [vmem:[#allocation2 + $0x34] sm:$0xf]
      %v4140 = vld [vmem:[#allocation2 + $0x38] sm:$0x1]
      %v4141 = vld [vmem:[#allocation2 + $0x3c] sm:$0xf]
      %v4142 = vld [vmem:[#allocation2 + $0x40] sm:$0xf]
      %v4143 = vld [vmem:[#allocation2 + $0x44] sm:$0x1]
      %v4144 = vld [vmem:[#allocation2 + $0x48] sm:$0xf]
      %v4145 = vld [vmem:[#allocation2 + $0x4c] sm:$0xf]
      %v4146 = vld [vmem:[#allocation2 + $0x50] sm:$0x1]
      %v4147 = vld [vmem:[#allocation2 + $0x54] sm:$0xf]
      %v4148 = vld [vmem:[#allocation2 + $0x58] sm:$0xf]
      %v4149 = vld [vmem:[#allocation2 + $0x5c] sm:$0x1]
      %v4150 = vld [vmem:[#allocation2 + $0x60] sm:$0xf]
      %v4151 = vld [vmem:[#allocation2 + $0x64] sm:$0xf]
      %v4152 = vld [vmem:[#allocation2 + $0x68] sm:$0x1]
      %v4153 = vld [vmem:[#allocation2 + $0x6c] sm:$0xf]
      %v4154 = vld [vmem:[#allocation2 + $0x70] sm:$0xf]
      %v4155 = vld [vmem:[#allocation2 + $0x74] sm:$0x1]
      %v4156 = vld [vmem:[#allocation2 + $0x78] sm:$0xf]
      %v4157 = vld [vmem:[#allocation2 + $0x7c] sm:$0xf]
      %v4158 = vld [vmem:[#allocation2 + $0x80] sm:$0x1]
      %v4159 = vld [vmem:[#allocation2 + $0x84] sm:$0xf]
      %v4160 = vld [vmem:[#allocation2 + $0x88] sm:$0xf]
      %v4161 = vld [vmem:[#allocation2 + $0x8c] sm:$0x1]
      %v4162 = vld [vmem:[#allocation2 + $0x90] sm:$0xf]
      %v4163 = vld [vmem:[#allocation2 + $0x94] sm:$0xf]
      %v4164 = vld [vmem:[#allocation2 + $0x98] sm:$0x1]
      %v4165 = vld [vmem:[#allocation2 + $0x9c] sm:$0xf]
      %v4166 = vld [vmem:[#allocation2 + $0xa0] sm:$0xf]
      %v4167 = vld [vmem:[#allocation2 + $0xa4] sm:$0x1]
      %v4168 = vld [vmem:[#allocation2 + $0xa8] sm:$0xf]
      %v4169 = vld [vmem:[#allocation2 + $0xac] sm:$0xf]
      %v4170 = vld [vmem:[#allocation2 + $0xb0] sm:$0x1]
      %v4171 = vld [vmem:[#allocation2 + $0xb4] sm:$0xf]
      %v4172 = vld [vmem:[#allocation2 + $0xb8] sm:$0xf]
      %v4173 = vld [vmem:[#allocation2 + $0xbc] sm:$0x1]
      %4174 = vst.msk [vmem:[#allocation3] sm:$0xf] %vm629, %v4126
      %4175 = vst.msk [vmem:[#allocation3 + $0x4] sm:$0xf] %vm629, %v4127
      %4176 = vst.msk [vmem:[#allocation3 + $0x8] sm:$0x1] %vm1010, %v4128
      %4177 = vst.msk [vmem:[#allocation3 + $0xc] sm:$0xf] %vm629, %v4129
      %4178 = vst.msk [vmem:[#allocation3 + $0x10] sm:$0xf] %vm629, %v4130
      %4179 = vst.msk [vmem:[#allocation3 + $0x14] sm:$0x1] %vm1010, %v4131
      %4180 = vst.msk [vmem:[#allocation3 + $0x18] sm:$0xf] %vm629, %v4132
      %4181 = vst.msk [vmem:[#allocation3 + $0x1c] sm:$0xf] %vm629, %v4133
      %4182 = vst.msk [vmem:[#allocation3 + $0x20] sm:$0x1] %vm1010, %v4134
      %4183 = vst.msk [vmem:[#allocation3 + $0x24] sm:$0xf] %vm629, %v4135
      %4184 = vst.msk [vmem:[#allocation3 + $0x28] sm:$0xf] %vm629, %v4136
      %4185 = vst.msk [vmem:[#allocation3 + $0x2c] sm:$0x1] %vm1010, %v4137
      %4186 = vst.msk [vmem:[#allocation3 + $0x30] sm:$0xf] %vm629, %v4138
      %4187 = vst.msk [vmem:[#allocation3 + $0x34] sm:$0xf] %vm629, %v4139
      %4188 = vst.msk [vmem:[#allocation3 + $0x38] sm:$0x1] %vm1010, %v4140
      %4189 = vst.msk [vmem:[#allocation3 + $0x3c] sm:$0xf] %vm629, %v4141
      %4190 = vst.msk [vmem:[#allocation3 + $0x40] sm:$0xf] %vm629, %v4142
      %4191 = vst.msk [vmem:[#allocation3 + $0x44] sm:$0x1] %vm1010, %v4143
      %4192 = vst.msk [vmem:[#allocation3 + $0x48] sm:$0xf] %vm629, %v4144
      %4193 = vst.msk [vmem:[#allocation3 + $0x4c] sm:$0xf] %vm629, %v4145
      %4194 = vst.msk [vmem:[#allocation3 + $0x50] sm:$0x1] %vm1010, %v4146
      %4195 = vst.msk [vmem:[#allocation3 + $0x54] sm:$0xf] %vm629, %v4147
      %4196 = vst.msk [vmem:[#allocation3 + $0x58] sm:$0xf] %vm629, %v4148
      %4197 = vst.msk [vmem:[#allocation3 + $0x5c] sm:$0x1] %vm1010, %v4149
      %4198 = vst.msk [vmem:[#allocation3 + $0x60] sm:$0xf] %vm629, %v4150
      %4199 = vst.msk [vmem:[#allocation3 + $0x64] sm:$0xf] %vm629, %v4151
      %4200 = vst.msk [vmem:[#allocation3 + $0x68] sm:$0x1] %vm1010, %v4152
      %4201 = vst.msk [vmem:[#allocation3 + $0x6c] sm:$0xf] %vm629, %v4153
      %4202 = vst.msk [vmem:[#allocation3 + $0x70] sm:$0xf] %vm629, %v4154
      %4203 = vst.msk [vmem:[#allocation3 + $0x74] sm:$0x1] %vm1010, %v4155
      %4204 = vst.msk [vmem:[#allocation3 + $0x78] sm:$0xf] %vm629, %v4156
      %4205 = vst.msk [vmem:[#allocation3 + $0x7c] sm:$0xf] %vm629, %v4157
      %4206 = vst.msk [vmem:[#allocation3 + $0x80] sm:$0x1] %vm1010, %v4158
      %4207 = vst.msk [vmem:[#allocation3 + $0x84] sm:$0xf] %vm629, %v4159
      %4208 = vst.msk [vmem:[#allocation3 + $0x88] sm:$0xf] %vm629, %v4160
      %4209 = vst.msk [vmem:[#allocation3 + $0x8c] sm:$0x1] %vm1010, %v4161
      %4210 = vst.msk [vmem:[#allocation3 + $0x90] sm:$0xf] %vm629, %v4162
      %4211 = vst.msk [vmem:[#allocation3 + $0x94] sm:$0xf] %vm629, %v4163
      %4212 = vst.msk [vmem:[#allocation3 + $0x98] sm:$0x1] %vm1010, %v4164
      %4213 = vst.msk [vmem:[#allocation3 + $0x9c] sm:$0xf] %vm629, %v4165
      %4214 = vst.msk [vmem:[#allocation3 + $0xa0] sm:$0xf] %vm629, %v4166
      %4215 = vst.msk [vmem:[#allocation3 + $0xa4] sm:$0x1] %vm1010, %v4167
      %4216 = vst.msk [vmem:[#allocation3 + $0xa8] sm:$0xf] %vm629, %v4168
      %4217 = vst.msk [vmem:[#allocation3 + $0xac] sm:$0xf] %vm629, %v4169
      %4218 = vst.msk [vmem:[#allocation3 + $0xb0] sm:$0x1] %vm1010, %v4170
      %4219 = vst.msk [vmem:[#allocation3 + $0xb4] sm:$0xf] %vm629, %v4171
      %4220 = vst.msk [vmem:[#allocation3 + $0xb8] sm:$0xf] %vm629, %v4172
      %4221 = vst.msk [vmem:[#allocation3 + $0xbc] sm:$0x1] %vm1010, %v4173
      %v4222 = vld [vmem:[%s1057] sm:$0xf]
      %v4223 = vld [vmem:[%s1057 + $0x4] sm:$0xf]
      %v4224 = vld [vmem:[%s1057 + $0x8] sm:$0x1]
      %v4225 = vld [vmem:[%s1057 + $0xc] sm:$0xf]
      %v4226 = vld [vmem:[%s1057 + $0x10] sm:$0xf]
      %v4227 = vld [vmem:[%s1057 + $0x14] sm:$0x1]
      %v4228 = vld [vmem:[%s1057 + $0x18] sm:$0xf]
      %v4229 = vld [vmem:[%s1057 + $0x1c] sm:$0xf]
      %v4230 = vld [vmem:[%s1057 + $0x20] sm:$0x1]
      %v4231 = vld [vmem:[%s1057 + $0x24] sm:$0xf]
      %v4232 = vld [vmem:[%s1057 + $0x28] sm:$0xf]
      %v4233 = vld [vmem:[%s1057 + $0x2c] sm:$0x1]
      %v4234 = vld [vmem:[%s1057 + $0x30] sm:$0xf]
      %v4235 = vld [vmem:[%s1057 + $0x34] sm:$0xf]
      %v4236 = vld [vmem:[%s1057 + $0x38] sm:$0x1]
      %v4237 = vld [vmem:[%s1057 + $0x3c] sm:$0xf]
      %v4238 = vld [vmem:[%s1057 + $0x40] sm:$0xf]
      %v4239 = vld [vmem:[%s1057 + $0x44] sm:$0x1]
      %v4240 = vld [vmem:[%s1057 + $0x48] sm:$0xf]
      %v4241 = vld [vmem:[%s1057 + $0x4c] sm:$0xf]
      %v4242 = vld [vmem:[%s1057 + $0x50] sm:$0x1]
      %v4243 = vld [vmem:[%s1057 + $0x54] sm:$0xf]
      %v4244 = vld [vmem:[%s1057 + $0x58] sm:$0xf]
      %v4245 = vld [vmem:[%s1057 + $0x5c] sm:$0x1]
      %v4246 = vld [vmem:[%s1057 + $0x60] sm:$0xf]
      %v4247 = vld [vmem:[%s1057 + $0x64] sm:$0xf]
      %v4248 = vld [vmem:[%s1057 + $0x68] sm:$0x1]
      %v4249 = vld [vmem:[%s1057 + $0x6c] sm:$0xf]
      %v4250 = vld [vmem:[%s1057 + $0x70] sm:$0xf]
      %v4251 = vld [vmem:[%s1057 + $0x74] sm:$0x1]
      %v4252 = vld [vmem:[%s1057 + $0x78] sm:$0xf]
      %v4253 = vld [vmem:[%s1057 + $0x7c] sm:$0xf]
      %v4254 = vld [vmem:[%s1057 + $0x80] sm:$0x1]
      %v4255 = vld [vmem:[%s1057 + $0x84] sm:$0xf]
      %v4256 = vld [vmem:[%s1057 + $0x88] sm:$0xf]
      %v4257 = vld [vmem:[%s1057 + $0x8c] sm:$0x1]
      %v4258 = vld [vmem:[%s1057 + $0x90] sm:$0xf]
      %v4259 = vld [vmem:[%s1057 + $0x94] sm:$0xf]
      %v4260 = vld [vmem:[%s1057 + $0x98] sm:$0x1]
      %v4261 = vld [vmem:[%s1057 + $0x9c] sm:$0xf]
      %v4262 = vld [vmem:[%s1057 + $0xa0] sm:$0xf]
      %v4263 = vld [vmem:[%s1057 + $0xa4] sm:$0x1]
      %v4264 = vld [vmem:[%s1057 + $0xa8] sm:$0xf]
      %v4265 = vld [vmem:[%s1057 + $0xac] sm:$0xf]
      %v4266 = vld [vmem:[%s1057 + $0xb0] sm:$0x1]
      %v4267 = vld [vmem:[%s1057 + $0xb4] sm:$0xf]
      %v4268 = vld [vmem:[%s1057 + $0xb8] sm:$0xf]
      %v4269 = vld [vmem:[%s1057 + $0xbc] sm:$0x1]
      %4318 = vrot.lane.b32.xlu0 %v4222, 4
      %v4319 = vpop.permute.xlu0 %4318
      %4320 = vrot.lane.b32.xlu0 %v4223, 4
      %v4321 = vpop.permute.xlu0 %4320
      %4322 = vrot.lane.b32.xlu0 %v4224, 4
      %v4323 = vpop.permute.xlu0 %4322
      %4324 = vrot.lane.b32.xlu0 %v4225, 4
      %v4325 = vpop.permute.xlu0 %4324
      %4326 = vrot.lane.b32.xlu0 %v4226, 4
      %v4327 = vpop.permute.xlu0 %4326
      %4328 = vrot.lane.b32.xlu0 %v4227, 4
      %v4329 = vpop.permute.xlu0 %4328
      %4330 = vrot.lane.b32.xlu0 %v4228, 4
      %v4331 = vpop.permute.xlu0 %4330
      %4332 = vrot.lane.b32.xlu0 %v4229, 4
      %v4333 = vpop.permute.xlu0 %4332
      %4334 = vrot.lane.b32.xlu0 %v4230, 4
      %v4335 = vpop.permute.xlu0 %4334
      %4336 = vrot.lane.b32.xlu0 %v4231, 4
      %v4337 = vpop.permute.xlu0 %4336
      %4338 = vrot.lane.b32.xlu0 %v4232, 4
      %v4339 = vpop.permute.xlu0 %4338
      %4340 = vrot.lane.b32.xlu0 %v4233, 4
      %v4341 = vpop.permute.xlu0 %4340
      %4342 = vrot.lane.b32.xlu0 %v4234, 4
      %v4343 = vpop.permute.xlu0 %4342
      %4344 = vrot.lane.b32.xlu0 %v4235, 4
      %v4345 = vpop.permute.xlu0 %4344
      %4346 = vrot.lane.b32.xlu0 %v4236, 4
      %v4347 = vpop.permute.xlu0 %4346
      %4348 = vrot.lane.b32.xlu0 %v4237, 4
      %v4349 = vpop.permute.xlu0 %4348
      %4350 = vrot.lane.b32.xlu0 %v4238, 4
      %v4351 = vpop.permute.xlu0 %4350
      %4352 = vrot.lane.b32.xlu0 %v4239, 4
      %v4353 = vpop.permute.xlu0 %4352
      %4354 = vrot.lane.b32.xlu0 %v4240, 4
      %v4355 = vpop.permute.xlu0 %4354
      %4356 = vrot.lane.b32.xlu0 %v4241, 4
      %v4357 = vpop.permute.xlu0 %4356
      %4358 = vrot.lane.b32.xlu0 %v4242, 4
      %v4359 = vpop.permute.xlu0 %4358
      %4360 = vrot.lane.b32.xlu0 %v4243, 4
      %v4361 = vpop.permute.xlu0 %4360
      %4362 = vrot.lane.b32.xlu0 %v4244, 4
      %v4363 = vpop.permute.xlu0 %4362
      %4364 = vrot.lane.b32.xlu0 %v4245, 4
      %v4365 = vpop.permute.xlu0 %4364
      %4366 = vrot.lane.b32.xlu0 %v4246, 4
      %v4367 = vpop.permute.xlu0 %4366
      %4368 = vrot.lane.b32.xlu0 %v4247, 4
      %v4369 = vpop.permute.xlu0 %4368
      %4370 = vrot.lane.b32.xlu0 %v4248, 4
      %v4371 = vpop.permute.xlu0 %4370
      %4372 = vrot.lane.b32.xlu0 %v4249, 4
      %v4373 = vpop.permute.xlu0 %4372
      %4374 = vrot.lane.b32.xlu0 %v4250, 4
      %v4375 = vpop.permute.xlu0 %4374
      %4376 = vrot.lane.b32.xlu0 %v4251, 4
      %v4377 = vpop.permute.xlu0 %4376
      %4378 = vrot.lane.b32.xlu0 %v4252, 4
      %v4379 = vpop.permute.xlu0 %4378
      %4380 = vrot.lane.b32.xlu0 %v4253, 4
      %v4381 = vpop.permute.xlu0 %4380
      %4382 = vrot.lane.b32.xlu0 %v4254, 4
      %v4383 = vpop.permute.xlu0 %4382
      %4384 = vrot.lane.b32.xlu0 %v4255, 4
      %v4385 = vpop.permute.xlu0 %4384
      %4386 = vrot.lane.b32.xlu0 %v4256, 4
      %v4387 = vpop.permute.xlu0 %4386
      %4388 = vrot.lane.b32.xlu0 %v4257, 4
      %v4389 = vpop.permute.xlu0 %4388
      %4390 = vrot.lane.b32.xlu0 %v4258, 4
      %v4391 = vpop.permute.xlu0 %4390
      %4392 = vrot.lane.b32.xlu0 %v4259, 4
      %v4393 = vpop.permute.xlu0 %4392
      %4394 = vrot.lane.b32.xlu0 %v4260, 4
      %v4395 = vpop.permute.xlu0 %4394
      %4396 = vrot.lane.b32.xlu0 %v4261, 4
      %v4397 = vpop.permute.xlu0 %4396
      %4398 = vrot.lane.b32.xlu0 %v4262, 4
      %v4399 = vpop.permute.xlu0 %4398
      %4400 = vrot.lane.b32.xlu0 %v4263, 4
      %v4401 = vpop.permute.xlu0 %4400
      %4402 = vrot.lane.b32.xlu0 %v4264, 4
      %v4403 = vpop.permute.xlu0 %4402
      %4404 = vrot.lane.b32.xlu0 %v4265, 4
      %v4405 = vpop.permute.xlu0 %4404
      %4406 = vrot.lane.b32.xlu0 %v4266, 4
      %v4407 = vpop.permute.xlu0 %4406
      %4408 = vrot.lane.b32.xlu0 %v4267, 4
      %v4409 = vpop.permute.xlu0 %4408
      %4410 = vrot.lane.b32.xlu0 %v4268, 4
      %v4411 = vpop.permute.xlu0 %4410
      %4412 = vrot.lane.b32.xlu0 %v4269, 4
      %v4413 = vpop.permute.xlu0 %4412
      %4462 = vst.msk [vmem:[#allocation3] sm:$0xf] %vm1298, %v4319
      %4463 = vst.msk [vmem:[#allocation3 + $0x4] sm:$0xf] %vm1298, %v4321
      %4464 = vst.msk [vmem:[#allocation3 + $0x8] sm:$0x1] %vm1301, %v4323
      %4465 = vst.msk [vmem:[#allocation3 + $0xc] sm:$0xf] %vm1298, %v4325
      %4466 = vst.msk [vmem:[#allocation3 + $0x10] sm:$0xf] %vm1298, %v4327
      %4467 = vst.msk [vmem:[#allocation3 + $0x14] sm:$0x1] %vm1301, %v4329
      %4468 = vst.msk [vmem:[#allocation3 + $0x18] sm:$0xf] %vm1298, %v4331
      %4469 = vst.msk [vmem:[#allocation3 + $0x1c] sm:$0xf] %vm1298, %v4333
      %4470 = vst.msk [vmem:[#allocation3 + $0x20] sm:$0x1] %vm1301, %v4335
      %4471 = vst.msk [vmem:[#allocation3 + $0x24] sm:$0xf] %vm1298, %v4337
      %4472 = vst.msk [vmem:[#allocation3 + $0x28] sm:$0xf] %vm1298, %v4339
      %4473 = vst.msk [vmem:[#allocation3 + $0x2c] sm:$0x1] %vm1301, %v4341
      %4474 = vst.msk [vmem:[#allocation3 + $0x30] sm:$0xf] %vm1298, %v4343
      %4475 = vst.msk [vmem:[#allocation3 + $0x34] sm:$0xf] %vm1298, %v4345
      %4476 = vst.msk [vmem:[#allocation3 + $0x38] sm:$0x1] %vm1301, %v4347
      %4477 = vst.msk [vmem:[#allocation3 + $0x3c] sm:$0xf] %vm1298, %v4349
      %4478 = vst.msk [vmem:[#allocation3 + $0x40] sm:$0xf] %vm1298, %v4351
      %4479 = vst.msk [vmem:[#allocation3 + $0x44] sm:$0x1] %vm1301, %v4353
      %4480 = vst.msk [vmem:[#allocation3 + $0x48] sm:$0xf] %vm1298, %v4355
      %4481 = vst.msk [vmem:[#allocation3 + $0x4c] sm:$0xf] %vm1298, %v4357
      %4482 = vst.msk [vmem:[#allocation3 + $0x50] sm:$0x1] %vm1301, %v4359
      %4483 = vst.msk [vmem:[#allocation3 + $0x54] sm:$0xf] %vm1298, %v4361
      %4484 = vst.msk [vmem:[#allocation3 + $0x58] sm:$0xf] %vm1298, %v4363
      %4485 = vst.msk [vmem:[#allocation3 + $0x5c] sm:$0x1] %vm1301, %v4365
      %4486 = vst.msk [vmem:[#allocation3 + $0x60] sm:$0xf] %vm1298, %v4367
      %4487 = vst.msk [vmem:[#allocation3 + $0x64] sm:$0xf] %vm1298, %v4369
      %4488 = vst.msk [vmem:[#allocation3 + $0x68] sm:$0x1] %vm1301, %v4371
      %4489 = vst.msk [vmem:[#allocation3 + $0x6c] sm:$0xf] %vm1298, %v4373
      %4490 = vst.msk [vmem:[#allocation3 + $0x70] sm:$0xf] %vm1298, %v4375
      %4491 = vst.msk [vmem:[#allocation3 + $0x74] sm:$0x1] %vm1301, %v4377
      %4492 = vst.msk [vmem:[#allocation3 + $0x78] sm:$0xf] %vm1298, %v4379
      %4493 = vst.msk [vmem:[#allocation3 + $0x7c] sm:$0xf] %vm1298, %v4381
      %4494 = vst.msk [vmem:[#allocation3 + $0x80] sm:$0x1] %vm1301, %v4383
      %4495 = vst.msk [vmem:[#allocation3 + $0x84] sm:$0xf] %vm1298, %v4385
      %4496 = vst.msk [vmem:[#allocation3 + $0x88] sm:$0xf] %vm1298, %v4387
      %4497 = vst.msk [vmem:[#allocation3 + $0x8c] sm:$0x1] %vm1301, %v4389
      %4498 = vst.msk [vmem:[#allocation3 + $0x90] sm:$0xf] %vm1298, %v4391
      %4499 = vst.msk [vmem:[#allocation3 + $0x94] sm:$0xf] %vm1298, %v4393
      %4500 = vst.msk [vmem:[#allocation3 + $0x98] sm:$0x1] %vm1301, %v4395
      %4501 = vst.msk [vmem:[#allocation3 + $0x9c] sm:$0xf] %vm1298, %v4397
      %4502 = vst.msk [vmem:[#allocation3 + $0xa0] sm:$0xf] %vm1298, %v4399
      %4503 = vst.msk [vmem:[#allocation3 + $0xa4] sm:$0x1] %vm1301, %v4401
      %4504 = vst.msk [vmem:[#allocation3 + $0xa8] sm:$0xf] %vm1298, %v4403
      %4505 = vst.msk [vmem:[#allocation3 + $0xac] sm:$0xf] %vm1298, %v4405
      %4506 = vst.msk [vmem:[#allocation3 + $0xb0] sm:$0x1] %vm1301, %v4407
      %4507 = vst.msk [vmem:[#allocation3 + $0xb4] sm:$0xf] %vm1298, %v4409
      %4508 = vst.msk [vmem:[#allocation3 + $0xb8] sm:$0xf] %vm1298, %v4411
      %4509 = vst.msk [vmem:[#allocation3 + $0xbc] sm:$0x1] %vm1301, %v4413
      %v4510 = vld [vmem:[%s1348] sm:$0xf]
      %v4511 = vld [vmem:[%s1348 + $0x4] sm:$0xf]
      %v4512 = vld [vmem:[%s1348 + $0x8] sm:$0x1]
      %v4513 = vld [vmem:[%s1348 + $0xc] sm:$0xf]
      %v4514 = vld [vmem:[%s1348 + $0x10] sm:$0xf]
      %v4515 = vld [vmem:[%s1348 + $0x14] sm:$0x1]
      %v4516 = vld [vmem:[%s1348 + $0x18] sm:$0xf]
      %v4517 = vld [vmem:[%s1348 + $0x1c] sm:$0xf]
      %v4518 = vld [vmem:[%s1348 + $0x20] sm:$0x1]
      %v4519 = vld [vmem:[%s1348 + $0x24] sm:$0xf]
      %v4520 = vld [vmem:[%s1348 + $0x28] sm:$0xf]
      %v4521 = vld [vmem:[%s1348 + $0x2c] sm:$0x1]
      %v4522 = vld [vmem:[%s1348 + $0x30] sm:$0xf]
      %v4523 = vld [vmem:[%s1348 + $0x34] sm:$0xf]
      %v4524 = vld [vmem:[%s1348 + $0x38] sm:$0x1]
      %v4525 = vld [vmem:[%s1348 + $0x3c] sm:$0xf]
      %v4526 = vld [vmem:[%s1348 + $0x40] sm:$0xf]
      %v4527 = vld [vmem:[%s1348 + $0x44] sm:$0x1]
      %v4528 = vld [vmem:[%s1348 + $0x48] sm:$0xf]
      %v4529 = vld [vmem:[%s1348 + $0x4c] sm:$0xf]
      %v4530 = vld [vmem:[%s1348 + $0x50] sm:$0x1]
      %v4531 = vld [vmem:[%s1348 + $0x54] sm:$0xf]
      %v4532 = vld [vmem:[%s1348 + $0x58] sm:$0xf]
      %v4533 = vld [vmem:[%s1348 + $0x5c] sm:$0x1]
      %v4534 = vld [vmem:[%s1348 + $0x60] sm:$0xf]
      %v4535 = vld [vmem:[%s1348 + $0x64] sm:$0xf]
      %v4536 = vld [vmem:[%s1348 + $0x68] sm:$0x1]
      %v4537 = vld [vmem:[%s1348 + $0x6c] sm:$0xf]
      %v4538 = vld [vmem:[%s1348 + $0x70] sm:$0xf]
      %v4539 = vld [vmem:[%s1348 + $0x74] sm:$0x1]
      %v4540 = vld [vmem:[%s1348 + $0x78] sm:$0xf]
      %v4541 = vld [vmem:[%s1348 + $0x7c] sm:$0xf]
      %v4542 = vld [vmem:[%s1348 + $0x80] sm:$0x1]
      %v4543 = vld [vmem:[%s1348 + $0x84] sm:$0xf]
      %v4544 = vld [vmem:[%s1348 + $0x88] sm:$0xf]
      %v4545 = vld [vmem:[%s1348 + $0x8c] sm:$0x1]
      %v4546 = vld [vmem:[%s1348 + $0x90] sm:$0xf]
      %v4547 = vld [vmem:[%s1348 + $0x94] sm:$0xf]
      %v4548 = vld [vmem:[%s1348 + $0x98] sm:$0x1]
      %v4549 = vld [vmem:[%s1348 + $0x9c] sm:$0xf]
      %v4550 = vld [vmem:[%s1348 + $0xa0] sm:$0xf]
      %v4551 = vld [vmem:[%s1348 + $0xa4] sm:$0x1]
      %v4552 = vld [vmem:[%s1348 + $0xa8] sm:$0xf]
      %v4553 = vld [vmem:[%s1348 + $0xac] sm:$0xf]
      %v4554 = vld [vmem:[%s1348 + $0xb0] sm:$0x1]
      %v4555 = vld [vmem:[%s1348 + $0xb4] sm:$0xf]
      %v4556 = vld [vmem:[%s1348 + $0xb8] sm:$0xf]
      %v4557 = vld [vmem:[%s1348 + $0xbc] sm:$0x1]
      %4606 = vrot.lane.b32.xlu0 %v4510, 8
      %v4607 = vpop.permute.xlu0 %4606
      %4608 = vrot.lane.b32.xlu0 %v4511, 8
      %v4609 = vpop.permute.xlu0 %4608
      %4610 = vrot.lane.b32.xlu0 %v4512, 8
      %v4611 = vpop.permute.xlu0 %4610
      %4612 = vrot.lane.b32.xlu0 %v4513, 8
      %v4613 = vpop.permute.xlu0 %4612
      %4614 = vrot.lane.b32.xlu0 %v4514, 8
      %v4615 = vpop.permute.xlu0 %4614
      %4616 = vrot.lane.b32.xlu0 %v4515, 8
      %v4617 = vpop.permute.xlu0 %4616
      %4618 = vrot.lane.b32.xlu0 %v4516, 8
      %v4619 = vpop.permute.xlu0 %4618
      %4620 = vrot.lane.b32.xlu0 %v4517, 8
      %v4621 = vpop.permute.xlu0 %4620
      %4622 = vrot.lane.b32.xlu0 %v4518, 8
      %v4623 = vpop.permute.xlu0 %4622
      %4624 = vrot.lane.b32.xlu0 %v4519, 8
      %v4625 = vpop.permute.xlu0 %4624
      %4626 = vrot.lane.b32.xlu0 %v4520, 8
      %v4627 = vpop.permute.xlu0 %4626
      %4628 = vrot.lane.b32.xlu0 %v4521, 8
      %v4629 = vpop.permute.xlu0 %4628
      %4630 = vrot.lane.b32.xlu0 %v4522, 8
      %v4631 = vpop.permute.xlu0 %4630
      %4632 = vrot.lane.b32.xlu0 %v4523, 8
      %v4633 = vpop.permute.xlu0 %4632
      %4634 = vrot.lane.b32.xlu0 %v4524, 8
      %v4635 = vpop.permute.xlu0 %4634
      %4636 = vrot.lane.b32.xlu0 %v4525, 8
      %v4637 = vpop.permute.xlu0 %4636
      %4638 = vrot.lane.b32.xlu0 %v4526, 8
      %v4639 = vpop.permute.xlu0 %4638
      %4640 = vrot.lane.b32.xlu0 %v4527, 8
      %v4641 = vpop.permute.xlu0 %4640
      %4642 = vrot.lane.b32.xlu0 %v4528, 8
      %v4643 = vpop.permute.xlu0 %4642
      %4644 = vrot.lane.b32.xlu0 %v4529, 8
      %v4645 = vpop.permute.xlu0 %4644
      %4646 = vrot.lane.b32.xlu0 %v4530, 8
      %v4647 = vpop.permute.xlu0 %4646
      %4648 = vrot.lane.b32.xlu0 %v4531, 8
      %v4649 = vpop.permute.xlu0 %4648
      %4650 = vrot.lane.b32.xlu0 %v4532, 8
      %v4651 = vpop.permute.xlu0 %4650
      %4652 = vrot.lane.b32.xlu0 %v4533, 8
      %v4653 = vpop.permute.xlu0 %4652
      %4654 = vrot.lane.b32.xlu0 %v4534, 8
      %v4655 = vpop.permute.xlu0 %4654
      %4656 = vrot.lane.b32.xlu0 %v4535, 8
      %v4657 = vpop.permute.xlu0 %4656
      %4658 = vrot.lane.b32.xlu0 %v4536, 8
      %v4659 = vpop.permute.xlu0 %4658
      %4660 = vrot.lane.b32.xlu0 %v4537, 8
      %v4661 = vpop.permute.xlu0 %4660
      %4662 = vrot.lane.b32.xlu0 %v4538, 8
      %v4663 = vpop.permute.xlu0 %4662
      %4664 = vrot.lane.b32.xlu0 %v4539, 8
      %v4665 = vpop.permute.xlu0 %4664
      %4666 = vrot.lane.b32.xlu0 %v4540, 8
      %v4667 = vpop.permute.xlu0 %4666
      %4668 = vrot.lane.b32.xlu0 %v4541, 8
      %v4669 = vpop.permute.xlu0 %4668
      %4670 = vrot.lane.b32.xlu0 %v4542, 8
      %v4671 = vpop.permute.xlu0 %4670
      %4672 = vrot.lane.b32.xlu0 %v4543, 8
      %v4673 = vpop.permute.xlu0 %4672
      %4674 = vrot.lane.b32.xlu0 %v4544, 8
      %v4675 = vpop.permute.xlu0 %4674
      %4676 = vrot.lane.b32.xlu0 %v4545, 8
      %v4677 = vpop.permute.xlu0 %4676
      %4678 = vrot.lane.b32.xlu0 %v4546, 8
      %v4679 = vpop.permute.xlu0 %4678
      %4680 = vrot.lane.b32.xlu0 %v4547, 8
      %v4681 = vpop.permute.xlu0 %4680
      %4682 = vrot.lane.b32.xlu0 %v4548, 8
      %v4683 = vpop.permute.xlu0 %4682
      %4684 = vrot.lane.b32.xlu0 %v4549, 8
      %v4685 = vpop.permute.xlu0 %4684
      %4686 = vrot.lane.b32.xlu0 %v4550, 8
      %v4687 = vpop.permute.xlu0 %4686
      %4688 = vrot.lane.b32.xlu0 %v4551, 8
      %v4689 = vpop.permute.xlu0 %4688
      %4690 = vrot.lane.b32.xlu0 %v4552, 8
      %v4691 = vpop.permute.xlu0 %4690
      %4692 = vrot.lane.b32.xlu0 %v4553, 8
      %v4693 = vpop.permute.xlu0 %4692
      %4694 = vrot.lane.b32.xlu0 %v4554, 8
      %v4695 = vpop.permute.xlu0 %4694
      %4696 = vrot.lane.b32.xlu0 %v4555, 8
      %v4697 = vpop.permute.xlu0 %4696
      %4698 = vrot.lane.b32.xlu0 %v4556, 8
      %v4699 = vpop.permute.xlu0 %4698
      %4700 = vrot.lane.b32.xlu0 %v4557, 8
      %v4701 = vpop.permute.xlu0 %4700
      %4750 = vst.msk [vmem:[#allocation3] sm:$0xf] %vm1589, %v4607
      %4751 = vst.msk [vmem:[#allocation3 + $0x4] sm:$0xf] %vm1589, %v4609
      %4752 = vst.msk [vmem:[#allocation3 + $0x8] sm:$0x1] %vm1592, %v4611
      %4753 = vst.msk [vmem:[#allocation3 + $0xc] sm:$0xf] %vm1589, %v4613
      %4754 = vst.msk [vmem:[#allocation3 + $0x10] sm:$0xf] %vm1589, %v4615
      %4755 = vst.msk [vmem:[#allocation3 + $0x14] sm:$0x1] %vm1592, %v4617
      %4756 = vst.msk [vmem:[#allocation3 + $0x18] sm:$0xf] %vm1589, %v4619
      %4757 = vst.msk [vmem:[#allocation3 + $0x1c] sm:$0xf] %vm1589, %v4621
      %4758 = vst.msk [vmem:[#allocation3 + $0x20] sm:$0x1] %vm1592, %v4623
      %4759 = vst.msk [vmem:[#allocation3 + $0x24] sm:$0xf] %vm1589, %v4625
      %4760 = vst.msk [vmem:[#allocation3 + $0x28] sm:$0xf] %vm1589, %v4627
      %4761 = vst.msk [vmem:[#allocation3 + $0x2c] sm:$0x1] %vm1592, %v4629
      %4762 = vst.msk [vmem:[#allocation3 + $0x30] sm:$0xf] %vm1589, %v4631
      %4763 = vst.msk [vmem:[#allocation3 + $0x34] sm:$0xf] %vm1589, %v4633
      %4764 = vst.msk [vmem:[#allocation3 + $0x38] sm:$0x1] %vm1592, %v4635
      %4765 = vst.msk [vmem:[#allocation3 + $0x3c] sm:$0xf] %vm1589, %v4637
      %4766 = vst.msk [vmem:[#allocation3 + $0x40] sm:$0xf] %vm1589, %v4639
      %4767 = vst.msk [vmem:[#allocation3 + $0x44] sm:$0x1] %vm1592, %v4641
      %4768 = vst.msk [vmem:[#allocation3 + $0x48] sm:$0xf] %vm1589, %v4643
      %4769 = vst.msk [vmem:[#allocation3 + $0x4c] sm:$0xf] %vm1589, %v4645
      %4770 = vst.msk [vmem:[#allocation3 + $0x50] sm:$0x1] %vm1592, %v4647
      %4771 = vst.msk [vmem:[#allocation3 + $0x54] sm:$0xf] %vm1589, %v4649
      %4772 = vst.msk [vmem:[#allocation3 + $0x58] sm:$0xf] %vm1589, %v4651
      %4773 = vst.msk [vmem:[#allocation3 + $0x5c] sm:$0x1] %vm1592, %v4653
      %4774 = vst.msk [vmem:[#allocation3 + $0x60] sm:$0xf] %vm1589, %v4655
      %4775 = vst.msk [vmem:[#allocation3 + $0x64] sm:$0xf] %vm1589, %v4657
      %4776 = vst.msk [vmem:[#allocation3 + $0x68] sm:$0x1] %vm1592, %v4659
      %4777 = vst.msk [vmem:[#allocation3 + $0x6c] sm:$0xf] %vm1589, %v4661
      %4778 = vst.msk [vmem:[#allocation3 + $0x70] sm:$0xf] %vm1589, %v4663
      %4779 = vst.msk [vmem:[#allocation3 + $0x74] sm:$0x1] %vm1592, %v4665
      %4780 = vst.msk [vmem:[#allocation3 + $0x78] sm:$0xf] %vm1589, %v4667
      %4781 = vst.msk [vmem:[#allocation3 + $0x7c] sm:$0xf] %vm1589, %v4669
      %4782 = vst.msk [vmem:[#allocation3 + $0x80] sm:$0x1] %vm1592, %v4671
      %4783 = vst.msk [vmem:[#allocation3 + $0x84] sm:$0xf] %vm1589, %v4673
      %4784 = vst.msk [vmem:[#allocation3 + $0x88] sm:$0xf] %vm1589, %v4675
      %4785 = vst.msk [vmem:[#allocation3 + $0x8c] sm:$0x1] %vm1592, %v4677
      %4786 = vst.msk [vmem:[#allocation3 + $0x90] sm:$0xf] %vm1589, %v4679
      %4787 = vst.msk [vmem:[#allocation3 + $0x94] sm:$0xf] %vm1589, %v4681
      %4788 = vst.msk [vmem:[#allocation3 + $0x98] sm:$0x1] %vm1592, %v4683
      %4789 = vst.msk [vmem:[#allocation3 + $0x9c] sm:$0xf] %vm1589, %v4685
      %4790 = vst.msk [vmem:[#allocation3 + $0xa0] sm:$0xf] %vm1589, %v4687
      %4791 = vst.msk [vmem:[#allocation3 + $0xa4] sm:$0x1] %vm1592, %v4689
      %4792 = vst.msk [vmem:[#allocation3 + $0xa8] sm:$0xf] %vm1589, %v4691
      %4793 = vst.msk [vmem:[#allocation3 + $0xac] sm:$0xf] %vm1589, %v4693
      %4794 = vst.msk [vmem:[#allocation3 + $0xb0] sm:$0x1] %vm1592, %v4695
      %4795 = vst.msk [vmem:[#allocation3 + $0xb4] sm:$0xf] %vm1589, %v4697
      %4796 = vst.msk [vmem:[#allocation3 + $0xb8] sm:$0xf] %vm1589, %v4699
      %4797 = vst.msk [vmem:[#allocation3 + $0xbc] sm:$0x1] %vm1592, %v4701
      %v4798 = vld [vmem:[#allocation3] sm:$0xf]
      %v4799 = vld [vmem:[#allocation3 + $0x4] sm:$0xf]
      %v4800 = vld [vmem:[#allocation3 + $0xc] sm:$0xf]
      %v4801 = vld [vmem:[#allocation3 + $0x10] sm:$0xf]
      %v4802 = vld [vmem:[#allocation3 + $0x18] sm:$0xf]
      %v4803 = vld [vmem:[#allocation3 + $0x1c] sm:$0xf]
      %v4804 = vld [vmem:[#allocation3 + $0x24] sm:$0xf]
      %v4805 = vld [vmem:[#allocation3 + $0x28] sm:$0xf]
      %v4806 = vld [vmem:[#allocation3 + $0x30] sm:$0xf]
      %v4807 = vld [vmem:[#allocation3 + $0x34] sm:$0xf]
      %v4808 = vld [vmem:[#allocation3 + $0x3c] sm:$0xf]
      %v4809 = vld [vmem:[#allocation3 + $0x40] sm:$0xf]
      %v4810 = vld [vmem:[#allocation3 + $0x48] sm:$0xf]
      %v4811 = vld [vmem:[#allocation3 + $0x4c] sm:$0xf]
      %v4812 = vld [vmem:[#allocation3 + $0x54] sm:$0xf]
      %v4813 = vld [vmem:[#allocation3 + $0x58] sm:$0xf]
      %v4814 = vld [vmem:[#allocation3 + $0x60] sm:$0xf]
      %v4815 = vld [vmem:[#allocation3 + $0x64] sm:$0xf]
      %v4816 = vld [vmem:[#allocation3 + $0x6c] sm:$0xf]
      %v4817 = vld [vmem:[#allocation3 + $0x70] sm:$0xf]
      %v4818 = vld [vmem:[#allocation3 + $0x78] sm:$0xf]
      %v4819 = vld [vmem:[#allocation3 + $0x7c] sm:$0xf]
      %v4820 = vld [vmem:[#allocation3 + $0x84] sm:$0xf]
      %v4821 = vld [vmem:[#allocation3 + $0x88] sm:$0xf]
      %v4822 = vld [vmem:[#allocation3 + $0x90] sm:$0xf]
      %v4823 = vld [vmem:[#allocation3 + $0x94] sm:$0xf]
      %v4824 = vld [vmem:[#allocation3 + $0x9c] sm:$0xf]
      %v4825 = vld [vmem:[#allocation3 + $0xa0] sm:$0xf]
      %v4826 = vld [vmem:[#allocation3 + $0xa8] sm:$0xf]
      %v4827 = vld [vmem:[#allocation3 + $0xac] sm:$0xf]
      %v4828 = vld [vmem:[#allocation3 + $0xb4] sm:$0xf]
      %v4829 = vld [vmem:[#allocation3 + $0xb8] sm:$0xf]
      %v4830 = vld [vmem:[%s2] sm:$0xf]
      %v4831 = vld [vmem:[%s2 + $0x4] sm:$0x3]
      %v4832 = vld [vmem:[#allocation3 + $0x8] sm:$0x1]
      %v4833 = vld [vmem:[#allocation3 + $0x14] sm:$0x1]
      %v4834 = vld [vmem:[#allocation3 + $0x20] sm:$0x1]
      %v4835 = vld [vmem:[#allocation3 + $0x2c] sm:$0x1]
      %v4836 = vld [vmem:[#allocation3 + $0x38] sm:$0x1]
      %v4837 = vld [vmem:[#allocation3 + $0x44] sm:$0x1]
      %v4838 = vld [vmem:[#allocation3 + $0x50] sm:$0x1]
      %v4839 = vld [vmem:[#allocation3 + $0x5c] sm:$0x1]
      %v4840 = vld [vmem:[#allocation3 + $0x68] sm:$0x1]
      %v4841 = vld [vmem:[#allocation3 + $0x74] sm:$0x1]
      %v4842 = vld [vmem:[#allocation3 + $0x80] sm:$0x1]
      %v4843 = vld [vmem:[#allocation3 + $0x8c] sm:$0x1]
      %v4844 = vld [vmem:[#allocation3 + $0x98] sm:$0x1]
      %v4845 = vld [vmem:[#allocation3 + $0xa4] sm:$0x1]
      %v4846 = vld [vmem:[#allocation3 + $0xb0] sm:$0x1]
      %v4847 = vld [vmem:[#allocation3 + $0xbc] sm:$0x1]
      %s4848 = scalar_lea.vmem %s2, 8
      %v4849 = vld [vmem:[%s4848] sm:$0xf]
      %v4850 = vld [vmem:[%s4848 + $0x4] sm:$0x3]
      %v4852 = vshrl.u32 %v4798, 16
      %v4854 = vrot.slane %v4852, 4
      %v4855 = vshll.u32 %v4798, 16
      %v4857 = vrot.slane %v4855, 5
      %v4858 = vor.u32 %v4854, %v4857
      %v4859 = vrot.slane %v4858, 4
      %v4861 = vshll.u32 %v4799, 16
      %v4863 = vrot.slane %v4861, 5
      %v4864 = vsel %vm1694, %v4859, %v4863
      %v4865 = vshrl.u32 %v4799, 16
      %v4867 = vrot.slane %v4865, 4
      %v4868 = vor.u32 %v4867, %v4863
      %v4869 = vrot.slane %v4868, 4
      %v4871 = vshll.u32 %v4832, 16
      %v4873 = vrot.slane %v4871, 5
      %v4874 = vsel %vm1694, %v4869, %v4873
      %v4876 = vshrl.u32 %v4800, 16
      %v4878 = vrot.slane %v4876, 4
      %v4879 = vshll.u32 %v4800, 16
      %v4881 = vrot.slane %v4879, 5
      %v4882 = vor.u32 %v4878, %v4881
      %v4883 = vrot.slane %v4882, 4
      %v4885 = vshll.u32 %v4801, 16
      %v4887 = vrot.slane %v4885, 5
      %v4888 = vsel %vm1694, %v4883, %v4887
      %v4889 = vshrl.u32 %v4801, 16
      %v4891 = vrot.slane %v4889, 4
      %v4892 = vor.u32 %v4891, %v4887
      %v4893 = vrot.slane %v4892, 4
      %v4895 = vshll.u32 %v4833, 16
      %v4897 = vrot.slane %v4895, 5
      %v4898 = vsel %vm1694, %v4893, %v4897
      %v4900 = vshrl.u32 %v4802, 16
      %v4902 = vrot.slane %v4900, 4
      %v4903 = vshll.u32 %v4802, 16
      %v4905 = vrot.slane %v4903, 5
      %v4906 = vor.u32 %v4902, %v4905
      %v4907 = vrot.slane %v4906, 4
      %v4909 = vshll.u32 %v4803, 16
      %v4911 = vrot.slane %v4909, 5
      %v4912 = vsel %vm1694, %v4907, %v4911
      %v4913 = vshrl.u32 %v4803, 16
      %v4915 = vrot.slane %v4913, 4
      %v4916 = vor.u32 %v4915, %v4911
      %v4917 = vrot.slane %v4916, 4
      %v4919 = vshll.u32 %v4834, 16
      %v4921 = vrot.slane %v4919, 5
      %v4922 = vsel %vm1694, %v4917, %v4921
      %v4924 = vshrl.u32 %v4804, 16
      %v4926 = vrot.slane %v4924, 4
      %v4927 = vshll.u32 %v4804, 16
      %v4929 = vrot.slane %v4927, 5
      %v4930 = vor.u32 %v4926, %v4929
      %v4931 = vrot.slane %v4930, 4
      %v4933 = vshll.u32 %v4805, 16
      %v4935 = vrot.slane %v4933, 5
      %v4936 = vsel %vm1694, %v4931, %v4935
      %v4937 = vshrl.u32 %v4805, 16
      %v4939 = vrot.slane %v4937, 4
      %v4940 = vor.u32 %v4939, %v4935
      %v4941 = vrot.slane %v4940, 4
      %v4943 = vshll.u32 %v4835, 16
      %v4945 = vrot.slane %v4943, 5
      %v4946 = vsel %vm1694, %v4941, %v4945
      %v4948 = vshrl.u32 %v4806, 16
      %v4950 = vrot.slane %v4948, 4
      %v4951 = vshll.u32 %v4806, 16
      %v4953 = vrot.slane %v4951, 5
      %v4954 = vor.u32 %v4950, %v4953
      %v4955 = vrot.slane %v4954, 4
      %v4957 = vshll.u32 %v4807, 16
      %v4959 = vrot.slane %v4957, 5
      %v4960 = vsel %vm1694, %v4955, %v4959
      %v4961 = vshrl.u32 %v4807, 16
      %v4963 = vrot.slane %v4961, 4
      %v4964 = vor.u32 %v4963, %v4959
      %v4965 = vrot.slane %v4964, 4
      %v4967 = vshll.u32 %v4836, 16
      %v4969 = vrot.slane %v4967, 5
      %v4970 = vsel %vm1694, %v4965, %v4969
      %v4972 = vshrl.u32 %v4808, 16
      %v4974 = vrot.slane %v4972, 4
      %v4975 = vshll.u32 %v4808, 16
      %v4977 = vrot.slane %v4975, 5
      %v4978 = vor.u32 %v4974, %v4977
      %v4979 = vrot.slane %v4978, 4
      %v4981 = vshll.u32 %v4809, 16
      %v4983 = vrot.slane %v4981, 5
      %v4984 = vsel %vm1694, %v4979, %v4983
      %v4985 = vshrl.u32 %v4809, 16
      %v4987 = vrot.slane %v4985, 4
      %v4988 = vor.u32 %v4987, %v4983
      %v4989 = vrot.slane %v4988, 4
      %v4991 = vshll.u32 %v4837, 16
      %v4993 = vrot.slane %v4991, 5
      %v4994 = vsel %vm1694, %v4989, %v4993
      %v4996 = vshrl.u32 %v4810, 16
      %v4998 = vrot.slane %v4996, 4
      %v4999 = vshll.u32 %v4810, 16
      %v5001 = vrot.slane %v4999, 5
      %v5002 = vor.u32 %v4998, %v5001
      %v5003 = vrot.slane %v5002, 4
      %v5005 = vshll.u32 %v4811, 16
      %v5007 = vrot.slane %v5005, 5
      %v5008 = vsel %vm1694, %v5003, %v5007
      %v5009 = vshrl.u32 %v4811, 16
      %v5011 = vrot.slane %v5009, 4
      %v5012 = vor.u32 %v5011, %v5007
      %v5013 = vrot.slane %v5012, 4
      %v5015 = vshll.u32 %v4838, 16
      %v5017 = vrot.slane %v5015, 5
      %v5018 = vsel %vm1694, %v5013, %v5017
      %v5020 = vshrl.u32 %v4812, 16
      %v5022 = vrot.slane %v5020, 4
      %v5023 = vshll.u32 %v4812, 16
      %v5025 = vrot.slane %v5023, 5
      %v5026 = vor.u32 %v5022, %v5025
      %v5027 = vrot.slane %v5026, 4
      %v5029 = vshll.u32 %v4813, 16
      %v5031 = vrot.slane %v5029, 5
      %v5032 = vsel %vm1694, %v5027, %v5031
      %v5033 = vshrl.u32 %v4813, 16
      %v5035 = vrot.slane %v5033, 4
      %v5036 = vor.u32 %v5035, %v5031
      %v5037 = vrot.slane %v5036, 4
      %v5039 = vshll.u32 %v4839, 16
      %v5041 = vrot.slane %v5039, 5
      %v5042 = vsel %vm1694, %v5037, %v5041
      %v5044 = vshrl.u32 %v4814, 16
      %v5046 = vrot.slane %v5044, 4
      %v5047 = vshll.u32 %v4814, 16
      %v5049 = vrot.slane %v5047, 5
      %v5050 = vor.u32 %v5046, %v5049
      %v5051 = vrot.slane %v5050, 4
      %v5053 = vshll.u32 %v4815, 16
      %v5055 = vrot.slane %v5053, 5
      %v5056 = vsel %vm1694, %v5051, %v5055
      %v5057 = vshrl.u32 %v4815, 16
      %v5059 = vrot.slane %v5057, 4
      %v5060 = vor.u32 %v5059, %v5055
      %v5061 = vrot.slane %v5060, 4
      %v5063 = vshll.u32 %v4840, 16
      %v5065 = vrot.slane %v5063, 5
      %v5066 = vsel %vm1694, %v5061, %v5065
      %v5068 = vshrl.u32 %v4816, 16
      %v5070 = vrot.slane %v5068, 4
      %v5071 = vshll.u32 %v4816, 16
      %v5073 = vrot.slane %v5071, 5
      %v5074 = vor.u32 %v5070, %v5073
      %v5075 = vrot.slane %v5074, 4
      %v5077 = vshll.u32 %v4817, 16
      %v5079 = vrot.slane %v5077, 5
      %v5080 = vsel %vm1694, %v5075, %v5079
      %v5081 = vshrl.u32 %v4817, 16
      %v5083 = vrot.slane %v5081, 4
      %v5084 = vor.u32 %v5083, %v5079
      %v5085 = vrot.slane %v5084, 4
      %v5087 = vshll.u32 %v4841, 16
      %v5089 = vrot.slane %v5087, 5
      %v5090 = vsel %vm1694, %v5085, %v5089
      %v5092 = vshrl.u32 %v4818, 16
      %v5094 = vrot.slane %v5092, 4
      %v5095 = vshll.u32 %v4818, 16
      %v5097 = vrot.slane %v5095, 5
      %v5098 = vor.u32 %v5094, %v5097
      %v5099 = vrot.slane %v5098, 4
      %v5101 = vshll.u32 %v4819, 16
      %v5103 = vrot.slane %v5101, 5
      %v5104 = vsel %vm1694, %v5099, %v5103
      %v5105 = vshrl.u32 %v4819, 16
      %v5107 = vrot.slane %v5105, 4
      %v5108 = vor.u32 %v5107, %v5103
      %v5109 = vrot.slane %v5108, 4
      %v5111 = vshll.u32 %v4842, 16
      %v5113 = vrot.slane %v5111, 5
      %v5114 = vsel %vm1694, %v5109, %v5113
      %v5116 = vshrl.u32 %v4820, 16
      %v5118 = vrot.slane %v5116, 4
      %v5119 = vshll.u32 %v4820, 16
      %v5121 = vrot.slane %v5119, 5
      %v5122 = vor.u32 %v5118, %v5121
      %v5123 = vrot.slane %v5122, 4
      %v5125 = vshll.u32 %v4821, 16
      %v5127 = vrot.slane %v5125, 5
      %v5128 = vsel %vm1694, %v5123, %v5127
      %v5129 = vshrl.u32 %v4821, 16
      %v5131 = vrot.slane %v5129, 4
      %v5132 = vor.u32 %v5131, %v5127
      %v5133 = vrot.slane %v5132, 4
      %v5135 = vshll.u32 %v4843, 16
      %v5137 = vrot.slane %v5135, 5
      %v5138 = vsel %vm1694, %v5133, %v5137
      %v5140 = vshrl.u32 %v4822, 16
      %v5142 = vrot.slane %v5140, 4
      %v5143 = vshll.u32 %v4822, 16
      %v5145 = vrot.slane %v5143, 5
      %v5146 = vor.u32 %v5142, %v5145
      %v5147 = vrot.slane %v5146, 4
      %v5149 = vshll.u32 %v4823, 16
      %v5151 = vrot.slane %v5149, 5
      %v5152 = vsel %vm1694, %v5147, %v5151
      %v5153 = vshrl.u32 %v4823, 16
      %v5155 = vrot.slane %v5153, 4
      %v5156 = vor.u32 %v5155, %v5151
      %v5157 = vrot.slane %v5156, 4
      %v5159 = vshll.u32 %v4844, 16
      %v5161 = vrot.slane %v5159, 5
      %v5162 = vsel %vm1694, %v5157, %v5161
      %v5164 = vshrl.u32 %v4824, 16
      %v5166 = vrot.slane %v5164, 4
      %v5167 = vshll.u32 %v4824, 16
      %v5169 = vrot.slane %v5167, 5
      %v5170 = vor.u32 %v5166, %v5169
      %v5171 = vrot.slane %v5170, 4
      %v5173 = vshll.u32 %v4825, 16
      %v5175 = vrot.slane %v5173, 5
      %v5176 = vsel %vm1694, %v5171, %v5175
      %v5177 = vshrl.u32 %v4825, 16
      %v5179 = vrot.slane %v5177, 4
      %v5180 = vor.u32 %v5179, %v5175
      %v5181 = vrot.slane %v5180, 4
      %v5183 = vshll.u32 %v4845, 16
      %v5185 = vrot.slane %v5183, 5
      %v5186 = vsel %vm1694, %v5181, %v5185
      %v5188 = vshrl.u32 %v4826, 16
      %v5190 = vrot.slane %v5188, 4
      %v5191 = vshll.u32 %v4826, 16
      %v5193 = vrot.slane %v5191, 5
      %v5194 = vor.u32 %v5190, %v5193
      %v5195 = vrot.slane %v5194, 4
      %v5197 = vshll.u32 %v4827, 16
      %v5199 = vrot.slane %v5197, 5
      %v5200 = vsel %vm1694, %v5195, %v5199
      %v5201 = vshrl.u32 %v4827, 16
      %v5203 = vrot.slane %v5201, 4
      %v5204 = vor.u32 %v5203, %v5199
      %v5205 = vrot.slane %v5204, 4
      %v5207 = vshll.u32 %v4846, 16
      %v5209 = vrot.slane %v5207, 5
      %v5210 = vsel %vm1694, %v5205, %v5209
      %v5212 = vshrl.u32 %v4828, 16
      %v5214 = vrot.slane %v5212, 4
      %v5215 = vshll.u32 %v4828, 16
      %v5217 = vrot.slane %v5215, 5
      %v5218 = vor.u32 %v5214, %v5217
      %v5219 = vrot.slane %v5218, 4
      %v5221 = vshll.u32 %v4829, 16
      %v5223 = vrot.slane %v5221, 5
      %v5224 = vsel %vm1694, %v5219, %v5223
      %v5225 = vshrl.u32 %v4829, 16
      %v5227 = vrot.slane %v5225, 4
      %v5228 = vor.u32 %v5227, %v5223
      %v5229 = vrot.slane %v5228, 4
      %v5231 = vshll.u32 %v4847, 16
      %v5233 = vrot.slane %v5231, 5
      %v5234 = vsel %vm1694, %v5229, %v5233
      %v5235 = vunpack.c.l.b16 %v4864
      %v5236 = vunpack.c.l.b16 %v4874
      %v5237 = vunpack.c.l.b16 %v4888
      %v5238 = vunpack.c.l.b16 %v4898
      %v5239 = vunpack.c.l.b16 %v4912
      %v5240 = vunpack.c.l.b16 %v4922
      %v5241 = vunpack.c.l.b16 %v4936
      %v5242 = vunpack.c.l.b16 %v4946
      %v5243 = vunpack.c.l.b16 %v4960
      %v5244 = vunpack.c.l.b16 %v4970
      %v5245 = vunpack.c.l.b16 %v4984
      %v5246 = vunpack.c.l.b16 %v4994
      %v5247 = vunpack.c.l.b16 %v5008
      %v5248 = vunpack.c.l.b16 %v5018
      %v5249 = vunpack.c.l.b16 %v5032
      %v5250 = vunpack.c.l.b16 %v5042
      %v5251 = vunpack.c.l.b16 %v5056
      %v5252 = vunpack.c.l.b16 %v5066
      %v5253 = vunpack.c.l.b16 %v5080
      %v5254 = vunpack.c.l.b16 %v5090
      %v5255 = vunpack.c.l.b16 %v5104
      %v5256 = vunpack.c.l.b16 %v5114
      %v5257 = vunpack.c.l.b16 %v5128
      %v5258 = vunpack.c.l.b16 %v5138
      %v5259 = vunpack.c.l.b16 %v5152
      %v5260 = vunpack.c.l.b16 %v5162
      %v5261 = vunpack.c.l.b16 %v5176
      %v5262 = vunpack.c.l.b16 %v5186
      %v5263 = vunpack.c.l.b16 %v5200
      %v5264 = vunpack.c.l.b16 %v5210
      %v5265 = vunpack.c.l.b16 %v5224
      %v5266 = vunpack.c.l.b16 %v5234
      %v5267 = vpack.c.b16 %v5236, %v5235
      %v5268 = vpack.c.b16 %v5238, %v5237
      %v5269 = vpack.c.b16 %v5240, %v5239
      %v5270 = vpack.c.b16 %v5242, %v5241
      %v5271 = vpack.c.b16 %v5244, %v5243
      %v5272 = vpack.c.b16 %v5246, %v5245
      %v5273 = vpack.c.b16 %v5248, %v5247
      %v5274 = vpack.c.b16 %v5250, %v5249
      %v5275 = vpack.c.b16 %v5252, %v5251
      %v5276 = vpack.c.b16 %v5254, %v5253
      %v5277 = vpack.c.b16 %v5256, %v5255
      %v5278 = vpack.c.b16 %v5258, %v5257
      %v5279 = vpack.c.b16 %v5260, %v5259
      %v5280 = vpack.c.b16 %v5262, %v5261
      %v5281 = vpack.c.b16 %v5264, %v5263
      %v5282 = vpack.c.b16 %v5266, %v5265
      %v5285 = vunpack.c.l.b16 %v4849
      %v5286 = vunpack.c.l.b16 %v4850
      %v5287 = vpack.c.b16 %v5286, %v5285
      %v5289 = vsel %vm2132, %v5267, 0
      %v5292 = vsel %vm2132, %v5268, 0
      %v5295 = vsel %vm2132, %v5269, 0
      %v5298 = vsel %vm2132, %v5270, 0
      %v5301 = vsel %vm2132, %v5271, 0
      %v5304 = vsel %vm2132, %v5272, 0
      %v5307 = vsel %vm2132, %v5273, 0
      %v5310 = vsel %vm2132, %v5274, 0
      %v5313 = vsel %vm2132, %v5275, 0
      %v5316 = vsel %vm2132, %v5276, 0
      %v5319 = vsel %vm2132, %v5277, 0
      %v5322 = vsel %vm2132, %v5278, 0
      %v5325 = vsel %vm2132, %v5279, 0
      %v5328 = vsel %vm2132, %v5280, 0
      %v5331 = vsel %vm2132, %v5281, 0
      %v5334 = vsel %vm2132, %v5282, 0
      %v5337 = vsel %vm2181, %v5287, 0
      %5339 = vmatprep.subr.bf16.mxu0 0
      %5340 = vmatpush1.bf16.msra.mxu0 %v5337
      %5341 = vmatprep.subr.bf16.mxu0 0
      %5342 = vmatpush1.bf16.msra.mxu0 0
      %5343 = vmatprep.subr.bf16.mxu0 0
      %5344 = vmatpush1.bf16.msra.mxu0 0
      %5345 = vmatprep.subr.bf16.mxu0 0
      %5346 = vmatpush1.bf16.msra.mxu0 0
      %5347 = vmatprep.subr.bf16.mxu0 0
      %5348 = vmatpush1.bf16.msra.mxu0 0
      %5349 = vmatprep.subr.bf16.mxu0 0
      %5350 = vmatpush1.bf16.msra.mxu0 0
      %5351 = vmatprep.subr.bf16.mxu0 0
      %5352 = vmatpush1.bf16.msra.mxu0 0
      %5353 = vmatprep.subr.bf16.mxu0 0
      %5354 = vmatpush1.bf16.msra.mxu0 0
      %5355 = vmatprep.subr.bf16.mxu0 0
      %5356 = vmatpush1.bf16.msra.mxu0 0
      %5357 = vmatprep.subr.bf16.mxu0 0
      %5358 = vmatpush1.bf16.msra.mxu0 0
      %5359 = vmatprep.subr.bf16.mxu0 0
      %5360 = vmatpush1.bf16.msra.mxu0 0
      %5361 = vmatprep.subr.bf16.mxu0 0
      %5362 = vmatpush1.bf16.msra.mxu0 0
      %5363 = vmatprep.subr.bf16.mxu0 0
      %5364 = vmatpush1.bf16.msra.mxu0 0
      %5365 = vmatprep.subr.bf16.mxu0 0
      %5366 = vmatpush1.bf16.msra.mxu0 0
      %5367 = vmatprep.subr.bf16.mxu0 0
      %5368 = vmatpush1.bf16.msra.mxu0 0
      %5369 = vmatprep.subr.bf16.mxu0 0
      %5370 = vmatpush1.bf16.msra.mxu0 0
      %5371 = vmatprep.mubr.bf16.mxu0 0
      %5372 = vmatmul.mubr.bf16.gmra.mrb[0].mxu0 %v5289
      %v5373 = vpop.f32.mrb[0].mxu0
      %v5374 = vadd.f32 0.0, %v5373
      %v5375 = vpop.f32.mrb[0].mxu0
      %v5376 = vpop.f32.mrb[0].mxu0
      %v5377 = vadd.f32 0.0, %v5376
      %v5378 = vpop.f32.mrb[0].mxu0
      %5379 = vmatprep.mubr.bf16.mxu0 0
      %5380 = vmatmul.mubr.bf16.gmra.mrb[0].mxu0 %v5292
      %v5381 = vpop.f32.mrb[0].mxu0
      %v5382 = vadd.f32 0.0, %v5381
      %v5383 = vpop.f32.mrb[0].mxu0
      %v5384 = vpop.f32.mrb[0].mxu0
      %v5385 = vadd.f32 0.0, %v5384
      %v5386 = vpop.f32.mrb[0].mxu0
      %5387 = vmatprep.mubr.bf16.mxu0 0
      %5388 = vmatmul.mubr.bf16.gmra.mrb[0].mxu0 %v5295
      %v5389 = vpop.f32.mrb[0].mxu0
      %v5390 = vadd.f32 0.0, %v5389
      %v5391 = vpop.f32.mrb[0].mxu0
      %v5392 = vpop.f32.mrb[0].mxu0
      %v5393 = vadd.f32 0.0, %v5392
      %v5394 = vpop.f32.mrb[0].mxu0
      %5395 = vmatprep.mubr.bf16.mxu0 0
      %5396 = vmatmul.mubr.bf16.gmra.mrb[0].mxu0 %v5298
      %v5397 = vpop.f32.mrb[0].mxu0
      %v5398 = vadd.f32 0.0, %v5397
      %v5399 = vpop.f32.mrb[0].mxu0
      %v5400 = vpop.f32.mrb[0].mxu0
      %v5401 = vadd.f32 0.0, %v5400
      %v5402 = vpop.f32.mrb[0].mxu0
      %5403 = vmatprep.mubr.bf16.mxu0 0
      %5404 = vmatmul.mubr.bf16.gmra.mrb[0].mxu0 %v5301
      %v5405 = vpop.f32.mrb[0].mxu0
      %v5406 = vadd.f32 0.0, %v5405
      %v5407 = vpop.f32.mrb[0].mxu0
      %v5408 = vpop.f32.mrb[0].mxu0
      %v5409 = vadd.f32 0.0, %v5408
      %v5410 = vpop.f32.mrb[0].mxu0
      %5411 = vmatprep.mubr.bf16.mxu0 0
      %5412 = vmatmul.mubr.bf16.gmra.mrb[0].mxu0 %v5304
      %v5413 = vpop.f32.mrb[0].mxu0
      %v5414 = vadd.f32 0.0, %v5413
      %v5415 = vpop.f32.mrb[0].mxu0
      %v5416 = vpop.f32.mrb[0].mxu0
      %v5417 = vadd.f32 0.0, %v5416
      %v5418 = vpop.f32.mrb[0].mxu0
      %5419 = vmatprep.mubr.bf16.mxu0 0
      %5420 = vmatmul.mubr.bf16.gmra.mrb[0].mxu0 %v5307
      %v5421 = vpop.f32.mrb[0].mxu0
      %v5422 = vadd.f32 0.0, %v5421
      %v5423 = vpop.f32.mrb[0].mxu0
      %v5424 = vpop.f32.mrb[0].mxu0
      %v5425 = vadd.f32 0.0, %v5424
      %v5426 = vpop.f32.mrb[0].mxu0
      %5427 = vmatprep.mubr.bf16.mxu0 0
      %5428 = vmatmul.mubr.bf16.gmra.mrb[0].mxu0 %v5310
      %v5429 = vpop.f32.mrb[0].mxu0
      %v5430 = vadd.f32 0.0, %v5429
      %v5431 = vpop.f32.mrb[0].mxu0
      %v5432 = vpop.f32.mrb[0].mxu0
      %v5433 = vadd.f32 0.0, %v5432
      %v5434 = vpop.f32.mrb[0].mxu0
      %5435 = vmatprep.mubr.bf16.mxu0 0
      %5436 = vmatmul.mubr.bf16.gmra.mrb[0].mxu0 %v5313
      %v5437 = vpop.f32.mrb[0].mxu0
      %v5438 = vadd.f32 0.0, %v5437
      %v5439 = vpop.f32.mrb[0].mxu0
      %v5440 = vpop.f32.mrb[0].mxu0
      %v5441 = vadd.f32 0.0, %v5440
      %v5442 = vpop.f32.mrb[0].mxu0
      %5443 = vmatprep.mubr.bf16.mxu0 0
      %5444 = vmatmul.mubr.bf16.gmra.mrb[0].mxu0 %v5316
      %v5445 = vpop.f32.mrb[0].mxu0
      %v5446 = vadd.f32 0.0, %v5445
      %v5447 = vpop.f32.mrb[0].mxu0
      %v5448 = vpop.f32.mrb[0].mxu0
      %v5449 = vadd.f32 0.0, %v5448
      %v5450 = vpop.f32.mrb[0].mxu0
      %5451 = vmatprep.mubr.bf16.mxu0 0
      %5452 = vmatmul.mubr.bf16.gmra.mrb[0].mxu0 %v5319
      %v5453 = vpop.f32.mrb[0].mxu0
      %v5454 = vadd.f32 0.0, %v5453
      %v5455 = vpop.f32.mrb[0].mxu0
      %v5456 = vpop.f32.mrb[0].mxu0
      %v5457 = vadd.f32 0.0, %v5456
      %v5458 = vpop.f32.mrb[0].mxu0
      %5459 = vmatprep.mubr.bf16.mxu0 0
      %5460 = vmatmul.mubr.bf16.gmra.mrb[0].mxu0 %v5322
      %v5461 = vpop.f32.mrb[0].mxu0
      %v5462 = vadd.f32 0.0, %v5461
      %v5463 = vpop.f32.mrb[0].mxu0
      %v5464 = vpop.f32.mrb[0].mxu0
      %v5465 = vadd.f32 0.0, %v5464
      %v5466 = vpop.f32.mrb[0].mxu0
      %5467 = vmatprep.mubr.bf16.mxu0 0
      %5468 = vmatmul.mubr.bf16.gmra.mrb[0].mxu0 %v5325
      %v5469 = vpop.f32.mrb[0].mxu0
      %v5470 = vadd.f32 0.0, %v5469
      %v5471 = vpop.f32.mrb[0].mxu0
      %v5472 = vpop.f32.mrb[0].mxu0
      %v5473 = vadd.f32 0.0, %v5472
      %v5474 = vpop.f32.mrb[0].mxu0
      %5475 = vmatprep.mubr.bf16.mxu0 0
      %5476 = vmatmul.mubr.bf16.gmra.mrb[0].mxu0 %v5328
      %v5477 = vpop.f32.mrb[0].mxu0
      %v5478 = vadd.f32 0.0, %v5477
      %v5479 = vpop.f32.mrb[0].mxu0
      %v5480 = vpop.f32.mrb[0].mxu0
      %v5481 = vadd.f32 0.0, %v5480
      %v5482 = vpop.f32.mrb[0].mxu0
      %5483 = vmatprep.mubr.bf16.mxu0 0
      %5484 = vmatmul.mubr.bf16.gmra.mrb[0].mxu0 %v5331
      %v5485 = vpop.f32.mrb[0].mxu0
      %v5486 = vadd.f32 0.0, %v5485
      %v5487 = vpop.f32.mrb[0].mxu0
      %v5488 = vpop.f32.mrb[0].mxu0
      %v5489 = vadd.f32 0.0, %v5488
      %v5490 = vpop.f32.mrb[0].mxu0
      %5491 = vmatprep.mubr.bf16.mxu0 0
      %5492 = vmatmul.mubr.bf16.gmra.mrb[0].mxu0 %v5334
      %v5493 = vpop.f32.mrb[0].mxu0
      %v5494 = vadd.f32 0.0, %v5493
      %v5495 = vpop.f32.mrb[0].mxu0
      %v5496 = vpop.f32.mrb[0].mxu0
      %v5497 = vadd.f32 0.0, %v5496
      %v5498 = vpop.f32.mrb[0].mxu0
      %5499 = vdwg.mxu0
      %v5532 = vunpack.c.l.b16 %v4798
      %v5533 = vunpack.c.l.b16 %v4799
      %v5534 = vunpack.c.l.b16 %v4800
      %v5535 = vunpack.c.l.b16 %v4801
      %v5536 = vunpack.c.l.b16 %v4802
      %v5537 = vunpack.c.l.b16 %v4803
      %v5538 = vunpack.c.l.b16 %v4804
      %v5539 = vunpack.c.l.b16 %v4805
      %v5540 = vunpack.c.l.b16 %v4806
      %v5541 = vunpack.c.l.b16 %v4807
      %v5542 = vunpack.c.l.b16 %v4808
      %v5543 = vunpack.c.l.b16 %v4809
      %v5544 = vunpack.c.l.b16 %v4810
      %v5545 = vunpack.c.l.b16 %v4811
      %v5546 = vunpack.c.l.b16 %v4812
      %v5547 = vunpack.c.l.b16 %v4813
      %v5548 = vunpack.c.l.b16 %v4814
      %v5549 = vunpack.c.l.b16 %v4815
      %v5550 = vunpack.c.l.b16 %v4816
      %v5551 = vunpack.c.l.b16 %v4817
      %v5552 = vunpack.c.l.b16 %v4818
      %v5553 = vunpack.c.l.b16 %v4819
      %v5554 = vunpack.c.l.b16 %v4820
      %v5555 = vunpack.c.l.b16 %v4821
      %v5556 = vunpack.c.l.b16 %v4822
      %v5557 = vunpack.c.l.b16 %v4823
      %v5558 = vunpack.c.l.b16 %v4824
      %v5559 = vunpack.c.l.b16 %v4825
      %v5560 = vunpack.c.l.b16 %v4826
      %v5561 = vunpack.c.l.b16 %v4827
      %v5562 = vunpack.c.l.b16 %v4828
      %v5563 = vunpack.c.l.b16 %v4829
      %v5564 = vpack.c.b16 %v5533, %v5532
      %v5565 = vpack.c.b16 %v5535, %v5534
      %v5566 = vpack.c.b16 %v5537, %v5536
      %v5567 = vpack.c.b16 %v5539, %v5538
      %v5568 = vpack.c.b16 %v5541, %v5540
      %v5569 = vpack.c.b16 %v5543, %v5542
      %v5570 = vpack.c.b16 %v5545, %v5544
      %v5571 = vpack.c.b16 %v5547, %v5546
      %v5572 = vpack.c.b16 %v5549, %v5548
      %v5573 = vpack.c.b16 %v5551, %v5550
      %v5574 = vpack.c.b16 %v5553, %v5552
      %v5575 = vpack.c.b16 %v5555, %v5554
      %v5576 = vpack.c.b16 %v5557, %v5556
      %v5577 = vpack.c.b16 %v5559, %v5558
      %v5578 = vpack.c.b16 %v5561, %v5560
      %v5579 = vpack.c.b16 %v5563, %v5562
      %v5582 = vunpack.c.l.b16 %v4830
      %v5583 = vunpack.c.l.b16 %v4831
      %v5584 = vpack.c.b16 %v5583, %v5582
      %v5586 = vsel %vm2132, %v5564, 0
      %v5589 = vsel %vm2132, %v5565, 0
      %v5592 = vsel %vm2132, %v5566, 0
      %v5595 = vsel %vm2132, %v5567, 0
      %v5598 = vsel %vm2132, %v5568, 0
      %v5601 = vsel %vm2132, %v5569, 0
      %v5604 = vsel %vm2132, %v5570, 0
      %v5607 = vsel %vm2132, %v5571, 0
      %v5610 = vsel %vm2132, %v5572, 0
      %v5613 = vsel %vm2132, %v5573, 0
      %v5616 = vsel %vm2132, %v5574, 0
      %v5619 = vsel %vm2132, %v5575, 0
      %v5622 = vsel %vm2132, %v5576, 0
      %v5625 = vsel %vm2132, %v5577, 0
      %v5628 = vsel %vm2132, %v5578, 0
      %v5631 = vsel %vm2132, %v5579, 0
      %v5634 = vsel %vm2181, %v5584, 0
      %5636 = vmatprep.subr.bf16.mxu0 0
      %5637 = vmatpush1.bf16.msra.mxu0 %v5634
      %5638 = vmatprep.subr.bf16.mxu0 0
      %5639 = vmatpush1.bf16.msra.mxu0 0
      %5640 = vmatprep.subr.bf16.mxu0 0
      %5641 = vmatpush1.bf16.msra.mxu0 0
      %5642 = vmatprep.subr.bf16.mxu0 0
      %5643 = vmatpush1.bf16.msra.mxu0 0
      %5644 = vmatprep.subr.bf16.mxu0 0
      %5645 = vmatpush1.bf16.msra.mxu0 0
      %5646 = vmatprep.subr.bf16.mxu0 0
      %5647 = vmatpush1.bf16.msra.mxu0 0
      %5648 = vmatprep.subr.bf16.mxu0 0
      %5649 = vmatpush1.bf16.msra.mxu0 0
      %5650 = vmatprep.subr.bf16.mxu0 0
      %5651 = vmatpush1.bf16.msra.mxu0 0
      %5652 = vmatprep.subr.bf16.mxu0 0
      %5653 = vmatpush1.bf16.msra.mxu0 0
      %5654 = vmatprep.subr.bf16.mxu0 0
      %5655 = vmatpush1.bf16.msra.mxu0 0
      %5656 = vmatprep.subr.bf16.mxu0 0
      %5657 = vmatpush1.bf16.msra.mxu0 0
      %5658 = vmatprep.subr.bf16.mxu0 0
      %5659 = vmatpush1.bf16.msra.mxu0 0
      %5660 = vmatprep.subr.bf16.mxu0 0
      %5661 = vmatpush1.bf16.msra.mxu0 0
      %5662 = vmatprep.subr.bf16.mxu0 0
      %5663 = vmatpush1.bf16.msra.mxu0 0
      %5664 = vmatprep.subr.bf16.mxu0 0
      %5665 = vmatpush1.bf16.msra.mxu0 0
      %5666 = vmatprep.subr.bf16.mxu0 0
      %5667 = vmatpush1.bf16.msra.mxu0 0
      %5668 = vmatprep.mubr.bf16.mxu0 0
      %5669 = vmatmul.mubr.bf16.gmra.mrb[0].mxu0 %v5586
      %v5670 = vpop.f32.mrb[0].mxu0
      %v5671 = vadd.f32 %v5374, %v5670
      %v5672 = vpop.f32.mrb[0].mxu0
      %v5673 = vpop.f32.mrb[0].mxu0
      %v5674 = vadd.f32 %v5377, %v5673
      %v5675 = vpop.f32.mrb[0].mxu0
      %5676 = vmatprep.mubr.bf16.mxu0 0
      %5677 = vmatmul.mubr.bf16.gmra.mrb[0].mxu0 %v5589
      %v5678 = vpop.f32.mrb[0].mxu0
      %v5679 = vadd.f32 %v5382, %v5678
      %v5680 = vpop.f32.mrb[0].mxu0
      %v5681 = vpop.f32.mrb[0].mxu0
      %v5682 = vadd.f32 %v5385, %v5681
      %v5683 = vpop.f32.mrb[0].mxu0
      %5684 = vmatprep.mubr.bf16.mxu0 0
      %5685 = vmatmul.mubr.bf16.gmra.mrb[0].mxu0 %v5592
      %v5686 = vpop.f32.mrb[0].mxu0
      %v5687 = vadd.f32 %v5390, %v5686
      %v5688 = vpop.f32.mrb[0].mxu0
      %v5689 = vpop.f32.mrb[0].mxu0
      %v5690 = vadd.f32 %v5393, %v5689
      %v5691 = vpop.f32.mrb[0].mxu0
      %5692 = vmatprep.mubr.bf16.mxu0 0
      %5693 = vmatmul.mubr.bf16.gmra.mrb[0].mxu0 %v5595
      %v5694 = vpop.f32.mrb[0].mxu0
      %v5695 = vadd.f32 %v5398, %v5694
      %v5696 = vpop.f32.mrb[0].mxu0
      %v5697 = vpop.f32.mrb[0].mxu0
      %v5698 = vadd.f32 %v5401, %v5697
      %v5699 = vpop.f32.mrb[0].mxu0
      %5700 = vmatprep.mubr.bf16.mxu0 0
      %5701 = vmatmul.mubr.bf16.gmra.mrb[0].mxu0 %v5598
      %v5702 = vpop.f32.mrb[0].mxu0
      %v5703 = vadd.f32 %v5406, %v5702
      %v5704 = vpop.f32.mrb[0].mxu0
      %v5705 = vpop.f32.mrb[0].mxu0
      %v5706 = vadd.f32 %v5409, %v5705
      %v5707 = vpop.f32.mrb[0].mxu0
      %5708 = vmatprep.mubr.bf16.mxu0 0
      %5709 = vmatmul.mubr.bf16.gmra.mrb[0].mxu0 %v5601
      %v5710 = vpop.f32.mrb[0].mxu0
      %v5711 = vadd.f32 %v5414, %v5710
      %v5712 = vpop.f32.mrb[0].mxu0
      %v5713 = vpop.f32.mrb[0].mxu0
      %v5714 = vadd.f32 %v5417, %v5713
      %v5715 = vpop.f32.mrb[0].mxu0
      %5716 = vmatprep.mubr.bf16.mxu0 0
      %5717 = vmatmul.mubr.bf16.gmra.mrb[0].mxu0 %v5604
      %v5718 = vpop.f32.mrb[0].mxu0
      %v5719 = vadd.f32 %v5422, %v5718
      %v5720 = vpop.f32.mrb[0].mxu0
      %v5721 = vpop.f32.mrb[0].mxu0
      %v5722 = vadd.f32 %v5425, %v5721
      %v5723 = vpop.f32.mrb[0].mxu0
      %5724 = vmatprep.mubr.bf16.mxu0 0
      %5725 = vmatmul.mubr.bf16.gmra.mrb[0].mxu0 %v5607
      %v5726 = vpop.f32.mrb[0].mxu0
      %v5727 = vadd.f32 %v5430, %v5726
      %v5728 = vpop.f32.mrb[0].mxu0
      %v5729 = vpop.f32.mrb[0].mxu0
      %v5730 = vadd.f32 %v5433, %v5729
      %v5731 = vpop.f32.mrb[0].mxu0
      %5732 = vmatprep.mubr.bf16.mxu0 0
      %5733 = vmatmul.mubr.bf16.gmra.mrb[0].mxu0 %v5610
      %v5734 = vpop.f32.mrb[0].mxu0
      %v5735 = vadd.f32 %v5438, %v5734
      %v5736 = vpop.f32.mrb[0].mxu0
      %v5737 = vpop.f32.mrb[0].mxu0
      %v5738 = vadd.f32 %v5441, %v5737
      %v5739 = vpop.f32.mrb[0].mxu0
      %5740 = vmatprep.mubr.bf16.mxu0 0
      %5741 = vmatmul.mubr.bf16.gmra.mrb[0].mxu0 %v5613
      %v5742 = vpop.f32.mrb[0].mxu0
      %v5743 = vadd.f32 %v5446, %v5742
      %v5744 = vpop.f32.mrb[0].mxu0
      %v5745 = vpop.f32.mrb[0].mxu0
      %v5746 = vadd.f32 %v5449, %v5745
      %v5747 = vpop.f32.mrb[0].mxu0
      %5748 = vmatprep.mubr.bf16.mxu0 0
      %5749 = vmatmul.mubr.bf16.gmra.mrb[0].mxu0 %v5616
      %v5750 = vpop.f32.mrb[0].mxu0
      %v5751 = vadd.f32 %v5454, %v5750
      %v5752 = vpop.f32.mrb[0].mxu0
      %v5753 = vpop.f32.mrb[0].mxu0
      %v5754 = vadd.f32 %v5457, %v5753
      %v5755 = vpop.f32.mrb[0].mxu0
      %5756 = vmatprep.mubr.bf16.mxu0 0
      %5757 = vmatmul.mubr.bf16.gmra.mrb[0].mxu0 %v5619
      %v5758 = vpop.f32.mrb[0].mxu0
      %v5759 = vadd.f32 %v5462, %v5758
      %v5760 = vpop.f32.mrb[0].mxu0
      %v5761 = vpop.f32.mrb[0].mxu0
      %v5762 = vadd.f32 %v5465, %v5761
      %v5763 = vpop.f32.mrb[0].mxu0
      %5764 = vmatprep.mubr.bf16.mxu0 0
      %5765 = vmatmul.mubr.bf16.gmra.mrb[0].mxu0 %v5622
      %v5766 = vpop.f32.mrb[0].mxu0
      %v5767 = vadd.f32 %v5470, %v5766
      %v5768 = vpop.f32.mrb[0].mxu0
      %v5769 = vpop.f32.mrb[0].mxu0
      %v5770 = vadd.f32 %v5473, %v5769
      %v5771 = vpop.f32.mrb[0].mxu0
      %5772 = vmatprep.mubr.bf16.mxu0 0
      %5773 = vmatmul.mubr.bf16.gmra.mrb[0].mxu0 %v5625
      %v5774 = vpop.f32.mrb[0].mxu0
      %v5775 = vadd.f32 %v5478, %v5774
      %v5776 = vpop.f32.mrb[0].mxu0
      %v5777 = vpop.f32.mrb[0].mxu0
      %v5778 = vadd.f32 %v5481, %v5777
      %v5779 = vpop.f32.mrb[0].mxu0
      %5780 = vmatprep.mubr.bf16.mxu0 0
      %5781 = vmatmul.mubr.bf16.gmra.mrb[0].mxu0 %v5628
      %v5782 = vpop.f32.mrb[0].mxu0
      %v5783 = vadd.f32 %v5486, %v5782
      %v5784 = vpop.f32.mrb[0].mxu0
      %v5785 = vpop.f32.mrb[0].mxu0
      %v5786 = vadd.f32 %v5489, %v5785
      %v5787 = vpop.f32.mrb[0].mxu0
      %5788 = vmatprep.mubr.bf16.mxu0 0
      %5789 = vmatmul.mubr.bf16.gmra.mrb[0].mxu0 %v5631
      %v5790 = vpop.f32.mrb[0].mxu0
      %v5791 = vadd.f32 %v5494, %v5790
      %v5792 = vpop.f32.mrb[0].mxu0
      %v5793 = vpop.f32.mrb[0].mxu0
      %v5794 = vadd.f32 %v5497, %v5793
      %v5795 = vpop.f32.mrb[0].mxu0
      %5796 = vdwg.mxu0
      %v5797 = vld [vmem:[#allocation3] sm:$0xe]
      %v5798 = vld [vmem:[#allocation3 + $0xc] sm:$0xe]
      %v5799 = vld [vmem:[#allocation3 + $0x18] sm:$0xe]
      %v5800 = vld [vmem:[#allocation3 + $0x24] sm:$0xe]
      %v5801 = vld [vmem:[#allocation3 + $0x30] sm:$0xe]
      %v5802 = vld [vmem:[#allocation3 + $0x3c] sm:$0xe]
      %v5803 = vld [vmem:[#allocation3 + $0x48] sm:$0xe]
      %v5804 = vld [vmem:[#allocation3 + $0x54] sm:$0xe]
      %v5805 = vld [vmem:[#allocation3 + $0x60] sm:$0xe]
      %v5806 = vld [vmem:[#allocation3 + $0x6c] sm:$0xe]
      %v5807 = vld [vmem:[#allocation3 + $0x78] sm:$0xe]
      %v5808 = vld [vmem:[#allocation3 + $0x84] sm:$0xe]
      %v5809 = vld [vmem:[#allocation3 + $0x90] sm:$0xe]
      %v5810 = vld [vmem:[#allocation3 + $0x9c] sm:$0xe]
      %v5811 = vld [vmem:[#allocation3 + $0xa8] sm:$0xe]
      %v5812 = vld [vmem:[#allocation3 + $0xb4] sm:$0xe]
      %s5813 = scalar_lea.vmem %s2, 16
      %v5814 = vld [vmem:[%s5813] sm:$0xf]
      %v5815 = vld [vmem:[%s5813 + $0x4] sm:$0x3]
      %v5848 = vrot.slane %v5797, 5
      %v5849 = vrot.slane %v5848, 4
      %v5850 = vrot.slane %v4799, 5
      %v5851 = vsel %vm2696, %v5849, %v5850
      %v5852 = vrot.slane %v5850, 4
      %v5853 = vrot.slane %v4832, 5
      %v5854 = vsel %vm2696, %v5852, %v5853
      %v5855 = vrot.slane %v5798, 5
      %v5856 = vrot.slane %v5855, 4
      %v5857 = vrot.slane %v4801, 5
      %v5858 = vsel %vm2696, %v5856, %v5857
      %v5859 = vrot.slane %v5857, 4
      %v5860 = vrot.slane %v4833, 5
      %v5861 = vsel %vm2696, %v5859, %v5860
      %v5862 = vrot.slane %v5799, 5
      %v5863 = vrot.slane %v5862, 4
      %v5864 = vrot.slane %v4803, 5
      %v5865 = vsel %vm2696, %v5863, %v5864
      %v5866 = vrot.slane %v5864, 4
      %v5867 = vrot.slane %v4834, 5
      %v5868 = vsel %vm2696, %v5866, %v5867
      %v5869 = vrot.slane %v5800, 5
      %v5870 = vrot.slane %v5869, 4
      %v5871 = vrot.slane %v4805, 5
      %v5872 = vsel %vm2696, %v5870, %v5871
      %v5873 = vrot.slane %v5871, 4
      %v5874 = vrot.slane %v4835, 5
      %v5875 = vsel %vm2696, %v5873, %v5874
      %v5876 = vrot.slane %v5801, 5
      %v5877 = vrot.slane %v5876, 4
      %v5878 = vrot.slane %v4807, 5
      %v5879 = vsel %vm2696, %v5877, %v5878
      %v5880 = vrot.slane %v5878, 4
      %v5881 = vrot.slane %v4836, 5
      %v5882 = vsel %vm2696, %v5880, %v5881
      %v5883 = vrot.slane %v5802, 5
      %v5884 = vrot.slane %v5883, 4
      %v5885 = vrot.slane %v4809, 5
      %v5886 = vsel %vm2696, %v5884, %v5885
      %v5887 = vrot.slane %v5885, 4
      %v5888 = vrot.slane %v4837, 5
      %v5889 = vsel %vm2696, %v5887, %v5888
      %v5890 = vrot.slane %v5803, 5
      %v5891 = vrot.slane %v5890, 4
      %v5892 = vrot.slane %v4811, 5
      %v5893 = vsel %vm2696, %v5891, %v5892
      %v5894 = vrot.slane %v5892, 4
      %v5895 = vrot.slane %v4838, 5
      %v5896 = vsel %vm2696, %v5894, %v5895
      %v5897 = vrot.slane %v5804, 5
      %v5898 = vrot.slane %v5897, 4
      %v5899 = vrot.slane %v4813, 5
      %v5900 = vsel %vm2696, %v5898, %v5899
      %v5901 = vrot.slane %v5899, 4
      %v5902 = vrot.slane %v4839, 5
      %v5903 = vsel %vm2696, %v5901, %v5902
      %v5904 = vrot.slane %v5805, 5
      %v5905 = vrot.slane %v5904, 4
      %v5906 = vrot.slane %v4815, 5
      %v5907 = vsel %vm2696, %v5905, %v5906
      %v5908 = vrot.slane %v5906, 4
      %v5909 = vrot.slane %v4840, 5
      %v5910 = vsel %vm2696, %v5908, %v5909
      %v5911 = vrot.slane %v5806, 5
      %v5912 = vrot.slane %v5911, 4
      %v5913 = vrot.slane %v4817, 5
      %v5914 = vsel %vm2696, %v5912, %v5913
      %v5915 = vrot.slane %v5913, 4
      %v5916 = vrot.slane %v4841, 5
      %v5917 = vsel %vm2696, %v5915, %v5916
      %v5918 = vrot.slane %v5807, 5
      %v5919 = vrot.slane %v5918, 4
      %v5920 = vrot.slane %v4819, 5
      %v5921 = vsel %vm2696, %v5919, %v5920
      %v5922 = vrot.slane %v5920, 4
      %v5923 = vrot.slane %v4842, 5
      %v5924 = vsel %vm2696, %v5922, %v5923
      %v5925 = vrot.slane %v5808, 5
      %v5926 = vrot.slane %v5925, 4
      %v5927 = vrot.slane %v4821, 5
      %v5928 = vsel %vm2696, %v5926, %v5927
      %v5929 = vrot.slane %v5927, 4
      %v5930 = vrot.slane %v4843, 5
      %v5931 = vsel %vm2696, %v5929, %v5930
      %v5932 = vrot.slane %v5809, 5
      %v5933 = vrot.slane %v5932, 4
      %v5934 = vrot.slane %v4823, 5
      %v5935 = vsel %vm2696, %v5933, %v5934
      %v5936 = vrot.slane %v5934, 4
      %v5937 = vrot.slane %v4844, 5
      %v5938 = vsel %vm2696, %v5936, %v5937
      %v5939 = vrot.slane %v5810, 5
      %v5940 = vrot.slane %v5939, 4
      %v5941 = vrot.slane %v4825, 5
      %v5942 = vsel %vm2696, %v5940, %v5941
      %v5943 = vrot.slane %v5941, 4
      %v5944 = vrot.slane %v4845, 5
      %v5945 = vsel %vm2696, %v5943, %v5944
      %v5946 = vrot.slane %v5811, 5
      %v5947 = vrot.slane %v5946, 4
      %v5948 = vrot.slane %v4827, 5
      %v5949 = vsel %vm2696, %v5947, %v5948
      %v5950 = vrot.slane %v5948, 4
      %v5951 = vrot.slane %v4846, 5
      %v5952 = vsel %vm2696, %v5950, %v5951
      %v5953 = vrot.slane %v5812, 5
      %v5954 = vrot.slane %v5953, 4
      %v5955 = vrot.slane %v4829, 5
      %v5956 = vsel %vm2696, %v5954, %v5955
      %v5957 = vrot.slane %v5955, 4
      %v5958 = vrot.slane %v4847, 5
      %v5959 = vsel %vm2696, %v5957, %v5958
      %v5960 = vunpack.c.l.b16 %v5851
      %v5961 = vunpack.c.l.b16 %v5854
      %v5962 = vunpack.c.l.b16 %v5858
      %v5963 = vunpack.c.l.b16 %v5861
      %v5964 = vunpack.c.l.b16 %v5865
      %v5965 = vunpack.c.l.b16 %v5868
      %v5966 = vunpack.c.l.b16 %v5872
      %v5967 = vunpack.c.l.b16 %v5875
      %v5968 = vunpack.c.l.b16 %v5879
      %v5969 = vunpack.c.l.b16 %v5882
      %v5970 = vunpack.c.l.b16 %v5886
      %v5971 = vunpack.c.l.b16 %v5889
      %v5972 = vunpack.c.l.b16 %v5893
      %v5973 = vunpack.c.l.b16 %v5896
      %v5974 = vunpack.c.l.b16 %v5900
      %v5975 = vunpack.c.l.b16 %v5903
      %v5976 = vunpack.c.l.b16 %v5907
      %v5977 = vunpack.c.l.b16 %v5910
      %v5978 = vunpack.c.l.b16 %v5914
      %v5979 = vunpack.c.l.b16 %v5917
      %v5980 = vunpack.c.l.b16 %v5921
      %v5981 = vunpack.c.l.b16 %v5924
      %v5982 = vunpack.c.l.b16 %v5928
      %v5983 = vunpack.c.l.b16 %v5931
      %v5984 = vunpack.c.l.b16 %v5935
      %v5985 = vunpack.c.l.b16 %v5938
      %v5986 = vunpack.c.l.b16 %v5942
      %v5987 = vunpack.c.l.b16 %v5945
      %v5988 = vunpack.c.l.b16 %v5949
      %v5989 = vunpack.c.l.b16 %v5952
      %v5990 = vunpack.c.l.b16 %v5956
      %v5991 = vunpack.c.l.b16 %v5959
      %v5992 = vpack.c.b16 %v5961, %v5960
      %v5993 = vpack.c.b16 %v5963, %v5962
      %v5994 = vpack.c.b16 %v5965, %v5964
      %v5995 = vpack.c.b16 %v5967, %v5966
      %v5996 = vpack.c.b16 %v5969, %v5968
      %v5997 = vpack.c.b16 %v5971, %v5970
      %v5998 = vpack.c.b16 %v5973, %v5972
      %v5999 = vpack.c.b16 %v5975, %v5974
      %v6000 = vpack.c.b16 %v5977, %v5976
      %v6001 = vpack.c.b16 %v5979, %v5978
      %v6002 = vpack.c.b16 %v5981, %v5980
      %v6003 = vpack.c.b16 %v5983, %v5982
      %v6004 = vpack.c.b16 %v5985, %v5984
      %v6005 = vpack.c.b16 %v5987, %v5986
      %v6006 = vpack.c.b16 %v5989, %v5988
      %v6007 = vpack.c.b16 %v5991, %v5990
      %v6010 = vunpack.c.l.b16 %v5814
      %v6011 = vunpack.c.l.b16 %v5815
      %v6012 = vpack.c.b16 %v6011, %v6010
      %v6014 = vsel %vm2132, %v5992, 0
      %v6017 = vsel %vm2132, %v5993, 0
      %v6020 = vsel %vm2132, %v5994, 0
      %v6023 = vsel %vm2132, %v5995, 0
      %v6026 = vsel %vm2132, %v5996, 0
      %v6029 = vsel %vm2132, %v5997, 0
      %v6032 = vsel %vm2132, %v5998, 0
      %v6035 = vsel %vm2132, %v5999, 0
      %v6038 = vsel %vm2132, %v6000, 0
      %v6041 = vsel %vm2132, %v6001, 0
      %v6044 = vsel %vm2132, %v6002, 0
      %v6047 = vsel %vm2132, %v6003, 0
      %v6050 = vsel %vm2132, %v6004, 0
      %v6053 = vsel %vm2132, %v6005, 0
      %v6056 = vsel %vm2132, %v6006, 0
      %v6059 = vsel %vm2132, %v6007, 0
      %v6062 = vsel %vm2181, %v6012, 0
      %6064 = vmatprep.subr.bf16.mxu0 0
      %6065 = vmatpush1.bf16.msra.mxu0 %v6062
      %6066 = vmatprep.subr.bf16.mxu0 0
      %6067 = vmatpush1.bf16.msra.mxu0 0
      %6068 = vmatprep.subr.bf16.mxu0 0
      %6069 = vmatpush1.bf16.msra.mxu0 0
      %6070 = vmatprep.subr.bf16.mxu0 0
      %6071 = vmatpush1.bf16.msra.mxu0 0
      %6072 = vmatprep.subr.bf16.mxu0 0
      %6073 = vmatpush1.bf16.msra.mxu0 0
      %6074 = vmatprep.subr.bf16.mxu0 0
      %6075 = vmatpush1.bf16.msra.mxu0 0
      %6076 = vmatprep.subr.bf16.mxu0 0
      %6077 = vmatpush1.bf16.msra.mxu0 0
      %6078 = vmatprep.subr.bf16.mxu0 0
      %6079 = vmatpush1.bf16.msra.mxu0 0
      %6080 = vmatprep.subr.bf16.mxu0 0
      %6081 = vmatpush1.bf16.msra.mxu0 0
      %6082 = vmatprep.subr.bf16.mxu0 0
      %6083 = vmatpush1.bf16.msra.mxu0 0
      %6084 = vmatprep.subr.bf16.mxu0 0
      %6085 = vmatpush1.bf16.msra.mxu0 0
      %6086 = vmatprep.subr.bf16.mxu0 0
      %6087 = vmatpush1.bf16.msra.mxu0 0
      %6088 = vmatprep.subr.bf16.mxu0 0
      %6089 = vmatpush1.bf16.msra.mxu0 0
      %6090 = vmatprep.subr.bf16.mxu0 0
      %6091 = vmatpush1.bf16.msra.mxu0 0
      %6092 = vmatprep.subr.bf16.mxu0 0
      %6093 = vmatpush1.bf16.msra.mxu0 0
      %6094 = vmatprep.subr.bf16.mxu0 0
      %6095 = vmatpush1.bf16.msra.mxu0 0
      %6096 = vmatprep.mubr.bf16.mxu0 0
      %6097 = vmatmul.mubr.bf16.gmra.mrb[0].mxu0 %v6014
      %v6098 = vpop.f32.mrb[0].mxu0
      %v6099 = vadd.f32 0.0, %v6098
      %v6100 = vpop.f32.mrb[0].mxu0
      %v6101 = vpop.f32.mrb[0].mxu0
      %v6102 = vadd.f32 0.0, %v6101
      %v6103 = vpop.f32.mrb[0].mxu0
      %6104 = vmatprep.mubr.bf16.mxu0 0
      %6105 = vmatmul.mubr.bf16.gmra.mrb[0].mxu0 %v6017
      %v6106 = vpop.f32.mrb[0].mxu0
      %v6107 = vadd.f32 0.0, %v6106
      %v6108 = vpop.f32.mrb[0].mxu0
      %v6109 = vpop.f32.mrb[0].mxu0
      %v6110 = vadd.f32 0.0, %v6109
      %v6111 = vpop.f32.mrb[0].mxu0
      %6112 = vmatprep.mubr.bf16.mxu0 0
      %6113 = vmatmul.mubr.bf16.gmra.mrb[0].mxu0 %v6020
      %v6114 = vpop.f32.mrb[0].mxu0
      %v6115 = vadd.f32 0.0, %v6114
      %v6116 = vpop.f32.mrb[0].mxu0
      %v6117 = vpop.f32.mrb[0].mxu0
      %v6118 = vadd.f32 0.0, %v6117
      %v6119 = vpop.f32.mrb[0].mxu0
      %6120 = vmatprep.mubr.bf16.mxu0 0
      %6121 = vmatmul.mubr.bf16.gmra.mrb[0].mxu0 %v6023
      %v6122 = vpop.f32.mrb[0].mxu0
      %v6123 = vadd.f32 0.0, %v6122
      %v6124 = vpop.f32.mrb[0].mxu0
      %v6125 = vpop.f32.mrb[0].mxu0
      %v6126 = vadd.f32 0.0, %v6125
      %v6127 = vpop.f32.mrb[0].mxu0
      %6128 = vmatprep.mubr.bf16.mxu0 0
      %6129 = vmatmul.mubr.bf16.gmra.mrb[0].mxu0 %v6026
      %v6130 = vpop.f32.mrb[0].mxu0
      %v6131 = vadd.f32 0.0, %v6130
      %v6132 = vpop.f32.mrb[0].mxu0
      %v6133 = vpop.f32.mrb[0].mxu0
      %v6134 = vadd.f32 0.0, %v6133
      %v6135 = vpop.f32.mrb[0].mxu0
      %6136 = vmatprep.mubr.bf16.mxu0 0
      %6137 = vmatmul.mubr.bf16.gmra.mrb[0].mxu0 %v6029
      %v6138 = vpop.f32.mrb[0].mxu0
      %v6139 = vadd.f32 0.0, %v6138
      %v6140 = vpop.f32.mrb[0].mxu0
      %v6141 = vpop.f32.mrb[0].mxu0
      %v6142 = vadd.f32 0.0, %v6141
      %v6143 = vpop.f32.mrb[0].mxu0
      %6144 = vmatprep.mubr.bf16.mxu0 0
      %6145 = vmatmul.mubr.bf16.gmra.mrb[0].mxu0 %v6032
      %v6146 = vpop.f32.mrb[0].mxu0
      %v6147 = vadd.f32 0.0, %v6146
      %v6148 = vpop.f32.mrb[0].mxu0
      %v6149 = vpop.f32.mrb[0].mxu0
      %v6150 = vadd.f32 0.0, %v6149
      %v6151 = vpop.f32.mrb[0].mxu0
      %6152 = vmatprep.mubr.bf16.mxu0 0
      %6153 = vmatmul.mubr.bf16.gmra.mrb[0].mxu0 %v6035
      %v6154 = vpop.f32.mrb[0].mxu0
      %v6155 = vadd.f32 0.0, %v6154
      %v6156 = vpop.f32.mrb[0].mxu0
      %v6157 = vpop.f32.mrb[0].mxu0
      %v6158 = vadd.f32 0.0, %v6157
      %v6159 = vpop.f32.mrb[0].mxu0
      %6160 = vmatprep.mubr.bf16.mxu0 0
      %6161 = vmatmul.mubr.bf16.gmra.mrb[0].mxu0 %v6038
      %v6162 = vpop.f32.mrb[0].mxu0
      %v6163 = vadd.f32 0.0, %v6162
      %v6164 = vpop.f32.mrb[0].mxu0
      %v6165 = vpop.f32.mrb[0].mxu0
      %v6166 = vadd.f32 0.0, %v6165
      %v6167 = vpop.f32.mrb[0].mxu0
      %6168 = vmatprep.mubr.bf16.mxu0 0
      %6169 = vmatmul.mubr.bf16.gmra.mrb[0].mxu0 %v6041
      %v6170 = vpop.f32.mrb[0].mxu0
      %v6171 = vadd.f32 0.0, %v6170
      %v6172 = vpop.f32.mrb[0].mxu0
      %v6173 = vpop.f32.mrb[0].mxu0
      %v6174 = vadd.f32 0.0, %v6173
      %v6175 = vpop.f32.mrb[0].mxu0
      %6176 = vmatprep.mubr.bf16.mxu0 0
      %6177 = vmatmul.mubr.bf16.gmra.mrb[0].mxu0 %v6044
      %v6178 = vpop.f32.mrb[0].mxu0
      %v6179 = vadd.f32 0.0, %v6178
      %v6180 = vpop.f32.mrb[0].mxu0
      %v6181 = vpop.f32.mrb[0].mxu0
      %v6182 = vadd.f32 0.0, %v6181
      %v6183 = vpop.f32.mrb[0].mxu0
      %6184 = vmatprep.mubr.bf16.mxu0 0
      %6185 = vmatmul.mubr.bf16.gmra.mrb[0].mxu0 %v6047
      %v6186 = vpop.f32.mrb[0].mxu0
      %v6187 = vadd.f32 0.0, %v6186
      %v6188 = vpop.f32.mrb[0].mxu0
      %v6189 = vpop.f32.mrb[0].mxu0
      %v6190 = vadd.f32 0.0, %v6189
      %v6191 = vpop.f32.mrb[0].mxu0
      %6192 = vmatprep.mubr.bf16.mxu0 0
      %6193 = vmatmul.mubr.bf16.gmra.mrb[0].mxu0 %v6050
      %v6194 = vpop.f32.mrb[0].mxu0
      %v6195 = vadd.f32 0.0, %v6194
      %v6196 = vpop.f32.mrb[0].mxu0
      %v6197 = vpop.f32.mrb[0].mxu0
      %v6198 = vadd.f32 0.0, %v6197
      %v6199 = vpop.f32.mrb[0].mxu0
      %6200 = vmatprep.mubr.bf16.mxu0 0
      %6201 = vmatmul.mubr.bf16.gmra.mrb[0].mxu0 %v6053
      %v6202 = vpop.f32.mrb[0].mxu0
      %v6203 = vadd.f32 0.0, %v6202
      %v6204 = vpop.f32.mrb[0].mxu0
      %v6205 = vpop.f32.mrb[0].mxu0
      %v6206 = vadd.f32 0.0, %v6205
      %v6207 = vpop.f32.mrb[0].mxu0
      %6208 = vmatprep.mubr.bf16.mxu0 0
      %6209 = vmatmul.mubr.bf16.gmra.mrb[0].mxu0 %v6056
      %v6210 = vpop.f32.mrb[0].mxu0
      %v6211 = vadd.f32 0.0, %v6210
      %v6212 = vpop.f32.mrb[0].mxu0
      %v6213 = vpop.f32.mrb[0].mxu0
      %v6214 = vadd.f32 0.0, %v6213
      %v6215 = vpop.f32.mrb[0].mxu0
      %6216 = vmatprep.mubr.bf16.mxu0 0
      %6217 = vmatmul.mubr.bf16.gmra.mrb[0].mxu0 %v6059
      %v6218 = vpop.f32.mrb[0].mxu0
      %v6219 = vadd.f32 0.0, %v6218
      %v6220 = vpop.f32.mrb[0].mxu0
      %v6221 = vpop.f32.mrb[0].mxu0
      %v6222 = vadd.f32 0.0, %v6221
      %v6223 = vpop.f32.mrb[0].mxu0
      %6224 = vdwg.mxu0
      %v6225 = vadd.f32 %v5671, %v6099
      %v6226 = vadd.f32 %v5674, %v6102
      %v6227 = vadd.f32 %v5679, %v6107
      %v6228 = vadd.f32 %v5682, %v6110
      %v6229 = vadd.f32 %v5687, %v6115
      %v6230 = vadd.f32 %v5690, %v6118
      %v6231 = vadd.f32 %v5695, %v6123
      %v6232 = vadd.f32 %v5698, %v6126
      %v6233 = vadd.f32 %v5703, %v6131
      %v6234 = vadd.f32 %v5706, %v6134
      %v6235 = vadd.f32 %v5711, %v6139
      %v6236 = vadd.f32 %v5714, %v6142
      %v6237 = vadd.f32 %v5719, %v6147
      %v6238 = vadd.f32 %v5722, %v6150
      %v6239 = vadd.f32 %v5727, %v6155
      %v6240 = vadd.f32 %v5730, %v6158
      %v6241 = vadd.f32 %v5735, %v6163
      %v6242 = vadd.f32 %v5738, %v6166
      %v6243 = vadd.f32 %v5743, %v6171
      %v6244 = vadd.f32 %v5746, %v6174
      %v6245 = vadd.f32 %v5751, %v6179
      %v6246 = vadd.f32 %v5754, %v6182
      %v6247 = vadd.f32 %v5759, %v6187
      %v6248 = vadd.f32 %v5762, %v6190
      %v6249 = vadd.f32 %v5767, %v6195
      %v6250 = vadd.f32 %v5770, %v6198
      %v6251 = vadd.f32 %v5775, %v6203
      %v6252 = vadd.f32 %v5778, %v6206
      %v6253 = vadd.f32 %v5783, %v6211
      %v6254 = vadd.f32 %v5786, %v6214
      %v6255 = vadd.f32 %v5791, %v6219
      %v6256 = vadd.f32 %v5794, %v6222
      %v6257 = vsel %vm3106, %v6225, 0.0
      %v6258 = vsel %vm3106, %v6226, 0.0
      %v6259 = vadd.f32 %v6257, %v6258
      %v6260 = vsel %vm3106, %v6227, 0.0
      %v6261 = vadd.f32 %v6259, %v6260
      %v6262 = vsel %vm3106, %v6228, 0.0
      %v6263 = vadd.f32 %v6261, %v6262
      %v6264 = vsel %vm3106, %v6229, 0.0
      %v6265 = vadd.f32 %v6263, %v6264
      %v6266 = vsel %vm3106, %v6230, 0.0
      %v6267 = vadd.f32 %v6265, %v6266
      %v6268 = vsel %vm3106, %v6231, 0.0
      %v6269 = vadd.f32 %v6267, %v6268
      %v6270 = vsel %vm3106, %v6232, 0.0
      %v6271 = vadd.f32 %v6269, %v6270
      %v6272 = vsel %vm3106, %v6233, 0.0
      %v6273 = vadd.f32 %v6271, %v6272
      %v6274 = vsel %vm3106, %v6234, 0.0
      %v6275 = vadd.f32 %v6273, %v6274
      %v6276 = vsel %vm3106, %v6235, 0.0
      %v6277 = vadd.f32 %v6275, %v6276
      %v6278 = vsel %vm3106, %v6236, 0.0
      %v6279 = vadd.f32 %v6277, %v6278
      %v6280 = vsel %vm3106, %v6237, 0.0
      %v6281 = vadd.f32 %v6279, %v6280
      %v6282 = vsel %vm3106, %v6238, 0.0
      %v6283 = vadd.f32 %v6281, %v6282
      %v6284 = vsel %vm3106, %v6239, 0.0
      %v6285 = vadd.f32 %v6283, %v6284
      %v6286 = vsel %vm3106, %v6240, 0.0
      %v6287 = vadd.f32 %v6285, %v6286
      %v6288 = vsel %vm3106, %v6241, 0.0
      %v6289 = vadd.f32 %v6287, %v6288
      %v6290 = vsel %vm3106, %v6242, 0.0
      %v6291 = vadd.f32 %v6289, %v6290
      %v6292 = vsel %vm3106, %v6243, 0.0
      %v6293 = vadd.f32 %v6291, %v6292
      %v6294 = vsel %vm3106, %v6244, 0.0
      %v6295 = vadd.f32 %v6293, %v6294
      %v6296 = vsel %vm3106, %v6245, 0.0
      %v6297 = vadd.f32 %v6295, %v6296
      %v6298 = vsel %vm3106, %v6246, 0.0
      %v6299 = vadd.f32 %v6297, %v6298
      %v6300 = vsel %vm3106, %v6247, 0.0
      %v6301 = vadd.f32 %v6299, %v6300
      %v6302 = vsel %vm3106, %v6248, 0.0
      %v6303 = vadd.f32 %v6301, %v6302
      %v6304 = vsel %vm3106, %v6249, 0.0
      %v6305 = vadd.f32 %v6303, %v6304
      %v6306 = vsel %vm3106, %v6250, 0.0
      %v6307 = vadd.f32 %v6305, %v6306
      %v6308 = vsel %vm3106, %v6251, 0.0
      %v6309 = vadd.f32 %v6307, %v6308
      %v6310 = vsel %vm3106, %v6252, 0.0
      %v6311 = vadd.f32 %v6309, %v6310
      %v6312 = vsel %vm3106, %v6253, 0.0
      %v6313 = vadd.f32 %v6311, %v6312
      %v6314 = vsel %vm3106, %v6254, 0.0
      %v6315 = vadd.f32 %v6313, %v6314
      %v6316 = vsel %vm3106, %v6255, 0.0
      %v6317 = vadd.f32 %v6315, %v6316
      %v6318 = vsel %vm3106, %v6256, 0.0
      %v6319 = vadd.f32 %v6317, %v6318
      %v6320 = vrot.slane %v6319, 4
      %v6321 = vadd.f32 %v6319, %v6320
      %v6322 = vrot.slane %v6321, 2
      %v6323 = vadd.f32 %v6321, %v6322
      %v6324 = vrot.slane %v6323, 1
      %v6325 = vadd.f32 %v6323, %v6324
      %v6326 = vmul.f32 %v6225, %v6225
      %v6327 = vmul.f32 %v6226, %v6226
      %v6328 = vmul.f32 %v6227, %v6227
      %v6329 = vmul.f32 %v6228, %v6228
      %v6330 = vmul.f32 %v6229, %v6229
      %v6331 = vmul.f32 %v6230, %v6230
      %v6332 = vmul.f32 %v6231, %v6231
      %v6333 = vmul.f32 %v6232, %v6232
      %v6334 = vmul.f32 %v6233, %v6233
      %v6335 = vmul.f32 %v6234, %v6234
      %v6336 = vmul.f32 %v6235, %v6235
      %v6337 = vmul.f32 %v6236, %v6236
      %v6338 = vmul.f32 %v6237, %v6237
      %v6339 = vmul.f32 %v6238, %v6238
      %v6340 = vmul.f32 %v6239, %v6239
      %v6341 = vmul.f32 %v6240, %v6240
      %v6342 = vmul.f32 %v6241, %v6241
      %v6343 = vmul.f32 %v6242, %v6242
      %v6344 = vmul.f32 %v6243, %v6243
      %v6345 = vmul.f32 %v6244, %v6244
      %v6346 = vmul.f32 %v6245, %v6245
      %v6347 = vmul.f32 %v6246, %v6246
      %v6348 = vmul.f32 %v6247, %v6247
      %v6349 = vmul.f32 %v6248, %v6248
      %v6350 = vmul.f32 %v6249, %v6249
      %v6351 = vmul.f32 %v6250, %v6250
      %v6352 = vmul.f32 %v6251, %v6251
      %v6353 = vmul.f32 %v6252, %v6252
      %v6354 = vmul.f32 %v6253, %v6253
      %v6355 = vmul.f32 %v6254, %v6254
      %v6356 = vmul.f32 %v6255, %v6255
      %v6357 = vmul.f32 %v6256, %v6256
      %v6358 = vsel %vm3106, %v6326, 0.0
      %v6359 = vsel %vm3106, %v6327, 0.0
      %v6360 = vadd.f32 %v6358, %v6359
      %v6361 = vsel %vm3106, %v6328, 0.0
      %v6362 = vadd.f32 %v6360, %v6361
      %v6363 = vsel %vm3106, %v6329, 0.0
      %v6364 = vadd.f32 %v6362, %v6363
      %v6365 = vsel %vm3106, %v6330, 0.0
      %v6366 = vadd.f32 %v6364, %v6365
      %v6367 = vsel %vm3106, %v6331, 0.0
      %v6368 = vadd.f32 %v6366, %v6367
      %v6369 = vsel %vm3106, %v6332, 0.0
      %v6370 = vadd.f32 %v6368, %v6369
      %v6371 = vsel %vm3106, %v6333, 0.0
      %v6372 = vadd.f32 %v6370, %v6371
      %v6373 = vsel %vm3106, %v6334, 0.0
      %v6374 = vadd.f32 %v6372, %v6373
      %v6375 = vsel %vm3106, %v6335, 0.0
      %v6376 = vadd.f32 %v6374, %v6375
      %v6377 = vsel %vm3106, %v6336, 0.0
      %v6378 = vadd.f32 %v6376, %v6377
      %v6379 = vsel %vm3106, %v6337, 0.0
      %v6380 = vadd.f32 %v6378, %v6379
      %v6381 = vsel %vm3106, %v6338, 0.0
      %v6382 = vadd.f32 %v6380, %v6381
      %v6383 = vsel %vm3106, %v6339, 0.0
      %v6384 = vadd.f32 %v6382, %v6383
      %v6385 = vsel %vm3106, %v6340, 0.0
      %v6386 = vadd.f32 %v6384, %v6385
      %v6387 = vsel %vm3106, %v6341, 0.0
      %v6388 = vadd.f32 %v6386, %v6387
      %v6389 = vsel %vm3106, %v6342, 0.0
      %v6390 = vadd.f32 %v6388, %v6389
      %v6391 = vsel %vm3106, %v6343, 0.0
      %v6392 = vadd.f32 %v6390, %v6391
      %v6393 = vsel %vm3106, %v6344, 0.0
      %v6394 = vadd.f32 %v6392, %v6393
      %v6395 = vsel %vm3106, %v6345, 0.0
      %v6396 = vadd.f32 %v6394, %v6395
      %v6397 = vsel %vm3106, %v6346, 0.0
      %v6398 = vadd.f32 %v6396, %v6397
      %v6399 = vsel %vm3106, %v6347, 0.0
      %v6400 = vadd.f32 %v6398, %v6399
      %v6401 = vsel %vm3106, %v6348, 0.0
      %v6402 = vadd.f32 %v6400, %v6401
      %v6403 = vsel %vm3106, %v6349, 0.0
      %v6404 = vadd.f32 %v6402, %v6403
      %v6405 = vsel %vm3106, %v6350, 0.0
      %v6406 = vadd.f32 %v6404, %v6405
      %v6407 = vsel %vm3106, %v6351, 0.0
      %v6408 = vadd.f32 %v6406, %v6407
      %v6409 = vsel %vm3106, %v6352, 0.0
      %v6410 = vadd.f32 %v6408, %v6409
      %v6411 = vsel %vm3106, %v6353, 0.0
      %v6412 = vadd.f32 %v6410, %v6411
      %v6413 = vsel %vm3106, %v6354, 0.0
      %v6414 = vadd.f32 %v6412, %v6413
      %v6415 = vsel %vm3106, %v6355, 0.0
      %v6416 = vadd.f32 %v6414, %v6415
      %v6417 = vsel %vm3106, %v6356, 0.0
      %v6418 = vadd.f32 %v6416, %v6417
      %v6419 = vsel %vm3106, %v6357, 0.0
      %v6420 = vadd.f32 %v6418, %v6419
      %v6421 = vrot.slane %v6420, 4
      %v6422 = vadd.f32 %v6420, %v6421
      %v6423 = vrot.slane %v6422, 2
      %v6424 = vadd.f32 %v6422, %v6423
      %v6425 = vrot.slane %v6424, 1
      %v6426 = vadd.f32 %v6424, %v6425
      %v6427 = vmul.f32 %v6325, 0.00390625
      %v6428 = vmul.f32 %v6426, 0.00390625
      %v6429 = vmul.f32 %v6427, %v6427
      %v6430 = vsub.f32 %v6428, %v6429
      %v6431 = vmax.f32 %v6430, 0.0
      %v6432 = vsub.f32 %v6225, %v6427
      %v6433 = vsub.f32 %v6226, %v6427
      %v6434 = vsub.f32 %v6227, %v6427
      %v6435 = vsub.f32 %v6228, %v6427
      %v6436 = vsub.f32 %v6229, %v6427
      %v6437 = vsub.f32 %v6230, %v6427
      %v6438 = vsub.f32 %v6231, %v6427
      %v6439 = vsub.f32 %v6232, %v6427
      %v6440 = vsub.f32 %v6233, %v6427
      %v6441 = vsub.f32 %v6234, %v6427
      %v6442 = vsub.f32 %v6235, %v6427
      %v6443 = vsub.f32 %v6236, %v6427
      %v6444 = vsub.f32 %v6237, %v6427
      %v6445 = vsub.f32 %v6238, %v6427
      %v6446 = vsub.f32 %v6239, %v6427
      %v6447 = vsub.f32 %v6240, %v6427
      %v6448 = vsub.f32 %v6241, %v6427
      %v6449 = vsub.f32 %v6242, %v6427
      %v6450 = vsub.f32 %v6243, %v6427
      %v6451 = vsub.f32 %v6244, %v6427
      %v6452 = vsub.f32 %v6245, %v6427
      %v6453 = vsub.f32 %v6246, %v6427
      %v6454 = vsub.f32 %v6247, %v6427
      %v6455 = vsub.f32 %v6248, %v6427
      %v6456 = vsub.f32 %v6249, %v6427
      %v6457 = vsub.f32 %v6250, %v6427
      %v6458 = vsub.f32 %v6251, %v6427
      %v6459 = vsub.f32 %v6252, %v6427
      %v6460 = vsub.f32 %v6253, %v6427
      %v6461 = vsub.f32 %v6254, %v6427
      %v6462 = vsub.f32 %v6255, %v6427
      %v6463 = vsub.f32 %v6256, %v6427
      %v6464 = vadd.f32 %v6431, 1e-05
      %v6465 = vrsqrt.pop %v6464
      %v6466 = vmul.f32 %v6432, %v6465
      %v6467 = vmul.f32 %v6433, %v6465
      %v6468 = vmul.f32 %v6434, %v6465
      %v6469 = vmul.f32 %v6435, %v6465
      %v6470 = vmul.f32 %v6436, %v6465
      %v6471 = vmul.f32 %v6437, %v6465
      %v6472 = vmul.f32 %v6438, %v6465
      %v6473 = vmul.f32 %v6439, %v6465
      %v6474 = vmul.f32 %v6440, %v6465
      %v6475 = vmul.f32 %v6441, %v6465
      %v6476 = vmul.f32 %v6442, %v6465
      %v6477 = vmul.f32 %v6443, %v6465
      %v6478 = vmul.f32 %v6444, %v6465
      %v6479 = vmul.f32 %v6445, %v6465
      %v6480 = vmul.f32 %v6446, %v6465
      %v6481 = vmul.f32 %v6447, %v6465
      %v6482 = vmul.f32 %v6448, %v6465
      %v6483 = vmul.f32 %v6449, %v6465
      %v6484 = vmul.f32 %v6450, %v6465
      %v6485 = vmul.f32 %v6451, %v6465
      %v6486 = vmul.f32 %v6452, %v6465
      %v6487 = vmul.f32 %v6453, %v6465
      %v6488 = vmul.f32 %v6454, %v6465
      %v6489 = vmul.f32 %v6455, %v6465
      %v6490 = vmul.f32 %v6456, %v6465
      %v6491 = vmul.f32 %v6457, %v6465
      %v6492 = vmul.f32 %v6458, %v6465
      %v6493 = vmul.f32 %v6459, %v6465
      %v6494 = vmul.f32 %v6460, %v6465
      %v6495 = vmul.f32 %v6461, %v6465
      %v6496 = vmul.f32 %v6462, %v6465
      %v6497 = vmul.f32 %v6463, %v6465
      %v6498 = vld [vmem:[%s165] sm:$0xff]
      %v6499 = vld [vmem:[%s165 + $0x8] sm:$0xff]
      %v6500 = vld [vmem:[%s165 + $0x10] sm:$0xff]
      %v6501 = vld [vmem:[%s165 + $0x18] sm:$0xff]
      %v6502 = vld [vmem:[%s165 + $0x20] sm:$0xff]
      %v6503 = vld [vmem:[%s165 + $0x28] sm:$0xff]
      %v6504 = vld [vmem:[%s165 + $0x30] sm:$0xff]
      %v6505 = vld [vmem:[%s165 + $0x38] sm:$0xff]
      %v6506 = vld [vmem:[%s165 + $0x40] sm:$0xff]
      %v6507 = vld [vmem:[%s165 + $0x48] sm:$0xff]
      %v6508 = vld [vmem:[%s165 + $0x50] sm:$0xff]
      %v6509 = vld [vmem:[%s165 + $0x58] sm:$0xff]
      %v6510 = vld [vmem:[%s165 + $0x60] sm:$0xff]
      %v6511 = vld [vmem:[%s165 + $0x68] sm:$0xff]
      %v6512 = vld [vmem:[%s165 + $0x70] sm:$0xff]
      %v6513 = vld [vmem:[%s165 + $0x78] sm:$0xff]
      %v6514 = vld [vmem:[%s165 + $0x80] sm:$0xff]
      %v6515 = vld [vmem:[%s165 + $0x88] sm:$0xff]
      %v6516 = vld [vmem:[%s165 + $0x90] sm:$0xff]
      %v6517 = vld [vmem:[%s165 + $0x98] sm:$0xff]
      %v6518 = vld [vmem:[%s165 + $0xa0] sm:$0xff]
      %v6519 = vld [vmem:[%s165 + $0xa8] sm:$0xff]
      %v6520 = vld [vmem:[%s165 + $0xb0] sm:$0xff]
      %v6521 = vld [vmem:[%s165 + $0xb8] sm:$0xff]
      %v6522 = vld [vmem:[%s165 + $0xc0] sm:$0xff]
      %v6523 = vld [vmem:[%s165 + $0xc8] sm:$0xff]
      %v6524 = vld [vmem:[%s165 + $0xd0] sm:$0xff]
      %v6525 = vld [vmem:[%s165 + $0xd8] sm:$0xff]
      %v6526 = vld [vmem:[%s165 + $0xe0] sm:$0xff]
      %v6527 = vld [vmem:[%s165 + $0xe8] sm:$0xff]
      %v6528 = vld [vmem:[%s165 + $0xf0] sm:$0xff]
      %v6529 = vld [vmem:[%s165 + $0xf8] sm:$0xff]
      %v6530 = vadd.f32 %v6498, %v6466
      %v6531 = vadd.f32 %v6499, %v6467
      %v6532 = vadd.f32 %v6500, %v6468
      %v6533 = vadd.f32 %v6501, %v6469
      %v6534 = vadd.f32 %v6502, %v6470
      %v6535 = vadd.f32 %v6503, %v6471
      %v6536 = vadd.f32 %v6504, %v6472
      %v6537 = vadd.f32 %v6505, %v6473
      %v6538 = vadd.f32 %v6506, %v6474
      %v6539 = vadd.f32 %v6507, %v6475
      %v6540 = vadd.f32 %v6508, %v6476
      %v6541 = vadd.f32 %v6509, %v6477
      %v6542 = vadd.f32 %v6510, %v6478
      %v6543 = vadd.f32 %v6511, %v6479
      %v6544 = vadd.f32 %v6512, %v6480
      %v6545 = vadd.f32 %v6513, %v6481
      %v6546 = vadd.f32 %v6514, %v6482
      %v6547 = vadd.f32 %v6515, %v6483
      %v6548 = vadd.f32 %v6516, %v6484
      %v6549 = vadd.f32 %v6517, %v6485
      %v6550 = vadd.f32 %v6518, %v6486
      %v6551 = vadd.f32 %v6519, %v6487
      %v6552 = vadd.f32 %v6520, %v6488
      %v6553 = vadd.f32 %v6521, %v6489
      %v6554 = vadd.f32 %v6522, %v6490
      %v6555 = vadd.f32 %v6523, %v6491
      %v6556 = vadd.f32 %v6524, %v6492
      %v6557 = vadd.f32 %v6525, %v6493
      %v6558 = vadd.f32 %v6526, %v6494
      %v6559 = vadd.f32 %v6527, %v6495
      %v6560 = vadd.f32 %v6528, %v6496
      %v6561 = vadd.f32 %v6529, %v6497
      %6562 = vst.msk [vmem:[%s170] sm:$0xff] %vm3106, %v6530
      %6563 = vst.msk [vmem:[%s170 + $0x8] sm:$0xff] %vm3106, %v6531
      %6564 = vst.msk [vmem:[%s170 + $0x10] sm:$0xff] %vm3106, %v6532
      %6565 = vst.msk [vmem:[%s170 + $0x18] sm:$0xff] %vm3106, %v6533
      %6566 = vst.msk [vmem:[%s170 + $0x20] sm:$0xff] %vm3106, %v6534
      %6567 = vst.msk [vmem:[%s170 + $0x28] sm:$0xff] %vm3106, %v6535
      %6568 = vst.msk [vmem:[%s170 + $0x30] sm:$0xff] %vm3106, %v6536
      %6569 = vst.msk [vmem:[%s170 + $0x38] sm:$0xff] %vm3106, %v6537
      %6570 = vst.msk [vmem:[%s170 + $0x40] sm:$0xff] %vm3106, %v6538
      %6571 = vst.msk [vmem:[%s170 + $0x48] sm:$0xff] %vm3106, %v6539
      %6572 = vst.msk [vmem:[%s170 + $0x50] sm:$0xff] %vm3106, %v6540
      %6573 = vst.msk [vmem:[%s170 + $0x58] sm:$0xff] %vm3106, %v6541
      %6574 = vst.msk [vmem:[%s170 + $0x60] sm:$0xff] %vm3106, %v6542
      %6575 = vst.msk [vmem:[%s170 + $0x68] sm:$0xff] %vm3106, %v6543
      %6576 = vst.msk [vmem:[%s170 + $0x70] sm:$0xff] %vm3106, %v6544
      %6577 = vst.msk [vmem:[%s170 + $0x78] sm:$0xff] %vm3106, %v6545
      %6578 = vst.msk [vmem:[%s170 + $0x80] sm:$0xff] %vm3106, %v6546
      %6579 = vst.msk [vmem:[%s170 + $0x88] sm:$0xff] %vm3106, %v6547
      %6580 = vst.msk [vmem:[%s170 + $0x90] sm:$0xff] %vm3106, %v6548
      %6581 = vst.msk [vmem:[%s170 + $0x98] sm:$0xff] %vm3106, %v6549
      %6582 = vst.msk [vmem:[%s170 + $0xa0] sm:$0xff] %vm3106, %v6550
      %6583 = vst.msk [vmem:[%s170 + $0xa8] sm:$0xff] %vm3106, %v6551
      %6584 = vst.msk [vmem:[%s170 + $0xb0] sm:$0xff] %vm3106, %v6552
      %6585 = vst.msk [vmem:[%s170 + $0xb8] sm:$0xff] %vm3106, %v6553
      %6586 = vst.msk [vmem:[%s170 + $0xc0] sm:$0xff] %vm3106, %v6554
      %6587 = vst.msk [vmem:[%s170 + $0xc8] sm:$0xff] %vm3106, %v6555
      %6588 = vst.msk [vmem:[%s170 + $0xd0] sm:$0xff] %vm3106, %v6556
      %6589 = vst.msk [vmem:[%s170 + $0xd8] sm:$0xff] %vm3106, %v6557
      %6590 = vst.msk [vmem:[%s170 + $0xe0] sm:$0xff] %vm3106, %v6558
      %6591 = vst.msk [vmem:[%s170 + $0xe8] sm:$0xff] %vm3106, %v6559
      %6592 = vst.msk [vmem:[%s170 + $0xf0] sm:$0xff] %vm3106, %v6560
      %6593 = vst.msk [vmem:[%s170 + $0xf8] sm:$0xff] %vm3106, %v6561
      %p6594 = scmp.lt.s32.totalorder %s14, 1
      %s6595 = scalar_select %p6594, %s14, 1
      %s6596 = smul.addr %s6595, 32
      %s6597 = smul.addr %s6596, 8
      %s6598 = scalar_lea.vmem %s3, %s6597
      // Predicated region
      $region33: #{tpu_custom_call.1} parent=31 // pred_check
        %p6599 = pneg %p100
      $region34: #{tpu_custom_call.1} parent=31 // pred_check_branch
        %6601 = sbr.rel (%p6599) target = $region36
      $region35: #{tpu_custom_call.1} parent=31 // pred_region
        _
      $region36: #{tpu_custom_call.1} parent=31 // pred_fallthru
        _
    $region32: #{tpu_custom_call.1} parent=5 // pred_fallthru
      _
    %p6602 = scmp.le.s32.totalorder 2, %s9
    // Predicated region
    $region37: #{tpu_custom_call.1} parent=5 // pred_check
      %p6603 = pneg %p6602
    $region38: #{tpu_custom_call.1} parent=5 // pred_check_branch
      %6605 = sbr.rel (%p6603) target = $region40
    $region39: #{tpu_custom_call.1} parent=5 // pred_region
      %s6606 = ssub.s32 %s9, 2
      // Predicated region
      $region41: #{tpu_custom_call.1} parent=39 // pred_check
        %p6607 = pneg %p106
      $region42: #{tpu_custom_call.1} parent=39 // pred_check_branch
        %6609 = sbr.rel (%p6607) target = $region44
      $region43: #{tpu_custom_call.1} parent=39 // pred_region
        %p6610 = scmp.lt.s32.totalorder %s15, 1
        %s6611 = scalar_select %p6610, %s15, 1
        %s6612 = smul.addr %s6611, 32
        %s6613 = smul.addr %s6612, 8
        %s6614 = scalar_lea.vmem %s3, %s6613
      $region44: #{tpu_custom_call.1} parent=39 // pred_fallthru
        _
    $region40: #{tpu_custom_call.1} parent=5 // pred_fallthru
      _
  $region6: #{tpu_custom_call.1} parent=0 // loop_footer
    %s13 = sadd.s32 1, %s9
  $region7: #{tpu_custom_call.1} parent=0 // loop_footer_branch
    %8 = sbr.rel target = $region3
  $region8: #{tpu_custom_call.1} parent=0 // loop_exit
    _

</llo_original>
